<compile_context>
chip_gen: v6e
topology: v6e:2x2x1
jax: 0.10.0
libtpu: 0.0.40
codegen_flags: <defaults>
</compile_context>

<pallas_src>
import functools
import math

import jax
import jax.numpy as jnp
from jax import lax
from jax.experimental import pallas as pl
from jax.experimental.pallas import tpu as pltpu


# ----------------------------------------------------------------------------
# Helpers
# ----------------------------------------------------------------------------

@functools.lru_cache(maxsize=None)
def _vmem_limit_bytes():
    """~3/4 of physical VMEM: ~96 MiB on v5e/v6e (128 MiB), ~48 MiB on v7x (64 MiB)."""
    try:
        cap = int(pltpu.get_tpu_info().vmem_capacity_bytes)
    except Exception:
        cap = 64 * 1024 * 1024          # conservative (v7x-sized) fallback
    return min(cap * 3 // 4, 100 * 1024 * 1024)


def _pick_tile(dim, pref, align):
    """Largest legal tile <= pref that divides dim.

    Mosaic needs this axis to be a multiple of `align` (8 for sublane, 128 for lane)
    unless the block spans the full dim.
    """
    if dim <= pref:
        return dim                      # full dim is always a legal block
    if dim % pref == 0 and pref % align == 0:
        return pref
    t = (pref // align) * align
    while t >= align:
        if dim % t == 0:
            return t
        t -= align
    # TODO(synk): pad + mask instead of a full-dim fallback for dims that are not
    # multiples of `align`; a full-dim block can blow the VMEM budget on v7x.
    return dim


# ----------------------------------------------------------------------------
# Fused matmul kernel:  out = epilogue( x @ w + b )
#   epilogue = [ReLU] -> [+ residual] -> [LayerNorm(gamma, beta)]
# ----------------------------------------------------------------------------

def _fused_matmul_kernel(*refs, activation, has_residual, has_ln, eps):
    x_ref, w_ref, b_ref = refs[0], refs[1], refs[2]
    idx = 3
    if has_residual:
        r_ref = refs[idx]; idx += 1
    if has_ln:
        g_ref, be_ref = refs[idx], refs[idx + 1]; idx += 2
    o_ref = refs[idx]
    acc_ref = refs[idx + 1]

    k = pl.program_id(2)

    @pl.when(k == 0)
    def _():
        acc_ref[...] = jnp.zeros_like(acc_ref)

    acc_ref[...] += jnp.dot(x_ref[...], w_ref[...],
                            preferred_element_type=jnp.float32)

    @pl.when(k == pl.num_programs(2) - 1)
    def _():
        y = acc_ref[...] + b_ref[...].astype(jnp.float32)
        if activation == "relu":
            y = jnp.maximum(y, 0.0)
        if has_residual:
            y = y + r_ref[...].astype(jnp.float32)
        if has_ln:
            mu = jnp.mean(y, axis=-1, keepdims=True)
            var = jnp.mean((y - mu) ** 2, axis=-1, keepdims=True)
            y = (y - mu) * lax.rsqrt(var + eps)
            y = y * g_ref[...].astype(jnp.float32) + be_ref[...].astype(jnp.float32)
        o_ref[...] = y.astype(o_ref.dtype)


def fused_linear(x2d, w, b, *, activation=None, residual=None, ln=None, eps=1e-5,
                 tm_pref=256, tn_pref=256, tk_pref=512):
    """[M, K] @ [K, N] + b with optional fused ReLU / residual / LayerNorm epilogue.

    Returns bf16 [M, N].  Weights are expected to already be bf16 (stored that way
    at init -- no per-call cast / extra HBM weight traffic); accumulation is f32 in
    VMEM scratch.  Tiles are 256/256/512-preferred and only ever legal divisors.
    """
    M, K = x2d.shape
    N = w.shape[1]
    tm = _pick_tile(M, tm_pref, 8)
    tk = _pick_tile(K, tk_pref, 128)
    # LayerNorm reduces over the full feature dim -> keep N un-tiled in that case,
    # but budget the double-buffered weight slab against the VMEM limit (v7x case).
    if ln is not None:
        tn = N
        budget = _vmem_limit_bytes() - (8 << 20)

        def _step_bytes(tk_):
            return (2 * 2 * (tm * tk_ + tk_ * tn)   # 2-buffered bf16 x/w slabs
                    + 4 * tm * tn                   # f32 accumulator
                    + 2 * 2 * 2 * tm * tn)          # bf16 out + residual (2-buffered)

        while (_step_bytes(tk) > budget and tk >= 256
               and (tk // 2) % 128 == 0 and K % (tk // 2) == 0):
            tk //= 2
    else:
        tn = _pick_tile(N, tn_pref, 128)

    in_specs = [
        pl.BlockSpec((tm, tk), lambda i, j, k: (i, k)),
        pl.BlockSpec((tk, tn), lambda i, j, k: (k, j)),
        pl.BlockSpec((1, tn), lambda i, j, k: (0, j)),
    ]
    # .astype is a no-op when the operand is already in the target dtype.
    args = [x2d.astype(jnp.bfloat16), w.astype(jnp.bfloat16),
            b.reshape(1, N).astype(jnp.float32)]

    if residual is not None:
        in_specs.append(pl.BlockSpec((tm, tn), lambda i, j, k: (i, j)))
        args.append(residual.astype(jnp.bfloat16))
    if ln is not None:
        gamma, beta = ln
        in_specs.append(pl.BlockSpec((1, tn), lambda i, j, k: (0, j)))
        in_specs.append(pl.BlockSpec((1, tn), lambda i, j, k: (0, j)))
        args.append(gamma.reshape(1, N).astype(jnp.float32))
        args.append(beta.reshape(1, N).astype(jnp.float32))

    bytes_acc = 2 * (M * K + K * N + M * N) + 4 * N
    if residual is not None:
        bytes_acc += 2 * M * N
    cost = pl.CostEstimate(flops=2 * M * N * K,
                           transcendentals=(M if ln is not None else 0),
                           bytes_accessed=bytes_acc)

    grid = (M // tm, N // tn, K // tk)
    return pl.pallas_call(
        functools.partial(_fused_matmul_kernel, activation=activation,
                          has_residual=residual is not None,
                          has_ln=ln is not None, eps=eps),
        grid=grid,
        in_specs=in_specs,
        out_specs=pl.BlockSpec((tm, tn), lambda i, j, k: (i, j)),
        out_shape=jax.ShapeDtypeStruct((M, N), jnp.bfloat16),
        scratch_shapes=[pltpu.VMEM((tm, tn), jnp.float32)],
        compiler_params=pltpu.CompilerParams(
            dimension_semantics=("parallel", "parallel", "arbitrary"),
            vmem_limit_bytes=_vmem_limit_bytes()),
        cost_estimate=cost,
    )(*args)


# ----------------------------------------------------------------------------
# Multi-head attention core.  Lane-dense: q/k/v blocks keep D as the last dim,
# heads are split in-kernel, per-head outputs streamed straight into o_ref.
# ----------------------------------------------------------------------------

def _attn_kernel(q_ref, k_ref, v_ref, o_ref, *, num_heads, scale, causal, tq):
    q = q_ref[0]                 # [tq, D]  bf16
    k = k_ref[0]                 # [S,  D]  bf16
    v = v_ref[0]                 # [S,  D]  bf16
    D = q.shape[-1]
    S = k.shape[0]
    dh = D // num_heads

    # Fold 1/sqrt(dh) into q once instead of scaling every [tq, S] score tile.
    qs = (q.astype(jnp.float32) * scale).astype(jnp.bfloat16)

    if causal:
        q_start = pl.program_id(1) * tq
        qi = lax.broadcasted_iota(jnp.int32, (tq, S), 0) + q_start
        ki = lax.broadcasted_iota(jnp.int32, (tq, S), 1)
        keep = ki <= qi

    for h in range(num_heads):
        lo, hi = h * dh, (h + 1) * dh
        # scores = q_h @ k_h^T without materializing a transpose of K.
        s = lax.dot_general(qs[:, lo:hi], k[:, lo:hi], (((1,), (1,)), ((), ())),
                            preferred_element_type=jnp.float32)          # [tq, S]
        if causal:
            s = jnp.where(keep, s, -1e30)       # finite mask: no NaN on masked rows
        m = jnp.max(s, axis=-1, keepdims=True)
        p = jnp.exp(s - m)                                               # [tq, S]
        l = jnp.sum(p, axis=-1, keepdims=True)                           # [tq, 1]
        oh = lax.dot_general(p.astype(jnp.bfloat16), v[:, lo:hi],
                             (((1,), (0,)), ((), ())),
                             preferred_element_type=jnp.float32)         # [tq, dh]
        # Deferred softmax normalization on the small [tq, dh] tile (exact divide
        # for parity with torch) and a streamed per-head store -- no concat, no
        # H live f32 partials.
        o_ref[0, :, lo:hi] = (oh / l).astype(o_ref.dtype)


def attention_core(q_arr, k_arr, v_arr, num_heads, *, causal, d_model,
                   q_col=0, k_col=0, v_col=0):
    """q_arr: [B, T, *]; k_arr/v_arr: [B, S, *]  ->  [B, T, d_model]  (bf16).

    The *_col arguments select D-wide column blocks of a (possibly fused) last dim,
    so a fused QKV / KV projection output feeds attention directly through
    BlockSpecs -- no XLA-level slicing / extra activation HBM copies.
    """
    B, T = q_arr.shape[0], q_arr.shape[1]
    S = k_arr.shape[1]
    D = d_model
    tq = _pick_tile(T, 256, 8)
    scale = 1.0 / math.sqrt(D // num_heads)

    cost = pl.CostEstimate(
        flops=2 * 2 * B * T * S * D,                      # QK^T and PV matmuls
        transcendentals=B * T * S,                        # exp
        bytes_accessed=2 * (2 * B * T * D + 2 * B * S * D))

    # TODO(synk): for long S add a KV grid axis with flash-style online softmax
    # (and pl.Buffered(1) on the K/V specs); full-KV residency is fine at these sizes.
    return pl.pallas_call(
        functools.partial(_attn_kernel, num_heads=num_heads, scale=scale,
                          causal=causal, tq=tq),
        grid=(B, T // tq),
        in_specs=[
            pl.BlockSpec((1, tq, D), lambda b, t: (b, t, q_col)),
            pl.BlockSpec((1, S, D), lambda b, t: (b, 0, k_col)),
            pl.BlockSpec((1, S, D), lambda b, t: (b, 0, v_col)),
        ],
        out_specs=pl.BlockSpec((1, tq, D), lambda b, t: (b, t, 0)),
        out_shape=jax.ShapeDtypeStruct((B, T, D), jnp.bfloat16),
        compiler_params=pltpu.CompilerParams(
            dimension_semantics=("parallel", "parallel"),
            vmem_limit_bytes=_vmem_limit_bytes()),
        cost_estimate=cost,
    )(q_arr.astype(jnp.bfloat16), k_arr.astype(jnp.bfloat16),
      v_arr.astype(jnp.bfloat16))


# ----------------------------------------------------------------------------
# Decoder layer / full model glue.
# ----------------------------------------------------------------------------

def decoder_layer(x, enc, p, num_heads):
    B, T, D = x.shape
    S = enc.shape[1]
    x2d = x.reshape(B * T, D)
    # Column-block indexing of the fused QKV/KV buffers needs a 128-aligned D.
    lane_fused_ok = (D % 128 == 0)

    # --- masked self-attention: fused QKV GEMM -> attention -> out-proj+residual+LN1
    qkv = fused_linear(x2d, p["w_qkv"], p["b_qkv"]).reshape(B, T, 3 * D)
    if lane_fused_ok:
        sa = attention_core(qkv, qkv, qkv, num_heads, causal=True, d_model=D,
                            q_col=0, k_col=1, v_col=2)
    else:
        q, k, v = qkv[..., :D], qkv[..., D:2 * D], qkv[..., 2 * D:]
        sa = attention_core(q, k, v, num_heads, causal=True, d_model=D)
    sa = sa.reshape(B * T, D)
    x2d = fused_linear(sa, p["wo_sa"], p["bo_sa"],
                       residual=x2d, ln=(p["ln1_g"], p["ln1_b"]))

    # --- cross-attention over encoder output: Q GEMM + fused KV GEMM
    enc2d = enc.reshape(B * S, D)
    qc = fused_linear(x2d, p["wq_ca"], p["bq_ca"]).reshape(B, T, D)
    kv = fused_linear(enc2d, p["w_kv"], p["b_kv"]).reshape(B, S, 2 * D)
    if lane_fused_ok:
        ca = attention_core(qc, kv, kv, num_heads, causal=False, d_model=D,
                            q_col=0, k_col=0, v_col=1)
    else:
        kc, vc = kv[..., :D], kv[..., D:]
        ca = attention_core(qc, kc, vc, num_heads, causal=False, d_model=D)
    ca = ca.reshape(B * T, D)
    x2d = fused_linear(ca, p["wo_ca"], p["bo_ca"],
                       residual=x2d, ln=(p["ln2_g"], p["ln2_b"]))

    # --- position-wise FFN: GEMM+ReLU, then GEMM+residual+LN3
    h = fused_linear(x2d, p["ff_w1"], p["ff_b1"], activation="relu")
    x2d = fused_linear(h, p["ff_w2"], p["ff_b2"],
                       residual=x2d, ln=(p["ln3_g"], p["ln3_b"]))
    return x2d.reshape(B, T, D)


def sinusoidal_pe(max_len, d):
    pos = jnp.arange(max_len, dtype=jnp.float32)[:, None]
    div = jnp.exp(jnp.arange(0, d, 2, dtype=jnp.float32) * (-math.log(10000.0) / d))
    pe = jnp.zeros((max_len, d), jnp.float32)
    pe = pe.at[:, 0::2].set(jnp.sin(pos * div))
    pe = pe.at[:, 1::2].set(jnp.cos(pos * div))
    return pe


def transformer_decoder(tgt, encoder_output, params, num_heads):
    """tgt: int32 [B, T]; encoder_output: f32 [B, S, D] -> f32 [B, T, D]."""
    B, T = tgt.shape
    D = params["embed"].shape[1]
    # Embedding gather + sinusoidal PE kept in XLA (data-dependent gather).
    x = params["embed"][tgt] * jnp.float32(math.sqrt(D)) + params["pe"][:T][None, :, :]
    x = x.astype(jnp.bfloat16)
    enc = encoder_output.astype(jnp.bfloat16)
    for layer_p in params["layers"]:
        x = decoder_layer(x, enc, layer_p, num_heads)
    return x.astype(jnp.float32)


# ----------------------------------------------------------------------------
# Parameter init.  Projection weights are stored in bf16 ONCE here, so the
# forward pass never re-reads f32 weights or writes bf16 copies.
# ----------------------------------------------------------------------------

def init_params(key, vocab_size, embed_dim, num_layers, ff_hidden_dim, max_len):
    d = embed_dim
    keys = jax.random.split(key, num_layers + 1)
    params = {
        "embed": jax.random.normal(keys[0], (vocab_size, d), jnp.float32) * 0.02,
        "pe": sinusoidal_pe(max_len, d),
        "layers": [],
    }
    s = 1.0 / math.sqrt(d)

    def w_init(k, shape, scale):
        return (jax.random.normal(k, shape, jnp.float32) * scale).astype(jnp.bfloat16)

    for li in range(num_layers):
        ks = jax.random.split(keys[li + 1], 8)
        params["layers"].append({
            # self-attention: fused QKV projection [D, 3D]
            "w_qkv": w_init(ks[0], (d, 3 * d), s),
            "b_qkv": jnp.zeros((3 * d,), jnp.float32),
            "wo_sa": w_init(ks[1], (d, d), s),
            "bo_sa": jnp.zeros((d,), jnp.float32),
            "ln1_g": jnp.ones((d,), jnp.float32), "ln1_b": jnp.zeros((d,), jnp.float32),
            # cross-attention: Q projection + fused KV projection [D, 2D]
            "wq_ca": w_init(ks[2], (d, d), s),
            "bq_ca": jnp.zeros((d,), jnp.float32),
            "w_kv": w_init(ks[3], (d, 2 * d), s),
            "b_kv": jnp.zeros((2 * d,), jnp.float32),
            "wo_ca": w_init(ks[4], (d, d), s),
            "bo_ca": jnp.zeros((d,), jnp.float32),
            "ln2_g": jnp.ones((d,), jnp.float32), "ln2_b": jnp.zeros((d,), jnp.float32),
            # feed-forward
            "ff_w1": w_init(ks[5], (d, ff_hidden_dim), 1.0 / math.sqrt(d)),
            "ff_b1": jnp.zeros((ff_hidden_dim,), jnp.float32),
            "ff_w2": w_init(ks[6], (ff_hidden_dim, d), 1.0 / math.sqrt(ff_hidden_dim)),
            "ff_b2": jnp.zeros((d,), jnp.float32),
            "ln3_g": jnp.ones((d,), jnp.float32), "ln3_b": jnp.zeros((d,), jnp.float32),
        })
    return params


# ----------------------------------------------------------------------------
# Main.
# ----------------------------------------------------------------------------

if __name__ == "__main__":
    # Feature dims kept >= 128 so every last dim is lane-dense (per perf review);
    # batch / sequence dims stay small.
    vocab_size, embed_dim, num_layers, num_heads, ff_hidden_dim = 50, 128, 2, 4, 256
    max_len = 64
    B, T, S = 2, 8, 10

    key = jax.random.PRNGKey(0)
    k_par, k_tgt, k_enc = jax.random.split(key, 3)

    params = init_params(k_par, vocab_size, embed_dim, num_layers, ff_hidden_dim, max_len)
    tgt = jax.random.randint(k_tgt, (B, T), 0, vocab_size, dtype=jnp.int32)
    encoder_output = jax.random.normal(k_enc, (B, S, embed_dim), jnp.float32)

    fwd = jax.jit(functools.partial(transformer_decoder, num_heads=num_heads))
    out = jax.block_until_ready(fwd(tgt, encoder_output, params))

    assert out.shape == (B, T, embed_dim), out.shape
    assert bool(jnp.all(jnp.isfinite(out)))
    print("KERNEL_OK")
</pallas_src>

<mosaic_0001>
module attributes {stable_mosaic.version = 11 : i64} {
  func.func @_fused_matmul_kernel(%arg0: i32, %arg1: i32, %arg2: i32, %arg3: memref<16x128xbf16, #tpu.memory_space<vmem>>, %arg4: memref<128x128xbf16, #tpu.memory_space<vmem>>, %arg5: memref<1x128xf32, #tpu.memory_space<vmem>>, %arg6: memref<16x128xbf16, #tpu.memory_space<vmem>>, %arg7: memref<16x128xf32, #tpu.memory_space<vmem>>) attributes {dimension_semantics = [#tpu.dimension_semantics<parallel>, #tpu.dimension_semantics<parallel>, #tpu.dimension_semantics<arbitrary>], iteration_bounds = array<i64: 1, 3, 1>, scalar_prefetch = 0 : i64, scratch_operands = 1 : i64, tpu.core_type = #tpu.core_type<tc>, window_params = [{transform_indices = @transform_0, window_bounds = array<i64: 16, 128>}, {transform_indices = @transform_1, window_bounds = array<i64: 128, 128>}, {transform_indices = @transform_2, window_bounds = array<i64: 1, 128>}, {transform_indices = @transform_3, window_bounds = array<i64: 16, 128>}]} {
    %c0_i32 = arith.constant 0 : i32
    %0 = arith.cmpi eq, %arg2, %c0_i32 : i32
    %1 = arith.extui %0 : i1 to i32
    %c0_i32_0 = arith.constant 0 : i32
    %2 = arith.cmpi ne, %1, %c0_i32_0 : i32
    scf.if %2 {
      %cst_10 = arith.constant 0.000000e+00 : f32
      %12 = vector.broadcast %cst_10 : f32 to vector<16x128xf32>
      %c0_11 = arith.constant 0 : index
      %c0_12 = arith.constant 0 : index
      %13 = vector.load %arg7[%c0_11, %c0_12] : memref<16x128xf32, #tpu.memory_space<vmem>>, vector<16x128xf32>
      tpu.vector_store %arg7[%c0_11, %c0_12], %12 {strides = array<i32>} : memref<16x128xf32, #tpu.memory_space<vmem>>, vector<16x128xf32>,
    } else {
    }
    %c0 = arith.constant 0 : index
    %c0_1 = arith.constant 0 : index
    %3 = vector.load %arg7[%c0, %c0_1] : memref<16x128xf32, #tpu.memory_space<vmem>>, vector<16x128xf32>
    %c0_2 = arith.constant 0 : index
    %c0_3 = arith.constant 0 : index
    %4 = vector.load %arg3[%c0_2, %c0_3] : memref<16x128xbf16, #tpu.memory_space<vmem>>, vector<16x128xbf16>
    %c0_4 = arith.constant 0 : index
    %c0_5 = arith.constant 0 : index
    %5 = vector.load %arg4[%c0_4, %c0_5] : memref<128x128xbf16, #tpu.memory_space<vmem>>, vector<128x128xbf16>
    %cst = arith.constant dense<0.000000e+00> : vector<16x128xf32>
    %6 = tpu.matmul %4, %5, %cst {dimension_numbers = #tpu.dot_dimension_numbers<[1], [0], [0], [1], [0, 0, 1, 1], [], []>} : vector<16x128xbf16>, vector<128x128xbf16>, vector<16x128xf32> -> vector<16x128xf32>
    %7 = arith.addf %3, %6 : vector<16x128xf32>
    %c0_6 = arith.constant 0 : index
    %c0_7 = arith.constant 0 : index
    %8 = vector.load %arg7[%c0_6, %c0_7] : memref<16x128xf32, #tpu.memory_space<vmem>>, vector<16x128xf32>
    tpu.vector_store %arg7[%c0_6, %c0_7], %7 {strides = array<i32>} : memref<16x128xf32, #tpu.memory_space<vmem>>, vector<16x128xf32>,
    %c0_i32_8 = arith.constant 0 : i32
    %9 = arith.cmpi eq, %arg2, %c0_i32_8 : i32
    %10 = arith.extui %9 : i1 to i32
    %c0_i32_9 = arith.constant 0 : i32
    %11 = arith.cmpi ne, %10, %c0_i32_9 : i32
    scf.if %11 {
      %c0_10 = arith.constant 0 : index
      %c0_11 = arith.constant 0 : index
      %12 = vector.load %arg7[%c0_10, %c0_11] : memref<16x128xf32, #tpu.memory_space<vmem>>, vector<16x128xf32>
      %c0_12 = arith.constant 0 : index
      %c0_13 = arith.constant 0 : index
      %13 = vector.load %arg5[%c0_12, %c0_13] : memref<1x128xf32, #tpu.memory_space<vmem>>, vector<1x128xf32>
      %14 = vector.broadcast %13 : vector<1x128xf32> to vector<16x128xf32>
      %15 = arith.addf %12, %14 : vector<16x128xf32>
      %16 = arith.truncf %15 : vector<16x128xf32> to vector<16x128xbf16>
      %c0_14 = arith.constant 0 : index
      %c0_15 = arith.constant 0 : index
      %17 = vector.load %arg6[%c0_14, %c0_15] : memref<16x128xbf16, #tpu.memory_space<vmem>>, vector<16x128xbf16>
      tpu.vector_store %arg6[%c0_14, %c0_15], %16 {strides = array<i32>} : memref<16x128xbf16, #tpu.memory_space<vmem>>, vector<16x128xbf16>,
    } else {
    }
    return
  }
  func.func @transform_0(%arg0: i32, %arg1: i32, %arg2: i32) -> (i32, i32) {
    %c0_i32 = arith.constant 0 : i32
    return %arg0, %arg2 : i32, i32
  }
  func.func @transform_1(%arg0: i32, %arg1: i32, %arg2: i32) -> (i32, i32) {
    %c0_i32 = arith.constant 0 : i32
    return %arg2, %arg1 : i32, i32
  }
  func.func @transform_2(%arg0: i32, %arg1: i32, %arg2: i32) -> (i32, i32) {
    %c0_i32 = arith.constant 0 : i32
    %c0_i32_0 = arith.constant 0 : i32
    return %c0_i32, %arg1 : i32, i32
  }
  func.func @transform_3(%arg0: i32, %arg1: i32, %arg2: i32) -> (i32, i32) {
    %c0_i32 = arith.constant 0 : i32
    return %arg0, %arg1 : i32, i32
  }
}

module attributes {stable_mosaic.version = 11 : i64} {
  func.func @_fused_matmul_kernel(%arg0: i32, %arg1: i32, %arg2: i32, %arg3: memref<16x128xbf16, #tpu.memory_space<vmem>>, %arg4: memref<128x128xbf16, #tpu.memory_space<vmem>>, %arg5: memref<1x128xf32, #tpu.memory_space<vmem>>, %arg6: memref<16x128xbf16, #tpu.memory_space<vmem>>, %arg7: memref<1x128xf32, #tpu.memory_space<vmem>>, %arg8: memref<1x128xf32, #tpu.memory_space<vmem>>, %arg9: memref<16x128xbf16, #tpu.memory_space<vmem>>, %arg10: memref<16x128xf32, #tpu.memory_space<vmem>>) attributes {dimension_semantics = [#tpu.dimension_semantics<parallel>, #tpu.dimension_semantics<parallel>, #tpu.dimension_semantics<arbitrary>], iteration_bounds = array<i64: 1, 1, 1>, scalar_prefetch = 0 : i64, scratch_operands = 1 : i64, tpu.core_type = #tpu.core_type<tc>, window_params = [{transform_indices = @transform_0, window_bounds = array<i64: 16, 128>}, {transform_indices = @transform_1, window_bounds = array<i64: 128, 128>}, {transform_indices = @transform_2, window_bounds = array<i64: 1, 128>}, {transform_indices = @transform_3, window_bounds = array<i64: 16, 128>}, {transform_indices = @transform_4, window_bounds = array<i64: 1, 128>}, {transform_indices = @transform_5, window_bounds = array<i64: 1, 128>}, {transform_indices = @transform_6, window_bounds = array<i64: 16, 128>}]} {
    %c0_i32 = arith.constant 0 : i32
    %0 = arith.cmpi eq, %arg2, %c0_i32 : i32
    %1 = arith.extui %0 : i1 to i32
    %c0_i32_0 = arith.constant 0 : i32
    %2 = arith.cmpi ne, %1, %c0_i32_0 : i32
    scf.if %2 {
      %cst_10 = arith.constant 0.000000e+00 : f32
      %12 = vector.broadcast %cst_10 : f32 to vector<16x128xf32>
      %c0_11 = arith.constant 0 : index
      %c0_12 = arith.constant 0 : index
      %13 = vector.load %arg10[%c0_11, %c0_12] : memref<16x128xf32, #tpu.memory_space<vmem>>, vector<16x128xf32>
      tpu.vector_store %arg10[%c0_11, %c0_12], %12 {strides = array<i32>} : memref<16x128xf32, #tpu.memory_space<vmem>>, vector<16x128xf32>,
    } else {
    }
    %c0 = arith.constant 0 : index
    %c0_1 = arith.constant 0 : index
    %3 = vector.load %arg10[%c0, %c0_1] : memref<16x128xf32, #tpu.memory_space<vmem>>, vector<16x128xf32>
    %c0_2 = arith.constant 0 : index
    %c0_3 = arith.constant 0 : index
    %4 = vector.load %arg3[%c0_2, %c0_3] : memref<16x128xbf16, #tpu.memory_space<vmem>>, vector<16x128xbf16>
    %c0_4 = arith.constant 0 : index
    %c0_5 = arith.constant 0 : index
    %5 = vector.load %arg4[%c0_4, %c0_5] : memref<128x128xbf16, #tpu.memory_space<vmem>>, vector<128x128xbf16>
    %cst = arith.constant dense<0.000000e+00> : vector<16x128xf32>
    %6 = tpu.matmul %4, %5, %cst {dimension_numbers = #tpu.dot_dimension_numbers<[1], [0], [0], [1], [0, 0, 1, 1], [], []>} : vector<16x128xbf16>, vector<128x128xbf16>, vector<16x128xf32> -> vector<16x128xf32>
    %7 = arith.addf %3, %6 : vector<16x128xf32>
    %c0_6 = arith.constant 0 : index
    %c0_7 = arith.constant 0 : index
    %8 = vector.load %arg10[%c0_6, %c0_7] : memref<16x128xf32, #tpu.memory_space<vmem>>, vector<16x128xf32>
    tpu.vector_store %arg10[%c0_6, %c0_7], %7 {strides = array<i32>} : memref<16x128xf32, #tpu.memory_space<vmem>>, vector<16x128xf32>,
    %c0_i32_8 = arith.constant 0 : i32
    %9 = arith.cmpi eq, %arg2, %c0_i32_8 : i32
    %10 = arith.extui %9 : i1 to i32
    %c0_i32_9 = arith.constant 0 : i32
    %11 = arith.cmpi ne, %10, %c0_i32_9 : i32
    scf.if %11 {
      %c0_10 = arith.constant 0 : index
      %c0_11 = arith.constant 0 : index
      %12 = vector.load %arg10[%c0_10, %c0_11] : memref<16x128xf32, #tpu.memory_space<vmem>>, vector<16x128xf32>
      %c0_12 = arith.constant 0 : index
      %c0_13 = arith.constant 0 : index
      %13 = vector.load %arg5[%c0_12, %c0_13] : memref<1x128xf32, #tpu.memory_space<vmem>>, vector<1x128xf32>
      %14 = vector.broadcast %13 : vector<1x128xf32> to vector<16x128xf32>
      %15 = arith.addf %12, %14 : vector<16x128xf32>
      %c0_14 = arith.constant 0 : index
      %c0_15 = arith.constant 0 : index
      %16 = vector.load %arg6[%c0_14, %c0_15] : memref<16x128xbf16, #tpu.memory_space<vmem>>, vector<16x128xbf16>
      %17 = arith.extf %16 : vector<16x128xbf16> to vector<16x128xf32>
      %18 = arith.addf %15, %17 : vector<16x128xf32>
      %cst_16 = arith.constant dense<0.000000e+00> : vector<16xf32>
      %19 = vector.multi_reduction <add>, %18, %cst_16 [1] : vector<16x128xf32> to vector<16xf32>
      %20 = vector.shape_cast %19 : vector<16xf32> to vector<16x1xf32>
      %cst_17 = arith.constant 1.280000e+02 : f32
      %21 = vector.broadcast %cst_17 : f32 to vector<16x1xf32>
      %22 = arith.divf %20, %21 : vector<16x1xf32>
      %23 = vector.broadcast %22 : vector<16x1xf32> to vector<16x128xf32>
      %24 = arith.subf %18, %23 : vector<16x128xf32>
      %25 = arith.mulf %24, %24 : vector<16x128xf32>
      %cst_18 = arith.constant dense<0.000000e+00> : vector<16xf32>
      %26 = vector.multi_reduction <add>, %25, %cst_18 [1] : vector<16x128xf32> to vector<16xf32>
      %27 = vector.shape_cast %26 : vector<16xf32> to vector<16x1xf32>
      %cst_19 = arith.constant 1.280000e+02 : f32
      %28 = vector.broadcast %cst_19 : f32 to vector<16x1xf32>
      %29 = arith.divf %27, %28 : vector<16x1xf32>
      %30 = vector.broadcast %22 : vector<16x1xf32> to vector<16x128xf32>
      %31 = arith.subf %18, %30 : vector<16x128xf32>
      %cst_20 = arith.constant 9.99999974E-6 : f32
      %32 = vector.broadcast %cst_20 : f32 to vector<16x1xf32>
      %33 = arith.addf %29, %32 : vector<16x1xf32>
      %34 = math.rsqrt %33 : vector<16x1xf32>
      %35 = vector.broadcast %34 : vector<16x1xf32> to vector<16x128xf32>
      %36 = arith.mulf %31, %35 : vector<16x128xf32>
      %c0_21 = arith.constant 0 : index
      %c0_22 = arith.constant 0 : index
      %37 = vector.load %arg7[%c0_21, %c0_22] : memref<1x128xf32, #tpu.memory_space<vmem>>, vector<1x128xf32>
      %38 = vector.broadcast %37 : vector<1x128xf32> to vector<16x128xf32>
      %39 = arith.mulf %36, %38 : vector<16x128xf32>
      %c0_23 = arith.constant 0 : index
      %c0_24 = arith.constant 0 : index
      %40 = vector.load %arg8[%c0_23, %c0_24] : memref<1x128xf32, #tpu.memory_space<vmem>>, vector<1x128xf32>
      %41 = vector.broadcast %40 : vector<1x128xf32> to vector<16x128xf32>
      %42 = arith.addf %39, %41 : vector<16x128xf32>
      %43 = arith.truncf %42 : vector<16x128xf32> to vector<16x128xbf16>
      %c0_25 = arith.constant 0 : index
      %c0_26 = arith.constant 0 : index
      %44 = vector.load %arg9[%c0_25, %c0_26] : memref<16x128xbf16, #tpu.memory_space<vmem>>, vector<16x128xbf16>
      tpu.vector_store %arg9[%c0_25, %c0_26], %43 {strides = array<i32>} : memref<16x128xbf16, #tpu.memory_space<vmem>>, vector<16x128xbf16>,
    } else {
    }
    return
  }
  func.func @transform_0(%arg0: i32, %arg1: i32, %arg2: i32) -> (i32, i32) {
    %c0_i32 = arith.constant 0 : i32
    return %arg0, %arg2 : i32, i32
  }
  func.func @transform_1(%arg0: i32, %arg1: i32, %arg2: i32) -> (i32, i32) {
    %c0_i32 = arith.constant 0 : i32
    return %arg2, %arg1 : i32, i32
  }
  func.func @transform_2(%arg0: i32, %arg1: i32, %arg2: i32) -> (i32, i32) {
    %c0_i32 = arith.constant 0 : i32
    %c0_i32_0 = arith.constant 0 : i32
    return %c0_i32, %arg1 : i32, i32
  }
  func.func @transform_3(%arg0: i32, %arg1: i32, %arg2: i32) -> (i32, i32) {
    %c0_i32 = arith.constant 0 : i32
    return %arg0, %arg1 : i32, i32
  }
  func.func @transform_4(%arg0: i32, %arg1: i32, %arg2: i32) -> (i32, i32) {
    %c0_i32 = arith.constant 0 : i32
    %c0_i32_0 = arith.constant 0 : i32
    return %c0_i32, %arg1 : i32, i32
  }
  func.func @transform_5(%arg0: i32, %arg1: i32, %arg2: i32) -> (i32, i32) {
    %c0_i32 = arith.constant 0 : i32
    %c0_i32_0 = arith.constant 0 : i32
    return %c0_i32, %arg1 : i32, i32
  }
  func.func @transform_6(%arg0: i32, %arg1: i32, %arg2: i32) -> (i32, i32) {
    %c0_i32 = arith.constant 0 : i32
    return %arg0, %arg1 : i32, i32
  }
}

module attributes {stable_mosaic.version = 11 : i64} {
  func.func @_fused_matmul_kernel(%arg0: i32, %arg1: i32, %arg2: i32, %arg3: memref<16x128xbf16, #tpu.memory_space<vmem>>, %arg4: memref<128x128xbf16, #tpu.memory_space<vmem>>, %arg5: memref<1x128xf32, #tpu.memory_space<vmem>>, %arg6: memref<16x128xbf16, #tpu.memory_space<vmem>>, %arg7: memref<16x128xf32, #tpu.memory_space<vmem>>) attributes {dimension_semantics = [#tpu.dimension_semantics<parallel>, #tpu.dimension_semantics<parallel>, #tpu.dimension_semantics<arbitrary>], iteration_bounds = array<i64: 1, 1, 1>, scalar_prefetch = 0 : i64, scratch_operands = 1 : i64, tpu.core_type = #tpu.core_type<tc>, window_params = [{transform_indices = @transform_0, window_bounds = array<i64: 16, 128>}, {transform_indices = @transform_1, window_bounds = array<i64: 128, 128>}, {transform_indices = @transform_2, window_bounds = array<i64: 1, 128>}, {transform_indices = @transform_3, window_bounds = array<i64: 16, 128>}]} {
    %c0_i32 = arith.constant 0 : i32
    %0 = arith.cmpi eq, %arg2, %c0_i32 : i32
    %1 = arith.extui %0 : i1 to i32
    %c0_i32_0 = arith.constant 0 : i32
    %2 = arith.cmpi ne, %1, %c0_i32_0 : i32
    scf.if %2 {
      %cst_10 = arith.constant 0.000000e+00 : f32
      %12 = vector.broadcast %cst_10 : f32 to vector<16x128xf32>
      %c0_11 = arith.constant 0 : index
      %c0_12 = arith.constant 0 : index
      %13 = vector.load %arg7[%c0_11, %c0_12] : memref<16x128xf32, #tpu.memory_space<vmem>>, vector<16x128xf32>
      tpu.vector_store %arg7[%c0_11, %c0_12], %12 {strides = array<i32>} : memref<16x128xf32, #tpu.memory_space<vmem>>, vector<16x128xf32>,
    } else {
    }
    %c0 = arith.constant 0 : index
    %c0_1 = arith.constant 0 : index
    %3 = vector.load %arg7[%c0, %c0_1] : memref<16x128xf32, #tpu.memory_space<vmem>>, vector<16x128xf32>
    %c0_2 = arith.constant 0 : index
    %c0_3 = arith.constant 0 : index
    %4 = vector.load %arg3[%c0_2, %c0_3] : memref<16x128xbf16, #tpu.memory_space<vmem>>, vector<16x128xbf16>
    %c0_4 = arith.constant 0 : index
    %c0_5 = arith.constant 0 : index
    %5 = vector.load %arg4[%c0_4, %c0_5] : memref<128x128xbf16, #tpu.memory_space<vmem>>, vector<128x128xbf16>
    %cst = arith.constant dense<0.000000e+00> : vector<16x128xf32>
    %6 = tpu.matmul %4, %5, %cst {dimension_numbers = #tpu.dot_dimension_numbers<[1], [0], [0], [1], [0, 0, 1, 1], [], []>} : vector<16x128xbf16>, vector<128x128xbf16>, vector<16x128xf32> -> vector<16x128xf32>
    %7 = arith.addf %3, %6 : vector<16x128xf32>
    %c0_6 = arith.constant 0 : index
    %c0_7 = arith.constant 0 : index
    %8 = vector.load %arg7[%c0_6, %c0_7] : memref<16x128xf32, #tpu.memory_space<vmem>>, vector<16x128xf32>
    tpu.vector_store %arg7[%c0_6, %c0_7], %7 {strides = array<i32>} : memref<16x128xf32, #tpu.memory_space<vmem>>, vector<16x128xf32>,
    %c0_i32_8 = arith.constant 0 : i32
    %9 = arith.cmpi eq, %arg2, %c0_i32_8 : i32
    %10 = arith.extui %9 : i1 to i32
    %c0_i32_9 = arith.constant 0 : i32
    %11 = arith.cmpi ne, %10, %c0_i32_9 : i32
    scf.if %11 {
      %c0_10 = arith.constant 0 : index
      %c0_11 = arith.constant 0 : index
      %12 = vector.load %arg7[%c0_10, %c0_11] : memref<16x128xf32, #tpu.memory_space<vmem>>, vector<16x128xf32>
      %c0_12 = arith.constant 0 : index
      %c0_13 = arith.constant 0 : index
      %13 = vector.load %arg5[%c0_12, %c0_13] : memref<1x128xf32, #tpu.memory_space<vmem>>, vector<1x128xf32>
      %14 = vector.broadcast %13 : vector<1x128xf32> to vector<16x128xf32>
      %15 = arith.addf %12, %14 : vector<16x128xf32>
      %16 = arith.truncf %15 : vector<16x128xf32> to vector<16x128xbf16>
      %c0_14 = arith.constant 0 : index
      %c0_15 = arith.constant 0 : index
      %17 = vector.load %arg6[%c0_14, %c0_15] : memref<16x128xbf16, #tpu.memory_space<vmem>>, vector<16x128xbf16>
      tpu.vector_store %arg6[%c0_14, %c0_15], %16 {strides = array<i32>} : memref<16x128xbf16, #tpu.memory_space<vmem>>, vector<16x128xbf16>,
    } else {
    }
    return
  }
  func.func @transform_0(%arg0: i32, %arg1: i32, %arg2: i32) -> (i32, i32) {
    %c0_i32 = arith.constant 0 : i32
    return %arg0, %arg2 : i32, i32
  }
  func.func @transform_1(%arg0: i32, %arg1: i32, %arg2: i32) -> (i32, i32) {
    %c0_i32 = arith.constant 0 : i32
    return %arg2, %arg1 : i32, i32
  }
  func.func @transform_2(%arg0: i32, %arg1: i32, %arg2: i32) -> (i32, i32) {
    %c0_i32 = arith.constant 0 : i32
    %c0_i32_0 = arith.constant 0 : i32
    return %c0_i32, %arg1 : i32, i32
  }
  func.func @transform_3(%arg0: i32, %arg1: i32, %arg2: i32) -> (i32, i32) {
    %c0_i32 = arith.constant 0 : i32
    return %arg0, %arg1 : i32, i32
  }
}

module attributes {stable_mosaic.version = 11 : i64} {
  func.func @_attn_kernel(%arg0: i32, %arg1: i32, %arg2: memref<1x8x128xbf16, #tpu.memory_space<vmem>>, %arg3: memref<1x8x128xbf16, #tpu.memory_space<vmem>>, %arg4: memref<1x8x128xbf16, #tpu.memory_space<vmem>>, %arg5: memref<1x8x128xbf16, #tpu.memory_space<vmem>>) attributes {dimension_semantics = [#tpu.dimension_semantics<parallel>, #tpu.dimension_semantics<parallel>], iteration_bounds = array<i64: 2, 1>, scalar_prefetch = 0 : i64, scratch_operands = 0 : i64, tpu.core_type = #tpu.core_type<tc>, window_params = [{transform_indices = @transform_0, window_bounds = array<i64: 1, 8, 128>}, {transform_indices = @transform_1, window_bounds = array<i64: 1, 8, 128>}, {transform_indices = @transform_2, window_bounds = array<i64: 1, 8, 128>}, {transform_indices = @transform_3, window_bounds = array<i64: 1, 8, 128>}]} {
    %c0 = arith.constant 0 : index
    %c0_0 = arith.constant 0 : index
    %c0_1 = arith.constant 0 : index
    %0 = vector.load %arg2[%c0, %c0_0, %c0_1] : memref<1x8x128xbf16, #tpu.memory_space<vmem>>, vector<1x8x128xbf16>
    %1 = vector.shape_cast %0 : vector<1x8x128xbf16> to vector<8x128xbf16>
    %c0_2 = arith.constant 0 : index
    %c0_3 = arith.constant 0 : index
    %c0_4 = arith.constant 0 : index
    %2 = vector.load %arg3[%c0_2, %c0_3, %c0_4] : memref<1x8x128xbf16, #tpu.memory_space<vmem>>, vector<1x8x128xbf16>
    %3 = vector.shape_cast %2 : vector<1x8x128xbf16> to vector<8x128xbf16>
    %c0_5 = arith.constant 0 : index
    %c0_6 = arith.constant 0 : index
    %c0_7 = arith.constant 0 : index
    %4 = vector.load %arg4[%c0_5, %c0_6, %c0_7] : memref<1x8x128xbf16, #tpu.memory_space<vmem>>, vector<1x8x128xbf16>
    %5 = vector.shape_cast %4 : vector<1x8x128xbf16> to vector<8x128xbf16>
    %6 = arith.extf %1 : vector<8x128xbf16> to vector<8x128xf32>
    %cst = arith.constant 0.176776692 : f32
    %7 = vector.broadcast %cst : f32 to vector<8x128xf32>
    %8 = arith.mulf %6, %7 : vector<8x128xf32>
    %9 = arith.truncf %8 : vector<8x128xf32> to vector<8x128xbf16>
    %c8_i32 = arith.constant 8 : i32
    %10 = arith.muli %arg1, %c8_i32 : i32
    %11 = tpu.iota {dimensions = array<i32: 0>} : vector<8x8xi32>
    %12 = vector.broadcast %10 : i32 to vector<8x8xi32>
    %13 = arith.addi %11, %12 : vector<8x8xi32>
    %14 = tpu.iota {dimensions = array<i32: 1>} : vector<8x8xi32>
    %15 = arith.cmpi sle, %14, %13 : vector<8x8xi32>
    %16 = vector.extract_strided_slice %9 {offsets = [0, 0], sizes = [8, 32], strides = [1, 1]} : vector<8x128xbf16> to vector<8x32xbf16>
    %17 = vector.extract_strided_slice %3 {offsets = [0, 0], sizes = [8, 32], strides = [1, 1]} : vector<8x128xbf16> to vector<8x32xbf16>
    %cst_8 = arith.constant dense<0.000000e+00> : vector<8x8xf32>
    %18 = tpu.matmul %16, %17, %cst_8 {dimension_numbers = #tpu.dot_dimension_numbers<[1], [1], [0], [0], [0, 0, 1, 0], [], []>} : vector<8x32xbf16>, vector<8x32xbf16>, vector<8x8xf32> -> vector<8x8xf32>
    %cst_9 = arith.constant -1.000000e+30 : f32
    %19 = vector.broadcast %cst_9 : f32 to vector<8x8xf32>
    %20 = arith.select %15, %18, %19 : vector<8x8xi1>, vector<8x8xf32>
    %cst_10 = arith.constant dense<0xFF800000> : vector<8xf32>
    %21 = vector.multi_reduction <maximumf>, %20, %cst_10 [1] : vector<8x8xf32> to vector<8xf32>
    %22 = vector.shape_cast %21 : vector<8xf32> to vector<8x1xf32>
    %23 = vector.broadcast %22 : vector<8x1xf32> to vector<8x8xf32>
    %24 = arith.subf %20, %23 : vector<8x8xf32>
    %25 = math.exp %24 : vector<8x8xf32>
    %cst_11 = arith.constant dense<0.000000e+00> : vector<8xf32>
    %26 = vector.multi_reduction <add>, %25, %cst_11 [1] : vector<8x8xf32> to vector<8xf32>
    %27 = vector.shape_cast %26 : vector<8xf32> to vector<8x1xf32>
    %28 = arith.truncf %25 : vector<8x8xf32> to vector<8x8xbf16>
    %29 = vector.extract_strided_slice %5 {offsets = [0, 0], sizes = [8, 32], strides = [1, 1]} : vector<8x128xbf16> to vector<8x32xbf16>
    %cst_12 = arith.constant dense<0.000000e+00> : vector<8x32xf32>
    %30 = tpu.matmul %28, %29, %cst_12 {dimension_numbers = #tpu.dot_dimension_numbers<[1], [0], [0], [1], [0, 0, 1, 1], [], []>} : vector<8x8xbf16>, vector<8x32xbf16>, vector<8x32xf32> -> vector<8x32xf32>
    %31 = vector.broadcast %27 : vector<8x1xf32> to vector<8x32xf32>
    %32 = arith.divf %30, %31 : vector<8x32xf32>
    %33 = arith.truncf %32 : vector<8x32xf32> to vector<8x32xbf16>
    %c0_13 = arith.constant 0 : index
    %c0_14 = arith.constant 0 : index
    %c0_15 = arith.constant 0 : index
    %34 = vector.load %arg5[%c0_13, %c0_14, %c0_15] : memref<1x8x128xbf16, #tpu.memory_space<vmem>>, vector<1x8x32xbf16>
    %35 = vector.shape_cast %34 : vector<1x8x32xbf16> to vector<8x32xbf16>
    %36 = vector.shape_cast %33 : vector<8x32xbf16> to vector<1x8x32xbf16>
    tpu.vector_store %arg5[%c0_13, %c0_14, %c0_15], %36 {strides = array<i32>} : memref<1x8x128xbf16, #tpu.memory_space<vmem>>, vector<1x8x32xbf16>,
    %37 = vector.extract_strided_slice %9 {offsets = [0, 32], sizes = [8, 32], strides = [1, 1]} : vector<8x128xbf16> to vector<8x32xbf16>
    %38 = vector.extract_strided_slice %3 {offsets = [0, 32], sizes = [8, 32], strides = [1, 1]} : vector<8x128xbf16> to vector<8x32xbf16>
    %cst_16 = arith.constant dense<0.000000e+00> : vector<8x8xf32>
    %39 = tpu.matmul %37, %38, %cst_16 {dimension_numbers = #tpu.dot_dimension_numbers<[1], [1], [0], [0], [0, 0, 1, 0], [], []>} : vector<8x32xbf16>, vector<8x32xbf16>, vector<8x8xf32> -> vector<8x8xf32>
    %cst_17 = arith.constant -1.000000e+30 : f32
    %40 = vector.broadcast %cst_17 : f32 to vector<8x8xf32>
    %41 = arith.select %15, %39, %40 : vector<8x8xi1>, vector<8x8xf32>
    %cst_18 = arith.constant dense<0xFF800000> : vector<8xf32>
    %42 = vector.multi_reduction <maximumf>, %41, %cst_18 [1] : vector<8x8xf32> to vector<8xf32>
    %43 = vector.shape_cast %42 : vector<8xf32> to vector<8x1xf32>
    %44 = vector.broadcast %43 : vector<8x1xf32> to vector<8x8xf32>
    %45 = arith.subf %41, %44 : vector<8x8xf32>
    %46 = math.exp %45 : vector<8x8xf32>
    %cst_19 = arith.constant dense<0.000000e+00> : vector<8xf32>
    %47 = vector.multi_reduction <add>, %46, %cst_19 [1] : vector<8x8xf32> to vector<8xf32>
    %48 = vector.shape_cast %47 : vector<8xf32> to vector<8x1xf32>
    %49 = arith.truncf %46 : vector<8x8xf32> to vector<8x8xbf16>
    %50 = vector.extract_strided_slice %5 {offsets = [0, 32], sizes = [8, 32], strides = [1, 1]} : vector<8x128xbf16> to vector<8x32xbf16>
    %cst_20 = arith.constant dense<0.000000e+00> : vector<8x32xf32>
    %51 = tpu.matmul %49, %50, %cst_20 {dimension_numbers = #tpu.dot_dimension_numbers<[1], [0], [0], [1], [0, 0, 1, 1], [], []>} : vector<8x8xbf16>, vector<8x32xbf16>, vector<8x32xf32> -> vector<8x32xf32>
    %52 = vector.broadcast %48 : vector<8x1xf32> to vector<8x32xf32>
    %53 = arith.divf %51, %52 : vector<8x32xf32>
    %54 = arith.truncf %53 : vector<8x32xf32> to vector<8x32xbf16>
    %c0_21 = arith.constant 0 : index
    %c0_22 = arith.constant 0 : index
    %c32 = arith.constant 32 : index
    %55 = vector.load %arg5[%c0_21, %c0_22, %c32] : memref<1x8x128xbf16, #tpu.memory_space<vmem>>, vector<1x8x32xbf16>
    %56 = vector.shape_cast %55 : vector<1x8x32xbf16> to vector<8x32xbf16>
    %57 = vector.shape_cast %54 : vector<8x32xbf16> to vector<1x8x32xbf16>
    tpu.vector_store %arg5[%c0_21, %c0_22, %c32], %57 {strides = array<i32>} : memref<1x8x128xbf16, #tpu.memory_space<vmem>>, vector<1x8x32xbf16>,
    %58 = vector.extract_strided_slice %9 {offsets = [0, 64], sizes = [8, 32], strides = [1, 1]} : vector<8x128xbf16> to vector<8x32xbf16>
    %59 = vector.extract_strided_slice %3 {offsets = [0, 64], sizes = [8, 32], strides = [1, 1]} : vector<8x128xbf16> to vector<8x32xbf16>
    %cst_23 = arith.constant dense<0.000000e+00> : vector<8x8xf32>
    %60 = tpu.matmul %58, %59, %cst_23 {dimension_numbers = #tpu.dot_dimension_numbers<[1], [1], [0], [0], [0, 0, 1, 0], [], []>} : vector<8x32xbf16>, vector<8x32xbf16>, vector<8x8xf32> -> vector<8x8xf32>
    %cst_24 = arith.constant -1.000000e+30 : f32
    %61 = vector.broadcast %cst_24 : f32 to vector<8x8xf32>
    %62 = arith.select %15, %60, %61 : vector<8x8xi1>, vector<8x8xf32>
    %cst_25 = arith.constant dense<0xFF800000> : vector<8xf32>
    %63 = vector.multi_reduction <maximumf>, %62, %cst_25 [1] : vector<8x8xf32> to vector<8xf32>
    %64 = vector.shape_cast %63 : vector<8xf32> to vector<8x1xf32>
    %65 = vector.broadcast %64 : vector<8x1xf32> to vector<8x8xf32>
    %66 = arith.subf %62, %65 : vector<8x8xf32>
    %67 = math.exp %66 : vector<8x8xf32>
    %cst_26 = arith.constant dense<0.000000e+00> : vector<8xf32>
    %68 = vector.multi_reduction <add>, %67, %cst_26 [1] : vector<8x8xf32> to vector<8xf32>
    %69 = vector.shape_cast %68 : vector<8xf32> to vector<8x1xf32>
    %70 = arith.truncf %67 : vector<8x8xf32> to vector<8x8xbf16>
    %71 = vector.extract_strided_slice %5 {offsets = [0, 64], sizes = [8, 32], strides = [1, 1]} : vector<8x128xbf16> to vector<8x32xbf16>
    %cst_27 = arith.constant dense<0.000000e+00> : vector<8x32xf32>
    %72 = tpu.matmul %70, %71, %cst_27 {dimension_numbers = #tpu.dot_dimension_numbers<[1], [0], [0], [1], [0, 0, 1, 1], [], []>} : vector<8x8xbf16>, vector<8x32xbf16>, vector<8x32xf32> -> vector<8x32xf32>
    %73 = vector.broadcast %69 : vector<8x1xf32> to vector<8x32xf32>
    %74 = arith.divf %72, %73 : vector<8x32xf32>
    %75 = arith.truncf %74 : vector<8x32xf32> to vector<8x32xbf16>
    %c0_28 = arith.constant 0 : index
    %c0_29 = arith.constant 0 : index
    %c64 = arith.constant 64 : index
    %76 = vector.load %arg5[%c0_28, %c0_29, %c64] : memref<1x8x128xbf16, #tpu.memory_space<vmem>>, vector<1x8x32xbf16>
    %77 = vector.shape_cast %76 : vector<1x8x32xbf16> to vector<8x32xbf16>
    %78 = vector.shape_cast %75 : vector<8x32xbf16> to vector<1x8x32xbf16>
    tpu.vector_store %arg5[%c0_28, %c0_29, %c64], %78 {strides = array<i32>} : memref<1x8x128xbf16, #tpu.memory_space<vmem>>, vector<1x8x32xbf16>,
    %79 = vector.extract_strided_slice %9 {offsets = [0, 96], sizes = [8, 32], strides = [1, 1]} : vector<8x128xbf16> to vector<8x32xbf16>
    %80 = vector.extract_strided_slice %3 {offsets = [0, 96], sizes = [8, 32], strides = [1, 1]} : vector<8x128xbf16> to vector<8x32xbf16>
    %cst_30 = arith.constant dense<0.000000e+00> : vector<8x8xf32>
    %81 = tpu.matmul %79, %80, %cst_30 {dimension_numbers = #tpu.dot_dimension_numbers<[1], [1], [0], [0], [0, 0, 1, 0], [], []>} : vector<8x32xbf16>, vector<8x32xbf16>, vector<8x8xf32> -> vector<8x8xf32>
    %cst_31 = arith.constant -1.000000e+30 : f32
    %82 = vector.broadcast %cst_31 : f32 to vector<8x8xf32>
    %83 = arith.select %15, %81, %82 : vector<8x8xi1>, vector<8x8xf32>
    %cst_32 = arith.constant dense<0xFF800000> : vector<8xf32>
    %84 = vector.multi_reduction <maximumf>, %83, %cst_32 [1] : vector<8x8xf32> to vector<8xf32>
    %85 = vector.shape_cast %84 : vector<8xf32> to vector<8x1xf32>
    %86 = vector.broadcast %85 : vector<8x1xf32> to vector<8x8xf32>
    %87 = arith.subf %83, %86 : vector<8x8xf32>
    %88 = math.exp %87 : vector<8x8xf32>
    %cst_33 = arith.constant dense<0.000000e+00> : vector<8xf32>
    %89 = vector.multi_reduction <add>, %88, %cst_33 [1] : vector<8x8xf32> to vector<8xf32>
    %90 = vector.shape_cast %89 : vector<8xf32> to vector<8x1xf32>
    %91 = arith.truncf %88 : vector<8x8xf32> to vector<8x8xbf16>
    %92 = vector.extract_strided_slice %5 {offsets = [0, 96], sizes = [8, 32], strides = [1, 1]} : vector<8x128xbf16> to vector<8x32xbf16>
    %cst_34 = arith.constant dense<0.000000e+00> : vector<8x32xf32>
    %93 = tpu.matmul %91, %92, %cst_34 {dimension_numbers = #tpu.dot_dimension_numbers<[1], [0], [0], [1], [0, 0, 1, 1], [], []>} : vector<8x8xbf16>, vector<8x32xbf16>, vector<8x32xf32> -> vector<8x32xf32>
    %94 = vector.broadcast %90 : vector<8x1xf32> to vector<8x32xf32>
    %95 = arith.divf %93, %94 : vector<8x32xf32>
    %96 = arith.truncf %95 : vector<8x32xf32> to vector<8x32xbf16>
    %c0_35 = arith.constant 0 : index
    %c0_36 = arith.constant 0 : index
    %c96 = arith.constant 96 : index
    %97 = vector.load %arg5[%c0_35, %c0_36, %c96] : memref<1x8x128xbf16, #tpu.memory_space<vmem>>, vector<1x8x32xbf16>
    %98 = vector.shape_cast %97 : vector<1x8x32xbf16> to vector<8x32xbf16>
    %99 = vector.shape_cast %96 : vector<8x32xbf16> to vector<1x8x32xbf16>
    tpu.vector_store %arg5[%c0_35, %c0_36, %c96], %99 {strides = array<i32>} : memref<1x8x128xbf16, #tpu.memory_space<vmem>>, vector<1x8x32xbf16>,
    return
  }
  func.func @transform_0(%arg0: i32, %arg1: i32) -> (i32, i32, i32) {
    %c0_i32 = arith.constant 0 : i32
    %c0_i32_0 = arith.constant 0 : i32
    return %arg0, %arg1, %c0_i32 : i32, i32, i32
  }
  func.func @transform_1(%arg0: i32, %arg1: i32) -> (i32, i32, i32) {
    %c0_i32 = arith.constant 0 : i32
    %c1_i32 = arith.constant 1 : i32
    %c0_i32_0 = arith.constant 0 : i32
    return %arg0, %c0_i32, %c1_i32 : i32, i32, i32
  }
  func.func @transform_2(%arg0: i32, %arg1: i32) -> (i32, i32, i32) {
    %c0_i32 = arith.constant 0 : i32
    %c2_i32 = arith.constant 2 : i32
    %c0_i32_0 = arith.constant 0 : i32
    return %arg0, %c0_i32, %c2_i32 : i32, i32, i32
  }
  func.func @transform_3(%arg0: i32, %arg1: i32) -> (i32, i32, i32) {
    %c0_i32 = arith.constant 0 : i32
    %c0_i32_0 = arith.constant 0 : i32
    return %arg0, %arg1, %c0_i32 : i32, i32, i32
  }
}

module attributes {stable_mosaic.version = 11 : i64} {
  func.func @_fused_matmul_kernel(%arg0: i32, %arg1: i32, %arg2: i32, %arg3: memref<20x128xbf16, #tpu.memory_space<vmem>>, %arg4: memref<128x256xbf16, #tpu.memory_space<vmem>>, %arg5: memref<1x256xf32, #tpu.memory_space<vmem>>, %arg6: memref<20x256xbf16, #tpu.memory_space<vmem>>, %arg7: memref<20x256xf32, #tpu.memory_space<vmem>>) attributes {dimension_semantics = [#tpu.dimension_semantics<parallel>, #tpu.dimension_semantics<parallel>, #tpu.dimension_semantics<arbitrary>], iteration_bounds = array<i64: 1, 1, 1>, scalar_prefetch = 0 : i64, scratch_operands = 1 : i64, tpu.core_type = #tpu.core_type<tc>, window_params = [{transform_indices = @transform_0, window_bounds = array<i64: 20, 128>}, {transform_indices = @transform_1, window_bounds = array<i64: 128, 256>}, {transform_indices = @transform_2, window_bounds = array<i64: 1, 256>}, {transform_indices = @transform_3, window_bounds = array<i64: 20, 256>}]} {
    %c0_i32 = arith.constant 0 : i32
    %0 = arith.cmpi eq, %arg2, %c0_i32 : i32
    %1 = arith.extui %0 : i1 to i32
    %c0_i32_0 = arith.constant 0 : i32
    %2 = arith.cmpi ne, %1, %c0_i32_0 : i32
    scf.if %2 {
      %cst_10 = arith.constant 0.000000e+00 : f32
      %12 = vector.broadcast %cst_10 : f32 to vector<20x256xf32>
      %c0_11 = arith.constant 0 : index
      %c0_12 = arith.constant 0 : index
      %13 = vector.load %arg7[%c0_11, %c0_12] : memref<20x256xf32, #tpu.memory_space<vmem>>, vector<20x256xf32>
      tpu.vector_store %arg7[%c0_11, %c0_12], %12 {strides = array<i32>} : memref<20x256xf32, #tpu.memory_space<vmem>>, vector<20x256xf32>,
    } else {
    }
    %c0 = arith.constant 0 : index
    %c0_1 = arith.constant 0 : index
    %3 = vector.load %arg7[%c0, %c0_1] : memref<20x256xf32, #tpu.memory_space<vmem>>, vector<20x256xf32>
    %c0_2 = arith.constant 0 : index
    %c0_3 = arith.constant 0 : index
    %4 = vector.load %arg3[%c0_2, %c0_3] : memref<20x128xbf16, #tpu.memory_space<vmem>>, vector<20x128xbf16>
    %c0_4 = arith.constant 0 : index
    %c0_5 = arith.constant 0 : index
    %5 = vector.load %arg4[%c0_4, %c0_5] : memref<128x256xbf16, #tpu.memory_space<vmem>>, vector<128x256xbf16>
    %cst = arith.constant dense<0.000000e+00> : vector<20x256xf32>
    %6 = tpu.matmul %4, %5, %cst {dimension_numbers = #tpu.dot_dimension_numbers<[1], [0], [0], [1], [0, 0, 1, 1], [], []>} : vector<20x128xbf16>, vector<128x256xbf16>, vector<20x256xf32> -> vector<20x256xf32>
    %7 = arith.addf %3, %6 : vector<20x256xf32>
    %c0_6 = arith.constant 0 : index
    %c0_7 = arith.constant 0 : index
    %8 = vector.load %arg7[%c0_6, %c0_7] : memref<20x256xf32, #tpu.memory_space<vmem>>, vector<20x256xf32>
    tpu.vector_store %arg7[%c0_6, %c0_7], %7 {strides = array<i32>} : memref<20x256xf32, #tpu.memory_space<vmem>>, vector<20x256xf32>,
    %c0_i32_8 = arith.constant 0 : i32
    %9 = arith.cmpi eq, %arg2, %c0_i32_8 : i32
    %10 = arith.extui %9 : i1 to i32
    %c0_i32_9 = arith.constant 0 : i32
    %11 = arith.cmpi ne, %10, %c0_i32_9 : i32
    scf.if %11 {
      %c0_10 = arith.constant 0 : index
      %c0_11 = arith.constant 0 : index
      %12 = vector.load %arg7[%c0_10, %c0_11] : memref<20x256xf32, #tpu.memory_space<vmem>>, vector<20x256xf32>
      %c0_12 = arith.constant 0 : index
      %c0_13 = arith.constant 0 : index
      %13 = vector.load %arg5[%c0_12, %c0_13] : memref<1x256xf32, #tpu.memory_space<vmem>>, vector<1x256xf32>
      %14 = vector.broadcast %13 : vector<1x256xf32> to vector<20x256xf32>
      %15 = arith.addf %12, %14 : vector<20x256xf32>
      %16 = arith.truncf %15 : vector<20x256xf32> to vector<20x256xbf16>
      %c0_14 = arith.constant 0 : index
      %c0_15 = arith.constant 0 : index
      %17 = vector.load %arg6[%c0_14, %c0_15] : memref<20x256xbf16, #tpu.memory_space<vmem>>, vector<20x256xbf16>
      tpu.vector_store %arg6[%c0_14, %c0_15], %16 {strides = array<i32>} : memref<20x256xbf16, #tpu.memory_space<vmem>>, vector<20x256xbf16>,
    } else {
    }
    return
  }
  func.func @transform_0(%arg0: i32, %arg1: i32, %arg2: i32) -> (i32, i32) {
    %c0_i32 = arith.constant 0 : i32
    return %arg0, %arg2 : i32, i32
  }
  func.func @transform_1(%arg0: i32, %arg1: i32, %arg2: i32) -> (i32, i32) {
    %c0_i32 = arith.constant 0 : i32
    return %arg2, %arg1 : i32, i32
  }
  func.func @transform_2(%arg0: i32, %arg1: i32, %arg2: i32) -> (i32, i32) {
    %c0_i32 = arith.constant 0 : i32
    %c0_i32_0 = arith.constant 0 : i32
    return %c0_i32, %arg1 : i32, i32
  }
  func.func @transform_3(%arg0: i32, %arg1: i32, %arg2: i32) -> (i32, i32) {
    %c0_i32 = arith.constant 0 : i32
    return %arg0, %arg1 : i32, i32
  }
}

module attributes {stable_mosaic.version = 11 : i64} {
  func.func @_attn_kernel(%arg0: i32, %arg1: i32, %arg2: memref<1x8x128xbf16, #tpu.memory_space<vmem>>, %arg3: memref<1x10x128xbf16, #tpu.memory_space<vmem>>, %arg4: memref<1x10x128xbf16, #tpu.memory_space<vmem>>, %arg5: memref<1x8x128xbf16, #tpu.memory_space<vmem>>) attributes {dimension_semantics = [#tpu.dimension_semantics<parallel>, #tpu.dimension_semantics<parallel>], iteration_bounds = array<i64: 2, 1>, scalar_prefetch = 0 : i64, scratch_operands = 0 : i64, tpu.core_type = #tpu.core_type<tc>, window_params = [{transform_indices = @transform_0, window_bounds = array<i64: 1, 8, 128>}, {transform_indices = @transform_1, window_bounds = array<i64: 1, 10, 128>}, {transform_indices = @transform_2, window_bounds = array<i64: 1, 10, 128>}, {transform_indices = @transform_3, window_bounds = array<i64: 1, 8, 128>}]} {
    %c0 = arith.constant 0 : index
    %c0_0 = arith.constant 0 : index
    %c0_1 = arith.constant 0 : index
    %0 = vector.load %arg2[%c0, %c0_0, %c0_1] : memref<1x8x128xbf16, #tpu.memory_space<vmem>>, vector<1x8x128xbf16>
    %1 = vector.shape_cast %0 : vector<1x8x128xbf16> to vector<8x128xbf16>
    %c0_2 = arith.constant 0 : index
    %c0_3 = arith.constant 0 : index
    %c0_4 = arith.constant 0 : index
    %2 = vector.load %arg3[%c0_2, %c0_3, %c0_4] : memref<1x10x128xbf16, #tpu.memory_space<vmem>>, vector<1x10x128xbf16>
    %3 = vector.shape_cast %2 : vector<1x10x128xbf16> to vector<10x128xbf16>
    %c0_5 = arith.constant 0 : index
    %c0_6 = arith.constant 0 : index
    %c0_7 = arith.constant 0 : index
    %4 = vector.load %arg4[%c0_5, %c0_6, %c0_7] : memref<1x10x128xbf16, #tpu.memory_space<vmem>>, vector<1x10x128xbf16>
    %5 = vector.shape_cast %4 : vector<1x10x128xbf16> to vector<10x128xbf16>
    %6 = arith.extf %1 : vector<8x128xbf16> to vector<8x128xf32>
    %cst = arith.constant 0.176776692 : f32
    %7 = vector.broadcast %cst : f32 to vector<8x128xf32>
    %8 = arith.mulf %6, %7 : vector<8x128xf32>
    %9 = arith.truncf %8 : vector<8x128xf32> to vector<8x128xbf16>
    %10 = vector.extract_strided_slice %9 {offsets = [0, 0], sizes = [8, 32], strides = [1, 1]} : vector<8x128xbf16> to vector<8x32xbf16>
    %11 = vector.extract_strided_slice %3 {offsets = [0, 0], sizes = [10, 32], strides = [1, 1]} : vector<10x128xbf16> to vector<10x32xbf16>
    %cst_8 = arith.constant dense<0.000000e+00> : vector<8x10xf32>
    %12 = tpu.matmul %10, %11, %cst_8 {dimension_numbers = #tpu.dot_dimension_numbers<[1], [1], [0], [0], [0, 0, 1, 0], [], []>} : vector<8x32xbf16>, vector<10x32xbf16>, vector<8x10xf32> -> vector<8x10xf32>
    %cst_9 = arith.constant dense<0xFF800000> : vector<8xf32>
    %13 = vector.multi_reduction <maximumf>, %12, %cst_9 [1] : vector<8x10xf32> to vector<8xf32>
    %14 = vector.shape_cast %13 : vector<8xf32> to vector<8x1xf32>
    %15 = vector.broadcast %14 : vector<8x1xf32> to vector<8x10xf32>
    %16 = arith.subf %12, %15 : vector<8x10xf32>
    %17 = math.exp %16 : vector<8x10xf32>
    %cst_10 = arith.constant dense<0.000000e+00> : vector<8xf32>
    %18 = vector.multi_reduction <add>, %17, %cst_10 [1] : vector<8x10xf32> to vector<8xf32>
    %19 = vector.shape_cast %18 : vector<8xf32> to vector<8x1xf32>
    %20 = arith.truncf %17 : vector<8x10xf32> to vector<8x10xbf16>
    %21 = vector.extract_strided_slice %5 {offsets = [0, 0], sizes = [10, 32], strides = [1, 1]} : vector<10x128xbf16> to vector<10x32xbf16>
    %cst_11 = arith.constant dense<0.000000e+00> : vector<8x32xf32>
    %22 = tpu.matmul %20, %21, %cst_11 {dimension_numbers = #tpu.dot_dimension_numbers<[1], [0], [0], [1], [0, 0, 1, 1], [], []>} : vector<8x10xbf16>, vector<10x32xbf16>, vector<8x32xf32> -> vector<8x32xf32>
    %23 = vector.broadcast %19 : vector<8x1xf32> to vector<8x32xf32>
    %24 = arith.divf %22, %23 : vector<8x32xf32>
    %25 = arith.truncf %24 : vector<8x32xf32> to vector<8x32xbf16>
    %c0_12 = arith.constant 0 : index
    %c0_13 = arith.constant 0 : index
    %c0_14 = arith.constant 0 : index
    %26 = vector.load %arg5[%c0_12, %c0_13, %c0_14] : memref<1x8x128xbf16, #tpu.memory_space<vmem>>, vector<1x8x32xbf16>
    %27 = vector.shape_cast %26 : vector<1x8x32xbf16> to vector<8x32xbf16>
    %28 = vector.shape_cast %25 : vector<8x32xbf16> to vector<1x8x32xbf16>
    tpu.vector_store %arg5[%c0_12, %c0_13, %c0_14], %28 {strides = array<i32>} : memref<1x8x128xbf16, #tpu.memory_space<vmem>>, vector<1x8x32xbf16>,
    %29 = vector.extract_strided_slice %9 {offsets = [0, 32], sizes = [8, 32], strides = [1, 1]} : vector<8x128xbf16> to vector<8x32xbf16>
    %30 = vector.extract_strided_slice %3 {offsets = [0, 32], sizes = [10, 32], strides = [1, 1]} : vector<10x128xbf16> to vector<10x32xbf16>
    %cst_15 = arith.constant dense<0.000000e+00> : vector<8x10xf32>
    %31 = tpu.matmul %29, %30, %cst_15 {dimension_numbers = #tpu.dot_dimension_numbers<[1], [1], [0], [0], [0, 0, 1, 0], [], []>} : vector<8x32xbf16>, vector<10x32xbf16>, vector<8x10xf32> -> vector<8x10xf32>
    %cst_16 = arith.constant dense<0xFF800000> : vector<8xf32>
    %32 = vector.multi_reduction <maximumf>, %31, %cst_16 [1] : vector<8x10xf32> to vector<8xf32>
    %33 = vector.shape_cast %32 : vector<8xf32> to vector<8x1xf32>
    %34 = vector.broadcast %33 : vector<8x1xf32> to vector<8x10xf32>
    %35 = arith.subf %31, %34 : vector<8x10xf32>
    %36 = math.exp %35 : vector<8x10xf32>
    %cst_17 = arith.constant dense<0.000000e+00> : vector<8xf32>
    %37 = vector.multi_reduction <add>, %36, %cst_17 [1] : vector<8x10xf32> to vector<8xf32>
    %38 = vector.shape_cast %37 : vector<8xf32> to vector<8x1xf32>
    %39 = arith.truncf %36 : vector<8x10xf32> to vector<8x10xbf16>
    %40 = vector.extract_strided_slice %5 {offsets = [0, 32], sizes = [10, 32], strides = [1, 1]} : vector<10x128xbf16> to vector<10x32xbf16>
    %cst_18 = arith.constant dense<0.000000e+00> : vector<8x32xf32>
    %41 = tpu.matmul %39, %40, %cst_18 {dimension_numbers = #tpu.dot_dimension_numbers<[1], [0], [0], [1], [0, 0, 1, 1], [], []>} : vector<8x10xbf16>, vector<10x32xbf16>, vector<8x32xf32> -> vector<8x32xf32>
    %42 = vector.broadcast %38 : vector<8x1xf32> to vector<8x32xf32>
    %43 = arith.divf %41, %42 : vector<8x32xf32>
    %44 = arith.truncf %43 : vector<8x32xf32> to vector<8x32xbf16>
    %c0_19 = arith.constant 0 : index
    %c0_20 = arith.constant 0 : index
    %c32 = arith.constant 32 : index
    %45 = vector.load %arg5[%c0_19, %c0_20, %c32] : memref<1x8x128xbf16, #tpu.memory_space<vmem>>, vector<1x8x32xbf16>
    %46 = vector.shape_cast %45 : vector<1x8x32xbf16> to vector<8x32xbf16>
    %47 = vector.shape_cast %44 : vector<8x32xbf16> to vector<1x8x32xbf16>
    tpu.vector_store %arg5[%c0_19, %c0_20, %c32], %47 {strides = array<i32>} : memref<1x8x128xbf16, #tpu.memory_space<vmem>>, vector<1x8x32xbf16>,
    %48 = vector.extract_strided_slice %9 {offsets = [0, 64], sizes = [8, 32], strides = [1, 1]} : vector<8x128xbf16> to vector<8x32xbf16>
    %49 = vector.extract_strided_slice %3 {offsets = [0, 64], sizes = [10, 32], strides = [1, 1]} : vector<10x128xbf16> to vector<10x32xbf16>
    %cst_21 = arith.constant dense<0.000000e+00> : vector<8x10xf32>
    %50 = tpu.matmul %48, %49, %cst_21 {dimension_numbers = #tpu.dot_dimension_numbers<[1], [1], [0], [0], [0, 0, 1, 0], [], []>} : vector<8x32xbf16>, vector<10x32xbf16>, vector<8x10xf32> -> vector<8x10xf32>
    %cst_22 = arith.constant dense<0xFF800000> : vector<8xf32>
    %51 = vector.multi_reduction <maximumf>, %50, %cst_22 [1] : vector<8x10xf32> to vector<8xf32>
    %52 = vector.shape_cast %51 : vector<8xf32> to vector<8x1xf32>
    %53 = vector.broadcast %52 : vector<8x1xf32> to vector<8x10xf32>
    %54 = arith.subf %50, %53 : vector<8x10xf32>
    %55 = math.exp %54 : vector<8x10xf32>
    %cst_23 = arith.constant dense<0.000000e+00> : vector<8xf32>
    %56 = vector.multi_reduction <add>, %55, %cst_23 [1] : vector<8x10xf32> to vector<8xf32>
    %57 = vector.shape_cast %56 : vector<8xf32> to vector<8x1xf32>
    %58 = arith.truncf %55 : vector<8x10xf32> to vector<8x10xbf16>
    %59 = vector.extract_strided_slice %5 {offsets = [0, 64], sizes = [10, 32], strides = [1, 1]} : vector<10x128xbf16> to vector<10x32xbf16>
    %cst_24 = arith.constant dense<0.000000e+00> : vector<8x32xf32>
    %60 = tpu.matmul %58, %59, %cst_24 {dimension_numbers = #tpu.dot_dimension_numbers<[1], [0], [0], [1], [0, 0, 1, 1], [], []>} : vector<8x10xbf16>, vector<10x32xbf16>, vector<8x32xf32> -> vector<8x32xf32>
    %61 = vector.broadcast %57 : vector<8x1xf32> to vector<8x32xf32>
    %62 = arith.divf %60, %61 : vector<8x32xf32>
    %63 = arith.truncf %62 : vector<8x32xf32> to vector<8x32xbf16>
    %c0_25 = arith.constant 0 : index
    %c0_26 = arith.constant 0 : index
    %c64 = arith.constant 64 : index
    %64 = vector.load %arg5[%c0_25, %c0_26, %c64] : memref<1x8x128xbf16, #tpu.memory_space<vmem>>, vector<1x8x32xbf16>
    %65 = vector.shape_cast %64 : vector<1x8x32xbf16> to vector<8x32xbf16>
    %66 = vector.shape_cast %63 : vector<8x32xbf16> to vector<1x8x32xbf16>
    tpu.vector_store %arg5[%c0_25, %c0_26, %c64], %66 {strides = array<i32>} : memref<1x8x128xbf16, #tpu.memory_space<vmem>>, vector<1x8x32xbf16>,
    %67 = vector.extract_strided_slice %9 {offsets = [0, 96], sizes = [8, 32], strides = [1, 1]} : vector<8x128xbf16> to vector<8x32xbf16>
    %68 = vector.extract_strided_slice %3 {offsets = [0, 96], sizes = [10, 32], strides = [1, 1]} : vector<10x128xbf16> to vector<10x32xbf16>
    %cst_27 = arith.constant dense<0.000000e+00> : vector<8x10xf32>
    %69 = tpu.matmul %67, %68, %cst_27 {dimension_numbers = #tpu.dot_dimension_numbers<[1], [1], [0], [0], [0, 0, 1, 0], [], []>} : vector<8x32xbf16>, vector<10x32xbf16>, vector<8x10xf32> -> vector<8x10xf32>
    %cst_28 = arith.constant dense<0xFF800000> : vector<8xf32>
    %70 = vector.multi_reduction <maximumf>, %69, %cst_28 [1] : vector<8x10xf32> to vector<8xf32>
    %71 = vector.shape_cast %70 : vector<8xf32> to vector<8x1xf32>
    %72 = vector.broadcast %71 : vector<8x1xf32> to vector<8x10xf32>
    %73 = arith.subf %69, %72 : vector<8x10xf32>
    %74 = math.exp %73 : vector<8x10xf32>
    %cst_29 = arith.constant dense<0.000000e+00> : vector<8xf32>
    %75 = vector.multi_reduction <add>, %74, %cst_29 [1] : vector<8x10xf32> to vector<8xf32>
    %76 = vector.shape_cast %75 : vector<8xf32> to vector<8x1xf32>
    %77 = arith.truncf %74 : vector<8x10xf32> to vector<8x10xbf16>
    %78 = vector.extract_strided_slice %5 {offsets = [0, 96], sizes = [10, 32], strides = [1, 1]} : vector<10x128xbf16> to vector<10x32xbf16>
    %cst_30 = arith.constant dense<0.000000e+00> : vector<8x32xf32>
    %79 = tpu.matmul %77, %78, %cst_30 {dimension_numbers = #tpu.dot_dimension_numbers<[1], [0], [0], [1], [0, 0, 1, 1], [], []>} : vector<8x10xbf16>, vector<10x32xbf16>, vector<8x32xf32> -> vector<8x32xf32>
    %80 = vector.broadcast %76 : vector<8x1xf32> to vector<8x32xf32>
    %81 = arith.divf %79, %80 : vector<8x32xf32>
    %82 = arith.truncf %81 : vector<8x32xf32> to vector<8x32xbf16>
    %c0_31 = arith.constant 0 : index
    %c0_32 = arith.constant 0 : index
    %c96 = arith.constant 96 : index
    %83 = vector.load %arg5[%c0_31, %c0_32, %c96] : memref<1x8x128xbf16, #tpu.memory_space<vmem>>, vector<1x8x32xbf16>
    %84 = vector.shape_cast %83 : vector<1x8x32xbf16> to vector<8x32xbf16>
    %85 = vector.shape_cast %82 : vector<8x32xbf16> to vector<1x8x32xbf16>
    tpu.vector_store %arg5[%c0_31, %c0_32, %c96], %85 {strides = array<i32>} : memref<1x8x128xbf16, #tpu.memory_space<vmem>>, vector<1x8x32xbf16>,
    return
  }
  func.func @transform_0(%arg0: i32, %arg1: i32) -> (i32, i32, i32) {
    %c0_i32 = arith.constant 0 : i32
    %c0_i32_0 = arith.constant 0 : i32
    return %arg0, %arg1, %c0_i32 : i32, i32, i32
  }
  func.func @transform_1(%arg0: i32, %arg1: i32) -> (i32, i32, i32) {
    %c0_i32 = arith.constant 0 : i32
    %c0_i32_0 = arith.constant 0 : i32
    %c0_i32_1 = arith.constant 0 : i32
    return %arg0, %c0_i32, %c0_i32_0 : i32, i32, i32
  }
  func.func @transform_2(%arg0: i32, %arg1: i32) -> (i32, i32, i32) {
    %c0_i32 = arith.constant 0 : i32
    %c1_i32 = arith.constant 1 : i32
    %c0_i32_0 = arith.constant 0 : i32
    return %arg0, %c0_i32, %c1_i32 : i32, i32, i32
  }
  func.func @transform_3(%arg0: i32, %arg1: i32) -> (i32, i32, i32) {
    %c0_i32 = arith.constant 0 : i32
    %c0_i32_0 = arith.constant 0 : i32
    return %arg0, %arg1, %c0_i32 : i32, i32, i32
  }
}

module attributes {stable_mosaic.version = 11 : i64} {
  func.func @_fused_matmul_kernel(%arg0: i32, %arg1: i32, %arg2: i32, %arg3: memref<16x256xbf16, #tpu.memory_space<vmem>>, %arg4: memref<256x128xbf16, #tpu.memory_space<vmem>>, %arg5: memref<1x128xf32, #tpu.memory_space<vmem>>, %arg6: memref<16x128xbf16, #tpu.memory_space<vmem>>, %arg7: memref<1x128xf32, #tpu.memory_space<vmem>>, %arg8: memref<1x128xf32, #tpu.memory_space<vmem>>, %arg9: memref<16x128xbf16, #tpu.memory_space<vmem>>, %arg10: memref<16x128xf32, #tpu.memory_space<vmem>>) attributes {dimension_semantics = [#tpu.dimension_semantics<parallel>, #tpu.dimension_semantics<parallel>, #tpu.dimension_semantics<arbitrary>], iteration_bounds = array<i64: 1, 1, 1>, scalar_prefetch = 0 : i64, scratch_operands = 1 : i64, tpu.core_type = #tpu.core_type<tc>, window_params = [{transform_indices = @transform_0, window_bounds = array<i64: 16, 256>}, {transform_indices = @transform_1, window_bounds = array<i64: 256, 128>}, {transform_indices = @transform_2, window_bounds = array<i64: 1, 128>}, {transform_indices = @transform_3, window_bounds = array<i64: 16, 128>}, {transform_indices = @transform_4, window_bounds = array<i64: 1, 128>}, {transform_indices = @transform_5, window_bounds = array<i64: 1, 128>}, {transform_indices = @transform_6, window_bounds = array<i64: 16, 128>}]} {
    %c0_i32 = arith.constant 0 : i32
    %0 = arith.cmpi eq, %arg2, %c0_i32 : i32
    %1 = arith.extui %0 : i1 to i32
    %c0_i32_0 = arith.constant 0 : i32
    %2 = arith.cmpi ne, %1, %c0_i32_0 : i32
    scf.if %2 {
      %cst_10 = arith.constant 0.000000e+00 : f32
      %12 = vector.broadcast %cst_10 : f32 to vector<16x128xf32>
      %c0_11 = arith.constant 0 : index
      %c0_12 = arith.constant 0 : index
      %13 = vector.load %arg10[%c0_11, %c0_12] : memref<16x128xf32, #tpu.memory_space<vmem>>, vector<16x128xf32>
      tpu.vector_store %arg10[%c0_11, %c0_12], %12 {strides = array<i32>} : memref<16x128xf32, #tpu.memory_space<vmem>>, vector<16x128xf32>,
    } else {
    }
    %c0 = arith.constant 0 : index
    %c0_1 = arith.constant 0 : index
    %3 = vector.load %arg10[%c0, %c0_1] : memref<16x128xf32, #tpu.memory_space<vmem>>, vector<16x128xf32>
    %c0_2 = arith.constant 0 : index
    %c0_3 = arith.constant 0 : index
    %4 = vector.load %arg3[%c0_2, %c0_3] : memref<16x256xbf16, #tpu.memory_space<vmem>>, vector<16x256xbf16>
    %c0_4 = arith.constant 0 : index
    %c0_5 = arith.constant 0 : index
    %5 = vector.load %arg4[%c0_4, %c0_5] : memref<256x128xbf16, #tpu.memory_space<vmem>>, vector<256x128xbf16>
    %cst = arith.constant dense<0.000000e+00> : vector<16x128xf32>
    %6 = tpu.matmul %4, %5, %cst {dimension_numbers = #tpu.dot_dimension_numbers<[1], [0], [0], [1], [0, 0, 1, 1], [], []>} : vector<16x256xbf16>, vector<256x128xbf16>, vector<16x128xf32> -> vector<16x128xf32>
    %7 = arith.addf %3, %6 : vector<16x128xf32>
    %c0_6 = arith.constant 0 : index
    %c0_7 = arith.constant 0 : index
    %8 = vector.load %arg10[%c0_6, %c0_7] : memref<16x128xf32, #tpu.memory_space<vmem>>, vector<16x128xf32>
    tpu.vector_store %arg10[%c0_6, %c0_7], %7 {strides = array<i32>} : memref<16x128xf32, #tpu.memory_space<vmem>>, vector<16x128xf32>,
    %c0_i32_8 = arith.constant 0 : i32
    %9 = arith.cmpi eq, %arg2, %c0_i32_8 : i32
    %10 = arith.extui %9 : i1 to i32
    %c0_i32_9 = arith.constant 0 : i32
    %11 = arith.cmpi ne, %10, %c0_i32_9 : i32
    scf.if %11 {
      %c0_10 = arith.constant 0 : index
      %c0_11 = arith.constant 0 : index
      %12 = vector.load %arg10[%c0_10, %c0_11] : memref<16x128xf32, #tpu.memory_space<vmem>>, vector<16x128xf32>
      %c0_12 = arith.constant 0 : index
      %c0_13 = arith.constant 0 : index
      %13 = vector.load %arg5[%c0_12, %c0_13] : memref<1x128xf32, #tpu.memory_space<vmem>>, vector<1x128xf32>
      %14 = vector.broadcast %13 : vector<1x128xf32> to vector<16x128xf32>
      %15 = arith.addf %12, %14 : vector<16x128xf32>
      %c0_14 = arith.constant 0 : index
      %c0_15 = arith.constant 0 : index
      %16 = vector.load %arg6[%c0_14, %c0_15] : memref<16x128xbf16, #tpu.memory_space<vmem>>, vector<16x128xbf16>
      %17 = arith.extf %16 : vector<16x128xbf16> to vector<16x128xf32>
      %18 = arith.addf %15, %17 : vector<16x128xf32>
      %cst_16 = arith.constant dense<0.000000e+00> : vector<16xf32>
      %19 = vector.multi_reduction <add>, %18, %cst_16 [1] : vector<16x128xf32> to vector<16xf32>
      %20 = vector.shape_cast %19 : vector<16xf32> to vector<16x1xf32>
      %cst_17 = arith.constant 1.280000e+02 : f32
      %21 = vector.broadcast %cst_17 : f32 to vector<16x1xf32>
      %22 = arith.divf %20, %21 : vector<16x1xf32>
      %23 = vector.broadcast %22 : vector<16x1xf32> to vector<16x128xf32>
      %24 = arith.subf %18, %23 : vector<16x128xf32>
      %25 = arith.mulf %24, %24 : vector<16x128xf32>
      %cst_18 = arith.constant dense<0.000000e+00> : vector<16xf32>
      %26 = vector.multi_reduction <add>, %25, %cst_18 [1] : vector<16x128xf32> to vector<16xf32>
      %27 = vector.shape_cast %26 : vector<16xf32> to vector<16x1xf32>
      %cst_19 = arith.constant 1.280000e+02 : f32
      %28 = vector.broadcast %cst_19 : f32 to vector<16x1xf32>
      %29 = arith.divf %27, %28 : vector<16x1xf32>
      %30 = vector.broadcast %22 : vector<16x1xf32> to vector<16x128xf32>
      %31 = arith.subf %18, %30 : vector<16x128xf32>
      %cst_20 = arith.constant 9.99999974E-6 : f32
      %32 = vector.broadcast %cst_20 : f32 to vector<16x1xf32>
      %33 = arith.addf %29, %32 : vector<16x1xf32>
      %34 = math.rsqrt %33 : vector<16x1xf32>
      %35 = vector.broadcast %34 : vector<16x1xf32> to vector<16x128xf32>
      %36 = arith.mulf %31, %35 : vector<16x128xf32>
      %c0_21 = arith.constant 0 : index
      %c0_22 = arith.constant 0 : index
      %37 = vector.load %arg7[%c0_21, %c0_22] : memref<1x128xf32, #tpu.memory_space<vmem>>, vector<1x128xf32>
      %38 = vector.broadcast %37 : vector<1x128xf32> to vector<16x128xf32>
      %39 = arith.mulf %36, %38 : vector<16x128xf32>
      %c0_23 = arith.constant 0 : index
      %c0_24 = arith.constant 0 : index
      %40 = vector.load %arg8[%c0_23, %c0_24] : memref<1x128xf32, #tpu.memory_space<vmem>>, vector<1x128xf32>
      %41 = vector.broadcast %40 : vector<1x128xf32> to vector<16x128xf32>
      %42 = arith.addf %39, %41 : vector<16x128xf32>
      %43 = arith.truncf %42 : vector<16x128xf32> to vector<16x128xbf16>
      %c0_25 = arith.constant 0 : index
      %c0_26 = arith.constant 0 : index
      %44 = vector.load %arg9[%c0_25, %c0_26] : memref<16x128xbf16, #tpu.memory_space<vmem>>, vector<16x128xbf16>
      tpu.vector_store %arg9[%c0_25, %c0_26], %43 {strides = array<i32>} : memref<16x128xbf16, #tpu.memory_space<vmem>>, vector<16x128xbf16>,
    } else {
    }
    return
  }
  func.func @transform_0(%arg0: i32, %arg1: i32, %arg2: i32) -> (i32, i32) {
    %c0_i32 = arith.constant 0 : i32
    return %arg0, %arg2 : i32, i32
  }
  func.func @transform_1(%arg0: i32, %arg1: i32, %arg2: i32) -> (i32, i32) {
    %c0_i32 = arith.constant 0 : i32
    return %arg2, %arg1 : i32, i32
  }
  func.func @transform_2(%arg0: i32, %arg1: i32, %arg2: i32) -> (i32, i32) {
    %c0_i32 = arith.constant 0 : i32
    %c0_i32_0 = arith.constant 0 : i32
    return %c0_i32, %arg1 : i32, i32
  }
  func.func @transform_3(%arg0: i32, %arg1: i32, %arg2: i32) -> (i32, i32) {
    %c0_i32 = arith.constant 0 : i32
    return %arg0, %arg1 : i32, i32
  }
  func.func @transform_4(%arg0: i32, %arg1: i32, %arg2: i32) -> (i32, i32) {
    %c0_i32 = arith.constant 0 : i32
    %c0_i32_0 = arith.constant 0 : i32
    return %c0_i32, %arg1 : i32, i32
  }
  func.func @transform_5(%arg0: i32, %arg1: i32, %arg2: i32) -> (i32, i32) {
    %c0_i32 = arith.constant 0 : i32
    %c0_i32_0 = arith.constant 0 : i32
    return %c0_i32, %arg1 : i32, i32
  }
  func.func @transform_6(%arg0: i32, %arg1: i32, %arg2: i32) -> (i32, i32) {
    %c0_i32 = arith.constant 0 : i32
    return %arg0, %arg1 : i32, i32
  }
}

module attributes {stable_mosaic.version = 11 : i64} {
  func.func @_fused_matmul_kernel(%arg0: i32, %arg1: i32, %arg2: i32, %arg3: memref<16x128xbf16, #tpu.memory_space<vmem>>, %arg4: memref<128x256xbf16, #tpu.memory_space<vmem>>, %arg5: memref<1x256xf32, #tpu.memory_space<vmem>>, %arg6: memref<16x256xbf16, #tpu.memory_space<vmem>>, %arg7: memref<16x256xf32, #tpu.memory_space<vmem>>) attributes {dimension_semantics = [#tpu.dimension_semantics<parallel>, #tpu.dimension_semantics<parallel>, #tpu.dimension_semantics<arbitrary>], iteration_bounds = array<i64: 1, 1, 1>, scalar_prefetch = 0 : i64, scratch_operands = 1 : i64, tpu.core_type = #tpu.core_type<tc>, window_params = [{transform_indices = @transform_0, window_bounds = array<i64: 16, 128>}, {transform_indices = @transform_1, window_bounds = array<i64: 128, 256>}, {transform_indices = @transform_2, window_bounds = array<i64: 1, 256>}, {transform_indices = @transform_3, window_bounds = array<i64: 16, 256>}]} {
    %c0_i32 = arith.constant 0 : i32
    %0 = arith.cmpi eq, %arg2, %c0_i32 : i32
    %1 = arith.extui %0 : i1 to i32
    %c0_i32_0 = arith.constant 0 : i32
    %2 = arith.cmpi ne, %1, %c0_i32_0 : i32
    scf.if %2 {
      %cst_10 = arith.constant 0.000000e+00 : f32
      %12 = vector.broadcast %cst_10 : f32 to vector<16x256xf32>
      %c0_11 = arith.constant 0 : index
      %c0_12 = arith.constant 0 : index
      %13 = vector.load %arg7[%c0_11, %c0_12] : memref<16x256xf32, #tpu.memory_space<vmem>>, vector<16x256xf32>
      tpu.vector_store %arg7[%c0_11, %c0_12], %12 {strides = array<i32>} : memref<16x256xf32, #tpu.memory_space<vmem>>, vector<16x256xf32>,
    } else {
    }
    %c0 = arith.constant 0 : index
    %c0_1 = arith.constant 0 : index
    %3 = vector.load %arg7[%c0, %c0_1] : memref<16x256xf32, #tpu.memory_space<vmem>>, vector<16x256xf32>
    %c0_2 = arith.constant 0 : index
    %c0_3 = arith.constant 0 : index
    %4 = vector.load %arg3[%c0_2, %c0_3] : memref<16x128xbf16, #tpu.memory_space<vmem>>, vector<16x128xbf16>
    %c0_4 = arith.constant 0 : index
    %c0_5 = arith.constant 0 : index
    %5 = vector.load %arg4[%c0_4, %c0_5] : memref<128x256xbf16, #tpu.memory_space<vmem>>, vector<128x256xbf16>
    %cst = arith.constant dense<0.000000e+00> : vector<16x256xf32>
    %6 = tpu.matmul %4, %5, %cst {dimension_numbers = #tpu.dot_dimension_numbers<[1], [0], [0], [1], [0, 0, 1, 1], [], []>} : vector<16x128xbf16>, vector<128x256xbf16>, vector<16x256xf32> -> vector<16x256xf32>
    %7 = arith.addf %3, %6 : vector<16x256xf32>
    %c0_6 = arith.constant 0 : index
    %c0_7 = arith.constant 0 : index
    %8 = vector.load %arg7[%c0_6, %c0_7] : memref<16x256xf32, #tpu.memory_space<vmem>>, vector<16x256xf32>
    tpu.vector_store %arg7[%c0_6, %c0_7], %7 {strides = array<i32>} : memref<16x256xf32, #tpu.memory_space<vmem>>, vector<16x256xf32>,
    %c0_i32_8 = arith.constant 0 : i32
    %9 = arith.cmpi eq, %arg2, %c0_i32_8 : i32
    %10 = arith.extui %9 : i1 to i32
    %c0_i32_9 = arith.constant 0 : i32
    %11 = arith.cmpi ne, %10, %c0_i32_9 : i32
    scf.if %11 {
      %c0_10 = arith.constant 0 : index
      %c0_11 = arith.constant 0 : index
      %12 = vector.load %arg7[%c0_10, %c0_11] : memref<16x256xf32, #tpu.memory_space<vmem>>, vector<16x256xf32>
      %c0_12 = arith.constant 0 : index
      %c0_13 = arith.constant 0 : index
      %13 = vector.load %arg5[%c0_12, %c0_13] : memref<1x256xf32, #tpu.memory_space<vmem>>, vector<1x256xf32>
      %14 = vector.broadcast %13 : vector<1x256xf32> to vector<16x256xf32>
      %15 = arith.addf %12, %14 : vector<16x256xf32>
      %cst_14 = arith.constant 0.000000e+00 : f32
      %16 = vector.broadcast %cst_14 : f32 to vector<16x256xf32>
      %17 = arith.maximumf %15, %16 : vector<16x256xf32>
      %18 = arith.truncf %17 : vector<16x256xf32> to vector<16x256xbf16>
      %c0_15 = arith.constant 0 : index
      %c0_16 = arith.constant 0 : index
      %19 = vector.load %arg6[%c0_15, %c0_16] : memref<16x256xbf16, #tpu.memory_space<vmem>>, vector<16x256xbf16>
      tpu.vector_store %arg6[%c0_15, %c0_16], %18 {strides = array<i32>} : memref<16x256xbf16, #tpu.memory_space<vmem>>, vector<16x256xbf16>,
    } else {
    }
    return
  }
  func.func @transform_0(%arg0: i32, %arg1: i32, %arg2: i32) -> (i32, i32) {
    %c0_i32 = arith.constant 0 : i32
    return %arg0, %arg2 : i32, i32
  }
  func.func @transform_1(%arg0: i32, %arg1: i32, %arg2: i32) -> (i32, i32) {
    %c0_i32 = arith.constant 0 : i32
    return %arg2, %arg1 : i32, i32
  }
  func.func @transform_2(%arg0: i32, %arg1: i32, %arg2: i32) -> (i32, i32) {
    %c0_i32 = arith.constant 0 : i32
    %c0_i32_0 = arith.constant 0 : i32
    return %c0_i32, %arg1 : i32, i32
  }
  func.func @transform_3(%arg0: i32, %arg1: i32, %arg2: i32) -> (i32, i32) {
    %c0_i32 = arith.constant 0 : i32
    return %arg0, %arg1 : i32, i32
  }
}

</mosaic_0001>

<llo_original>
// kernel: transformer_decoder.20
$region0: #{transformer_decoder.20}
  #allocation0 [shape = 'u32[]', space=smem, size = 0x4, offset = 0x4, fixed_abs, tag = 'smem constant byte address 0x4 - core index']
  #allocation1 [shape = 'u32[144,128]{1,0:T(1,128)}', space=vmem, size = 0x12000, scoped, tag = 'internal scratch']
  #allocation2 [shape = 'f32[16,128]{1,0:T(8,128)}', space=vmem, size = 0x2000, scoped, tag = 'scratch operand']
  %s0 = inlined_call_operand.vmem [shape: bf16[16,128], index: 0, kind: input, shape index: {}]
  %s1 = inlined_call_operand.vmem [shape: bf16[128,128], index: 1, kind: input, shape index: {}]
  %s2 = inlined_call_operand.vmem [shape: f32[1,128], index: 2, kind: input, shape index: {}]
  %s3 = inlined_call_operand.vmem [shape: bf16[16,128], index: 3, kind: input, shape index: {}]
  %s4 = inlined_call_operand.vmem [shape: f32[1,128], index: 4, kind: input, shape index: {}]
  %s5 = inlined_call_operand.vmem [shape: f32[1,128], index: 5, kind: input, shape index: {}]
  %s6 = inlined_call_operand.vmem [shape: bf16[16,128], index: 6, kind: output, shape index: {}]
  %s7 = sld [smem:[#allocation0]]
  $region42: #{transformer_decoder.20} parent=0
    _
  %s9 = ssub.s32 1, %s7
  %s10 = scalar_select 0, %s9, %s7
  // Predicated region
  $region2: #{transformer_decoder.20} parent=0 // pred_check
    _
  $region3: #{transformer_decoder.20} parent=0 // pred_check_branch
    %12 = sbr.rel (0) target = $region5
  $region4: #{transformer_decoder.20} parent=0 // pred_region
    _
  $region5: #{transformer_decoder.20} parent=0 // pred_fallthru
    _
  // Predicated region
  $region6: #{transformer_decoder.20} parent=0 // pred_check
    _
  $region7: #{transformer_decoder.20} parent=0 // pred_check_branch
    %14 = sbr.rel (0) target = $region9
  $region8: #{transformer_decoder.20} parent=0 // pred_region
    _
  $region9: #{transformer_decoder.20} parent=0 // pred_fallthru
    _
  // Predicated region
  $region10: #{transformer_decoder.20} parent=0 // pred_check
    _
  $region11: #{transformer_decoder.20} parent=0 // pred_check_branch
    %16 = sbr.rel (0) target = $region13
  $region12: #{transformer_decoder.20} parent=0 // pred_region
    _
  $region13: #{transformer_decoder.20} parent=0 // pred_fallthru
    _
  // Predicated region
  $region14: #{transformer_decoder.20} parent=0 // pred_check
    _
  $region15: #{transformer_decoder.20} parent=0 // pred_check_branch
    %18 = sbr.rel (0) target = $region17
  $region16: #{transformer_decoder.20} parent=0 // pred_region
    _
  $region17: #{transformer_decoder.20} parent=0 // pred_fallthru
    _
  // Predicated region
  $region18: #{transformer_decoder.20} parent=0 // pred_check
    _
  $region19: #{transformer_decoder.20} parent=0 // pred_check_branch
    %20 = sbr.rel (0) target = $region21
  $region20: #{transformer_decoder.20} parent=0 // pred_region
    _
  $region21: #{transformer_decoder.20} parent=0 // pred_fallthru
    _
  // Predicated region
  $region22: #{transformer_decoder.20} parent=0 // pred_check
    _
  $region23: #{transformer_decoder.20} parent=0 // pred_check_branch
    %22 = sbr.rel (0) target = $region25
  $region24: #{transformer_decoder.20} parent=0 // pred_region
    _
  $region25: #{transformer_decoder.20} parent=0 // pred_fallthru
    _
  %p24 = scmp.eq.s32.totalorder 0, 0
  // Predicated region
  $region26: #{transformer_decoder.20} parent=0 // pred_check
    %p25 = pneg %p24
  $region27: #{transformer_decoder.20} parent=0 // pred_check_branch
    %27 = sbr.rel (%p25) target = $region29
  $region28: #{transformer_decoder.20} parent=0 // pred_region
    %28 = vst [vmem:[#allocation2] sm:$0xff] 0.0
    %29 = vst [vmem:[#allocation2 + $0x8] sm:$0xff] 0.0
  $region29: #{transformer_decoder.20} parent=0 // pred_fallthru
    _
  %v30 = vld [vmem:[#allocation2] sm:$0xff]
  %v31 = vld [vmem:[#allocation2 + $0x8] sm:$0xff]
  %v32 = vld [vmem:[%s0] sm:$0xf]
  %v33 = vld [vmem:[%s0 + $0x4] sm:$0xf]
  %v34 = vld [vmem:[%s1] sm:$0xf]
  %v35 = vld [vmem:[%s1 + $0x4] sm:$0xf]
  %v36 = vld [vmem:[%s1 + $0x8] sm:$0xf]
  %v37 = vld [vmem:[%s1 + $0xc] sm:$0xf]
  %v38 = vld [vmem:[%s1 + $0x10] sm:$0xf]
  %v39 = vld [vmem:[%s1 + $0x14] sm:$0xf]
  %v40 = vld [vmem:[%s1 + $0x18] sm:$0xf]
  %v41 = vld [vmem:[%s1 + $0x1c] sm:$0xf]
  %v42 = vld [vmem:[%s1 + $0x20] sm:$0xf]
  %v43 = vld [vmem:[%s1 + $0x24] sm:$0xf]
  %v44 = vld [vmem:[%s1 + $0x28] sm:$0xf]
  %v45 = vld [vmem:[%s1 + $0x2c] sm:$0xf]
  %v46 = vld [vmem:[%s1 + $0x30] sm:$0xf]
  %v47 = vld [vmem:[%s1 + $0x34] sm:$0xf]
  %v48 = vld [vmem:[%s1 + $0x38] sm:$0xf]
  %v49 = vld [vmem:[%s1 + $0x3c] sm:$0xf]
  %v52 = vunpack.c.l.b16 %v32
  %v53 = vunpack.c.l.b16 %v33
  %v54 = vpack.c.b16 %v53, %v52
  %v72 = vunpack.c.l.b16 %v34
  %v73 = vunpack.c.l.b16 %v35
  %v74 = vunpack.c.l.b16 %v36
  %v75 = vunpack.c.l.b16 %v37
  %v76 = vunpack.c.l.b16 %v38
  %v77 = vunpack.c.l.b16 %v39
  %v78 = vunpack.c.l.b16 %v40
  %v79 = vunpack.c.l.b16 %v41
  %v80 = vunpack.c.l.b16 %v42
  %v81 = vunpack.c.l.b16 %v43
  %v82 = vunpack.c.l.b16 %v44
  %v83 = vunpack.c.l.b16 %v45
  %v84 = vunpack.c.l.b16 %v46
  %v85 = vunpack.c.l.b16 %v47
  %v86 = vunpack.c.l.b16 %v48
  %v87 = vunpack.c.l.b16 %v49
  %v88 = vpack.c.b16 %v73, %v72
  %v89 = vpack.c.b16 %v75, %v74
  %v90 = vpack.c.b16 %v77, %v76
  %v91 = vpack.c.b16 %v79, %v78
  %v92 = vpack.c.b16 %v81, %v80
  %v93 = vpack.c.b16 %v83, %v82
  %v94 = vpack.c.b16 %v85, %v84
  %v95 = vpack.c.b16 %v87, %v86
  %104 = vmatprep.subr.bf16.mxu0 0
  %105 = vmatpush1.bf16.msra.mxu0 %v95
  %106 = vmatprep.subr.bf16.mxu0 0
  %107 = vmatpush1.bf16.msra.mxu0 %v94
  %108 = vmatprep.subr.bf16.mxu0 0
  %109 = vmatpush1.bf16.msra.mxu0 %v93
  %110 = vmatprep.subr.bf16.mxu0 0
  %111 = vmatpush1.bf16.msra.mxu0 %v92
  %112 = vmatprep.subr.bf16.mxu0 0
  %113 = vmatpush1.bf16.msra.mxu0 %v91
  %114 = vmatprep.subr.bf16.mxu0 0
  %115 = vmatpush1.bf16.msra.mxu0 %v90
  %116 = vmatprep.subr.bf16.mxu0 0
  %117 = vmatpush1.bf16.msra.mxu0 %v89
  %118 = vmatprep.subr.bf16.mxu0 0
  %119 = vmatpush1.bf16.msra.mxu0 %v88
  %120 = vmatprep.subr.bf16.mxu0 0
  %121 = vmatpush2.bf16.msra.mxu0 0
  %122 = vmatprep.subr.bf16.mxu0 0
  %123 = vmatpush2.bf16.msra.mxu0 0
  %124 = vmatprep.subr.bf16.mxu0 0
  %125 = vmatpush2.bf16.msra.mxu0 0
  %126 = vmatprep.subr.bf16.mxu0 0
  %127 = vmatpush2.bf16.msra.mxu0 0
  %128 = vmatprep.subr.bf16.mxu0 0
  %129 = vmatpush2.bf16.msra.mxu0 0
  %130 = vmatprep.subr.bf16.mxu0 0
  %131 = vmatpush2.bf16.msra.mxu0 0
  %132 = vmatprep.subr.bf16.mxu0 0
  %133 = vmatpush2.bf16.msra.mxu0 0
  %134 = vmatprep.subr.bf16.mxu0 0
  %135 = vmatpush2.bf16.msra.mxu0 0
  %136 = vmatprep.mubr.bf16.mxu0 0
  %137 = vmatmul.mubr.bf16.gmra.mxu0 %v54
  %v138 = vpop.f32.mrf.mxu0
  %v139 = vadd.f32 0.0, %v138
  %v140 = vpop.f32.mrf.mxu0
  %v141 = vpop.f32.mrf.mxu0
  %v142 = vadd.f32 0.0, %v141
  %v143 = vpop.f32.mrf.mxu0
  %144 = vdwg.mxu0
  %v145 = vadd.f32 %v30, %v139
  %v146 = vadd.f32 %v31, %v142
  %147 = vst [vmem:[#allocation2] sm:$0xff] %v145
  %148 = vst [vmem:[#allocation2 + $0x8] sm:$0xff] %v146
  // Predicated region
  $region30: #{transformer_decoder.20} parent=0 // pred_check
    %p149 = pneg %p24
  $region31: #{transformer_decoder.20} parent=0 // pred_check_branch
    %151 = sbr.rel (%p149) target = $region33
  $region32: #{transformer_decoder.20} parent=0 // pred_region
    %v152 = vld [vmem:[#allocation2] sm:$0xff]
    %v153 = vld [vmem:[#allocation2 + $0x8] sm:$0xff]
    %v154 = vld [vmem:[%s2] sm:$0x1]
    %v156 = vlaneseq
    %v157 = vshrl.u32 %v156, 7
    %v158 = vsub.s32 0, %v157
    %v159 = vrot.slane %v154, %v158
    %v161 = vadd.f32 %v152, %v159
    %v162 = vadd.f32 %v153, %v159
    %v163 = vld [vmem:[%s3] sm:$0xf]
    %v164 = vld [vmem:[%s3 + $0x4] sm:$0xf]
    %v165 = vunpack.c.l.bf16 %v163
    %v166 = vunpack.c.l.bf16 %v164
    %v167 = vadd.f32 %v161, %v165
    %v168 = vadd.f32 %v162, %v166
    %169 = vadd.xlane.f32.xlu0 %v167
    %v170 = vpop.xlane.xlu0 %169
    %171 = vadd.xlane.f32.xlu0 %v168
    %v172 = vpop.xlane.xlu0 %171
    %v173 = vrcp.pop 128.0
    %v174 = vmul.f32 %v170, %v173
    %v175 = vmul.f32 %v172, %v173
    %v176 = vsub.f32 %v167, %v174
    %v177 = vsub.f32 %v168, %v175
    %v178 = vmul.f32 %v176, %v176
    %v179 = vmul.f32 %v177, %v177
    %180 = vadd.xlane.f32.xlu0 %v178
    %v181 = vpop.xlane.xlu0 %180
    %182 = vadd.xlane.f32.xlu0 %v179
    %v183 = vpop.xlane.xlu0 %182
    %v184 = vmul.f32 %v181, %v173
    %v185 = vmul.f32 %v183, %v173
    %v186 = vadd.f32 %v184, 1e-05
    %v187 = vadd.f32 %v185, 1e-05
    %v188 = vrsqrt.pop %v186
    %v189 = vrsqrt.pop %v187
    %v190 = vmul.f32 %v176, %v188
    %v191 = vmul.f32 %v177, %v189
    %v192 = vld [vmem:[%s4] sm:$0x1]
    %v194 = vlaneseq
    %v195 = vshrl.u32 %v194, 7
    %v196 = vsub.s32 0, %v195
    %v197 = vrot.slane %v192, %v196
    %v199 = vmul.f32 %v190, %v197
    %v200 = vmul.f32 %v191, %v197
    %v201 = vld [vmem:[%s5] sm:$0x1]
    %v203 = vlaneseq
    %v204 = vshrl.u32 %v203, 7
    %v205 = vsub.s32 0, %v204
    %v206 = vrot.slane %v201, %v205
    %v208 = vadd.f32 %v199, %v206
    %v209 = vadd.f32 %v200, %v206
    %v210 = vpack.c.bf16 %v209, %v208
    %v212 = vunpack.c.l.b16 %v210
    %v213 = vunpack.c.h.b16 %v210
    %v214 = vpack.c.b16 %v212, %v212
    %v215 = vpack.c.b16 %v213, %v213
    %218 = vst [vmem:[%s6] sm:$0xf] %v214
    %219 = vst [vmem:[%s6 + $0x4] sm:$0xf] %v215
  $region33: #{transformer_decoder.20} parent=0 // pred_fallthru
    _
  // Predicated region
  $region34: #{transformer_decoder.20} parent=0 // pred_check
    _
  $region35: #{transformer_decoder.20} parent=0 // pred_check_branch
    %221 = sbr.rel (0) target = $region37
  $region36: #{transformer_decoder.20} parent=0 // pred_region
    _
  $region37: #{transformer_decoder.20} parent=0 // pred_fallthru
    _
  // Predicated region
  $region38: #{transformer_decoder.20} parent=0 // pred_check
    _
  $region39: #{transformer_decoder.20} parent=0 // pred_check_branch
    %223 = sbr.rel (0) target = $region41
  $region40: #{transformer_decoder.20} parent=0 // pred_region
    _
  $region41: #{transformer_decoder.20} parent=0 // pred_fallthru
    _

// kernel: transformer_decoder.21
$region0: #{transformer_decoder.21}
  #allocation0 [shape = 'u32[]', space=smem, size = 0x4, offset = 0x4, fixed_abs, tag = 'smem constant byte address 0x4 - core index']
  #allocation1 [shape = 'u32[144,128]{1,0:T(1,128)}', space=vmem, size = 0x12000, scoped, tag = 'internal scratch']
  #allocation2 [shape = 'f32[16,128]{1,0:T(8,128)}', space=vmem, size = 0x2000, scoped, tag = 'scratch operand']
  %s0 = inlined_call_operand.vmem [shape: bf16[16,128], index: 0, kind: input, shape index: {}]
  %s1 = inlined_call_operand.vmem [shape: bf16[128,128], index: 1, kind: input, shape index: {}]
  %s2 = inlined_call_operand.vmem [shape: f32[1,128], index: 2, kind: input, shape index: {}]
  %s3 = inlined_call_operand.vmem [shape: bf16[16,128], index: 3, kind: output, shape index: {}]
  %s4 = sld [smem:[#allocation0]]
  $region30: #{transformer_decoder.21} parent=0
    _
  %s6 = ssub.s32 1, %s4
  %s7 = scalar_select 0, %s6, %s4
  // Predicated region
  $region2: #{transformer_decoder.21} parent=0 // pred_check
    _
  $region3: #{transformer_decoder.21} parent=0 // pred_check_branch
    %9 = sbr.rel (0) target = $region5
  $region4: #{transformer_decoder.21} parent=0 // pred_region
    _
  $region5: #{transformer_decoder.21} parent=0 // pred_fallthru
    _
  // Predicated region
  $region6: #{transformer_decoder.21} parent=0 // pred_check
    _
  $region7: #{transformer_decoder.21} parent=0 // pred_check_branch
    %11 = sbr.rel (0) target = $region9
  $region8: #{transformer_decoder.21} parent=0 // pred_region
    _
  $region9: #{transformer_decoder.21} parent=0 // pred_fallthru
    _
  // Predicated region
  $region10: #{transformer_decoder.21} parent=0 // pred_check
    _
  $region11: #{transformer_decoder.21} parent=0 // pred_check_branch
    %13 = sbr.rel (0) target = $region13
  $region12: #{transformer_decoder.21} parent=0 // pred_region
    _
  $region13: #{transformer_decoder.21} parent=0 // pred_fallthru
    _
  %p15 = scmp.eq.s32.totalorder 0, 0
  // Predicated region
  $region14: #{transformer_decoder.21} parent=0 // pred_check
    %p16 = pneg %p15
  $region15: #{transformer_decoder.21} parent=0 // pred_check_branch
    %18 = sbr.rel (%p16) target = $region17
  $region16: #{transformer_decoder.21} parent=0 // pred_region
    %19 = vst [vmem:[#allocation2] sm:$0xff] 0.0
    %20 = vst [vmem:[#allocation2 + $0x8] sm:$0xff] 0.0
  $region17: #{transformer_decoder.21} parent=0 // pred_fallthru
    _
  %v21 = vld [vmem:[#allocation2] sm:$0xff]
  %v22 = vld [vmem:[#allocation2 + $0x8] sm:$0xff]
  %v23 = vld [vmem:[%s0] sm:$0xf]
  %v24 = vld [vmem:[%s0 + $0x4] sm:$0xf]
  %v25 = vld [vmem:[%s1] sm:$0xf]
  %v26 = vld [vmem:[%s1 + $0x4] sm:$0xf]
  %v27 = vld [vmem:[%s1 + $0x8] sm:$0xf]
  %v28 = vld [vmem:[%s1 + $0xc] sm:$0xf]
  %v29 = vld [vmem:[%s1 + $0x10] sm:$0xf]
  %v30 = vld [vmem:[%s1 + $0x14] sm:$0xf]
  %v31 = vld [vmem:[%s1 + $0x18] sm:$0xf]
  %v32 = vld [vmem:[%s1 + $0x1c] sm:$0xf]
  %v33 = vld [vmem:[%s1 + $0x20] sm:$0xf]
  %v34 = vld [vmem:[%s1 + $0x24] sm:$0xf]
  %v35 = vld [vmem:[%s1 + $0x28] sm:$0xf]
  %v36 = vld [vmem:[%s1 + $0x2c] sm:$0xf]
  %v37 = vld [vmem:[%s1 + $0x30] sm:$0xf]
  %v38 = vld [vmem:[%s1 + $0x34] sm:$0xf]
  %v39 = vld [vmem:[%s1 + $0x38] sm:$0xf]
  %v40 = vld [vmem:[%s1 + $0x3c] sm:$0xf]
  %v43 = vunpack.c.l.b16 %v23
  %v44 = vunpack.c.l.b16 %v24
  %v45 = vpack.c.b16 %v44, %v43
  %v63 = vunpack.c.l.b16 %v25
  %v64 = vunpack.c.l.b16 %v26
  %v65 = vunpack.c.l.b16 %v27
  %v66 = vunpack.c.l.b16 %v28
  %v67 = vunpack.c.l.b16 %v29
  %v68 = vunpack.c.l.b16 %v30
  %v69 = vunpack.c.l.b16 %v31
  %v70 = vunpack.c.l.b16 %v32
  %v71 = vunpack.c.l.b16 %v33
  %v72 = vunpack.c.l.b16 %v34
  %v73 = vunpack.c.l.b16 %v35
  %v74 = vunpack.c.l.b16 %v36
  %v75 = vunpack.c.l.b16 %v37
  %v76 = vunpack.c.l.b16 %v38
  %v77 = vunpack.c.l.b16 %v39
  %v78 = vunpack.c.l.b16 %v40
  %v79 = vpack.c.b16 %v64, %v63
  %v80 = vpack.c.b16 %v66, %v65
  %v81 = vpack.c.b16 %v68, %v67
  %v82 = vpack.c.b16 %v70, %v69
  %v83 = vpack.c.b16 %v72, %v71
  %v84 = vpack.c.b16 %v74, %v73
  %v85 = vpack.c.b16 %v76, %v75
  %v86 = vpack.c.b16 %v78, %v77
  %95 = vmatprep.subr.bf16.mxu0 0
  %96 = vmatpush1.bf16.msra.mxu0 %v86
  %97 = vmatprep.subr.bf16.mxu0 0
  %98 = vmatpush1.bf16.msra.mxu0 %v85
  %99 = vmatprep.subr.bf16.mxu0 0
  %100 = vmatpush1.bf16.msra.mxu0 %v84
  %101 = vmatprep.subr.bf16.mxu0 0
  %102 = vmatpush1.bf16.msra.mxu0 %v83
  %103 = vmatprep.subr.bf16.mxu0 0
  %104 = vmatpush1.bf16.msra.mxu0 %v82
  %105 = vmatprep.subr.bf16.mxu0 0
  %106 = vmatpush1.bf16.msra.mxu0 %v81
  %107 = vmatprep.subr.bf16.mxu0 0
  %108 = vmatpush1.bf16.msra.mxu0 %v80
  %109 = vmatprep.subr.bf16.mxu0 0
  %110 = vmatpush1.bf16.msra.mxu0 %v79
  %111 = vmatprep.subr.bf16.mxu0 0
  %112 = vmatpush2.bf16.msra.mxu0 0
  %113 = vmatprep.subr.bf16.mxu0 0
  %114 = vmatpush2.bf16.msra.mxu0 0
  %115 = vmatprep.subr.bf16.mxu0 0
  %116 = vmatpush2.bf16.msra.mxu0 0
  %117 = vmatprep.subr.bf16.mxu0 0
  %118 = vmatpush2.bf16.msra.mxu0 0
  %119 = vmatprep.subr.bf16.mxu0 0
  %120 = vmatpush2.bf16.msra.mxu0 0
  %121 = vmatprep.subr.bf16.mxu0 0
  %122 = vmatpush2.bf16.msra.mxu0 0
  %123 = vmatprep.subr.bf16.mxu0 0
  %124 = vmatpush2.bf16.msra.mxu0 0
  %125 = vmatprep.subr.bf16.mxu0 0
  %126 = vmatpush2.bf16.msra.mxu0 0
  %127 = vmatprep.mubr.bf16.mxu0 0
  %128 = vmatmul.mubr.bf16.gmra.mxu0 %v45
  %v129 = vpop.f32.mrf.mxu0
  %v130 = vadd.f32 0.0, %v129
  %v131 = vpop.f32.mrf.mxu0
  %v132 = vpop.f32.mrf.mxu0
  %v133 = vadd.f32 0.0, %v132
  %v134 = vpop.f32.mrf.mxu0
  %135 = vdwg.mxu0
  %v136 = vadd.f32 %v21, %v130
  %v137 = vadd.f32 %v22, %v133
  %138 = vst [vmem:[#allocation2] sm:$0xff] %v136
  %139 = vst [vmem:[#allocation2 + $0x8] sm:$0xff] %v137
  // Predicated region
  $region18: #{transformer_decoder.21} parent=0 // pred_check
    %p140 = pneg %p15
  $region19: #{transformer_decoder.21} parent=0 // pred_check_branch
    %142 = sbr.rel (%p140) target = $region21
  $region20: #{transformer_decoder.21} parent=0 // pred_region
    %v143 = vld [vmem:[#allocation2] sm:$0xff]
    %v144 = vld [vmem:[#allocation2 + $0x8] sm:$0xff]
    %v145 = vld [vmem:[%s2] sm:$0x1]
    %v147 = vlaneseq
    %v148 = vshrl.u32 %v147, 7
    %v149 = vsub.s32 0, %v148
    %v150 = vrot.slane %v145, %v149
    %v152 = vadd.f32 %v143, %v150
    %v153 = vadd.f32 %v144, %v150
    %v154 = vpack.c.bf16 %v153, %v152
    %v156 = vunpack.c.l.b16 %v154
    %v157 = vunpack.c.h.b16 %v154
    %v158 = vpack.c.b16 %v156, %v156
    %v159 = vpack.c.b16 %v157, %v157
    %162 = vst [vmem:[%s3] sm:$0xf] %v158
    %163 = vst [vmem:[%s3 + $0x4] sm:$0xf] %v159
  $region21: #{transformer_decoder.21} parent=0 // pred_fallthru
    _
  // Predicated region
  $region22: #{transformer_decoder.21} parent=0 // pred_check
    _
  $region23: #{transformer_decoder.21} parent=0 // pred_check_branch
    %165 = sbr.rel (0) target = $region25
  $region24: #{transformer_decoder.21} parent=0 // pred_region
    _
  $region25: #{transformer_decoder.21} parent=0 // pred_fallthru
    _
  // Predicated region
  $region26: #{transformer_decoder.21} parent=0 // pred_check
    _
  $region27: #{transformer_decoder.21} parent=0 // pred_check_branch
    %167 = sbr.rel (0) target = $region29
  $region28: #{transformer_decoder.21} parent=0 // pred_region
    _
  $region29: #{transformer_decoder.21} parent=0 // pred_fallthru
    _

// kernel: transformer_decoder.18
$region0: #{transformer_decoder.18}
  #allocation0 [shape = 'u32[]', space=smem, size = 0x4, offset = 0x4, fixed_abs, tag = 'smem constant byte address 0x4 - core index']
  #allocation1 [shape = 'u32[144,128]{1,0:T(1,128)}', space=vmem, size = 0x12000, scoped, tag = 'internal scratch']
  #allocation2 [shape = 'f32[16,128]{1,0:T(8,128)}', space=vmem, size = 0x2000, scoped, tag = 'scratch operand']
  %s0 = inlined_call_operand.vmem [shape: bf16[16,128], index: 0, kind: input, shape index: {}]
  %s1 = inlined_call_operand.vmem [shape: bf16[128,384], index: 1, kind: input, shape index: {}]
  %s2 = inlined_call_operand.vmem [shape: f32[1,384], index: 2, kind: input, shape index: {}]
  %s3 = inlined_call_operand.vmem [shape: bf16[16,384], index: 3, kind: output, shape index: {}]
  %s4 = sld [smem:[#allocation0]]
  $region131: #{transformer_decoder.18} parent=0
    _
  %s6 = ssub.s32 1, %s4
  %s7 = scalar_select 0, %s6, %s4
  $region1: #{transformer_decoder.18} parent=0
    #allocation3 [shape = 'u8[65536]{0}', space=vmem, size = 0x10000, scoped, tag = 'input window, operand 1']
    #allocation4 [shape = 'u8[8192]{0}', space=vmem, size = 0x2000, scoped, tag = 'output window, operand 0']
    loop: start=0, step=1, limit=5
    $region2: #{transformer_decoder.18} parent=1 // loop_pre_header
      _
    $region3: #{transformer_decoder.18} parent=1 // loop_header
      %s9 = sphi 0, %s13
      %p10 = scmp.ge.s32.totalorder %s9, 5
      %s16 = sphi 0, %s35
      %s17 = sphi 0, %s31
      %s18 = sphi 0, %s27
      %s19 = sphi 0, %s16
      %s20 = sphi 0, %s17
      %s21 = sphi 0, %s18
      %s22 = sphi 0, %s19
      %s23 = sphi 0, %s20
      %s24 = sphi 0, %s21
      %s40 = sphi 0, %s42
      %s43 = sphi 0, %s40
      %s44 = sphi 0, %s43
      %s60 = sphi 0, %s44
      %s68 = sphi 0, %s70
      %s71 = sphi 0, %s68
      %s72 = sphi 0, %s71
      %s88 = sphi 0, %s72
      %s94 = sphi 0, %s96
      %s97 = sphi 0, %s94
      %s98 = sphi 0, %s97
      %s114 = sphi 0, %s98
      %s122 = sphi 0, %s124
      %s125 = sphi 0, %s122
      %s126 = sphi 0, %s125
      %s142 = sphi 0, %s126
    $region4: #{transformer_decoder.18} parent=1 // loop_header_branch
      %12 = sbr.rel (%p10) target = $region8
    $region5: #{transformer_decoder.18} parent=1 // loop_body
      %s14 = ssub.s32 %s9, 1
      %s15 = ssub.s32 %s9, 2
      %s25 = sadd.s32 1, %s18
      %p26 = scmp.ge.s32.totalorder %s25, 1
      %s27 = scalar_select %p26, 0, %s25
      %s28 = sadd.s32 1, %s17
      %s29 = scalar_select %p26, %s28, %s17
      %p30 = scmp.ge.s32.totalorder %s29, 3
      %s31 = scalar_select %p30, 0, %s29
      %s32 = sadd.s32 1, %s16
      %s33 = scalar_select %p30, %s32, %s16
      %p34 = scmp.ge.s32.totalorder %s33, 1
      %s35 = scalar_select %p34, 0, %s33
      %s36 = ssub.s32 %s16, %s35
      %s37 = ssub.s32 %s18, %s27
      %s38 = sor.u32 %s36, %s37
      %p39 = scmp.eq.s32.totalorder %s38, 0
      %s41 = sadd.s32 %s40, 1
      %s42 = scalar_select %p39, %s40, %s41
      %p45 = pneg %p39
      %p46 = scmp.eq.s32.totalorder %s9, 2
      %p47 = por %p45, %p46
      %p48 = scmp.ne.s32.totalorder %s40, %s43
      %p49 = scmp.eq.s32.totalorder %s9, 0
      %p50 = por %p48, %p49
      %p51 = scmp.ne.s32.totalorder %s40, %s43
      %p52 = scmp.eq.s32.totalorder %s14, 2
      %p53 = por %p51, %p52
      %p54 = scmp.ne.s32.totalorder %s43, %s44
      %p55 = scmp.eq.s32.totalorder %s14, 0
      %p56 = por %p54, %p55
      %p57 = scmp.ne.s32.totalorder %s43, %s44
      %p58 = scmp.eq.s32.totalorder %s15, 2
      %p59 = por %p57, %p58
      %p61 = scmp.ne.s32.totalorder %s44, %s60
      %p62 = scmp.eq.s32.totalorder %s15, 0
      %p63 = por %p61, %p62
      %s64 = ssub.s32 %s18, %s27
      %s65 = ssub.s32 %s17, %s31
      %s66 = sor.u32 %s64, %s65
      %p67 = scmp.eq.s32.totalorder %s66, 0
      %s69 = sadd.s32 %s68, 1
      %s70 = scalar_select %p67, %s68, %s69
      %p73 = pneg %p67
      %p74 = scmp.eq.s32.totalorder %s9, 2
      %p75 = por %p73, %p74
      %p76 = scmp.ne.s32.totalorder %s68, %s71
      %p77 = scmp.eq.s32.totalorder %s9, 0
      %p78 = por %p76, %p77
      %p79 = scmp.ne.s32.totalorder %s68, %s71
      %p80 = scmp.eq.s32.totalorder %s14, 2
      %p81 = por %p79, %p80
      %p82 = scmp.ne.s32.totalorder %s71, %s72
      %p83 = scmp.eq.s32.totalorder %s14, 0
      %p84 = por %p82, %p83
      %p85 = scmp.ne.s32.totalorder %s71, %s72
      %p86 = scmp.eq.s32.totalorder %s15, 2
      %p87 = por %p85, %p86
      %p89 = scmp.ne.s32.totalorder %s72, %s88
      %p90 = scmp.eq.s32.totalorder %s15, 0
      %p91 = por %p89, %p90
      %s92 = ssub.s32 %s17, %s31
      %p93 = scmp.eq.s32.totalorder %s92, 0
      %s95 = sadd.s32 %s94, 1
      %s96 = scalar_select %p93, %s94, %s95
      %p99 = pneg %p93
      %p100 = scmp.eq.s32.totalorder %s9, 2
      %p101 = por %p99, %p100
      %p102 = scmp.ne.s32.totalorder %s94, %s97
      %p103 = scmp.eq.s32.totalorder %s9, 0
      %p104 = por %p102, %p103
      %p105 = scmp.ne.s32.totalorder %s94, %s97
      %p106 = scmp.eq.s32.totalorder %s14, 2
      %p107 = por %p105, %p106
      %p108 = scmp.ne.s32.totalorder %s97, %s98
      %p109 = scmp.eq.s32.totalorder %s14, 0
      %p110 = por %p108, %p109
      %p111 = scmp.ne.s32.totalorder %s97, %s98
      %p112 = scmp.eq.s32.totalorder %s15, 2
      %p113 = por %p111, %p112
      %p115 = scmp.ne.s32.totalorder %s98, %s114
      %p116 = scmp.eq.s32.totalorder %s15, 0
      %p117 = por %p115, %p116
      %s118 = ssub.s32 %s16, %s35
      %s119 = ssub.s32 %s17, %s31
      %s120 = sor.u32 %s118, %s119
      %p121 = scmp.eq.s32.totalorder %s120, 0
      %s123 = sadd.s32 %s122, 1
      %s124 = scalar_select %p121, %s122, %s123
      %p127 = pneg %p121
      %p128 = scmp.eq.s32.totalorder %s9, 2
      %p129 = por %p127, %p128
      %p130 = scmp.ne.s32.totalorder %s122, %s125
      %p131 = scmp.eq.s32.totalorder %s9, 0
      %p132 = por %p130, %p131
      %p133 = scmp.ne.s32.totalorder %s122, %s125
      %p134 = scmp.eq.s32.totalorder %s14, 2
      %p135 = por %p133, %p134
      %p136 = scmp.ne.s32.totalorder %s125, %s126
      %p137 = scmp.eq.s32.totalorder %s14, 0
      %p138 = por %p136, %p137
      %p139 = scmp.ne.s32.totalorder %s125, %s126
      %p140 = scmp.eq.s32.totalorder %s15, 2
      %p141 = por %p139, %p140
      %p143 = scmp.ne.s32.totalorder %s126, %s142
      %p144 = scmp.eq.s32.totalorder %s15, 0
      %p145 = por %p143, %p144
      %p146 = scmp.le.s32.totalorder 1, %s9
      %p147 = scmp.lt.s32.totalorder %s9, 4
      %p148 = pnand %p146, %p147
      %p149 = pneg %p148
      // Predicated region
      $region9: #{transformer_decoder.18} parent=5 // pred_check
        _
      $region10: #{transformer_decoder.18} parent=5 // pred_check_branch
        %151 = sbr.rel (%p148) target = $region12
      $region11: #{transformer_decoder.18} parent=5 // pred_region
        %s152 = ssub.s32 %s9, 1
        // Predicated region
        $region13: #{transformer_decoder.18} parent=11 // pred_check
          %p153 = pneg %p56
        $region14: #{transformer_decoder.18} parent=11 // pred_check_branch
          %155 = sbr.rel (%p153) target = $region16
        $region15: #{transformer_decoder.18} parent=11 // pred_region
          %s156 = smul.u32 2, %s19
          %p157 = scmp.lt.s32.totalorder %s156, 1
          %s158 = scalar_select %p157, %s156, 1
          %p159 = scmp.lt.s32.totalorder %s21, 0
          %s160 = scalar_select %p159, %s21, 0
          %s161 = sadd.s32 %s160, %s158
          %s162 = smul.addr %s161, 4
          %s163 = scalar_lea.vmem %s0, %s162
          %s164 = smul.u32 2, %s19
        $region16: #{transformer_decoder.18} parent=11 // pred_fallthru
          _
      $region12: #{transformer_decoder.18} parent=5 // pred_fallthru
        _
      %p165 = scmp.lt.s32.totalorder %s9, 3
      // Predicated region
      $region17: #{transformer_decoder.18} parent=5 // pred_check
        %p166 = pneg %p165
      $region18: #{transformer_decoder.18} parent=5 // pred_check_branch
        %168 = sbr.rel (%p166) target = $region20
      $region19: #{transformer_decoder.18} parent=5 // pred_region
        // Predicated region
        $region21: #{transformer_decoder.18} parent=19 // pred_check
          %p169 = pneg %p78
        $region22: #{transformer_decoder.18} parent=19 // pred_check_branch
          %171 = sbr.rel (%p169) target = $region24
        $region23: #{transformer_decoder.18} parent=19 // pred_region
          %s172 = sand.u32 %s68, 1
          %s173 = sand.u32 %s68, 1
          %s174 = smul.addr %s173, 64
          %s175 = scalar_lea.vmem [#allocation3], %s174
          %s176 = smul.u32 16, %s18
          %s177 = smul.addr %s176, 3
          %s178 = sadd.s32 %s17, %s177
          %s179 = smul.addr %s178, 4
          %s180 = scalar_lea.vmem %s1, %s179
          // Predicated region
          $region25: #{transformer_decoder.18} parent=23 // pred_check
            _
          $region26: #{transformer_decoder.18} parent=23 // pred_check_branch
            %182 = sbr.rel (0) target = $region28
          $region27: #{transformer_decoder.18} parent=23 // pred_region
            // Predicated region
            $region29: #{transformer_decoder.18} parent=27 // pred_check
              _
            $region30: #{transformer_decoder.18} parent=27 // pred_check_branch
              %184 = sbr.rel target = $region32
            $region31: #{transformer_decoder.18} parent=27 // pred_region
              // Predicated region
              $region44: #{transformer_decoder.18} parent=31 // pred_check
                _
              $region45: #{transformer_decoder.18} parent=31 // pred_check_branch
                %230 = sbr.rel (0) target = $region47
              $region46: #{transformer_decoder.18} parent=31 // pred_region
                loop: start=0, step=1, limit=1
                $region48: #{transformer_decoder.18} parent=46 // loop_pre_header
                  _
                $region49: #{transformer_decoder.18} parent=46 // loop_header
                  %s232 = sphi 0, %s236
                  %p233 = scmp.ge.s32.totalorder %s232, 1
                  %s237 = sphi %s180, %s180
                  %s238 = sphi %s175, %s175
                $region50: #{transformer_decoder.18} parent=46 // loop_header_branch
                  %235 = sbr.rel (%p233) target = $region54
                $region51: #{transformer_decoder.18} parent=46 // loop_body
                  _
                $region52: #{transformer_decoder.18} parent=46 // loop_footer
                  %s236 = sadd.s32 1, %s232
                $region53: #{transformer_decoder.18} parent=46 // loop_footer_branch
                  %231 = sbr.rel target = $region49
                $region54: #{transformer_decoder.18} parent=46 // loop_exit
                  _
                %s240 = ssub.s32 16, 1
                loop: start=0, step=1, limit=1
                $region55: #{transformer_decoder.18} parent=46 // loop_pre_header
                  _
                $region56: #{transformer_decoder.18} parent=46 // loop_header
                  %s242 = sphi 0, %s246
                  %p243 = scmp.ge.s32.totalorder %s242, 1
                  %s247 = sphi %s180, %s180
                  %s248 = sphi %s175, %s175
                $region57: #{transformer_decoder.18} parent=46 // loop_header_branch
                  %245 = sbr.rel (%p243) target = $region61
                $region58: #{transformer_decoder.18} parent=46 // loop_body
                  %v249 = vld [vmem:[%s247] sm:%s240]
                  %250 = vst [vmem:[%s248] sm:%s240] %v249
                  %v251 = vld [vmem:[%s247 + $0xc] sm:%s240]
                  %252 = vst [vmem:[%s248 + $0x4] sm:%s240] %v251
                  %v253 = vld [vmem:[%s247 + $0x18] sm:%s240]
                  %254 = vst [vmem:[%s248 + $0x8] sm:%s240] %v253
                  %v255 = vld [vmem:[%s247 + $0x24] sm:%s240]
                  %256 = vst [vmem:[%s248 + $0xc] sm:%s240] %v255
                  %v257 = vld [vmem:[%s247 + $0x30] sm:%s240]
                  %258 = vst [vmem:[%s248 + $0x10] sm:%s240] %v257
                  %v259 = vld [vmem:[%s247 + $0x3c] sm:%s240]
                  %260 = vst [vmem:[%s248 + $0x14] sm:%s240] %v259
                  %v261 = vld [vmem:[%s247 + $0x48] sm:%s240]
                  %262 = vst [vmem:[%s248 + $0x18] sm:%s240] %v261
                  %v263 = vld [vmem:[%s247 + $0x54] sm:%s240]
                  %264 = vst [vmem:[%s248 + $0x1c] sm:%s240] %v263
                  %v265 = vld [vmem:[%s247 + $0x60] sm:%s240]
                  %266 = vst [vmem:[%s248 + $0x20] sm:%s240] %v265
                  %v267 = vld [vmem:[%s247 + $0x6c] sm:%s240]
                  %268 = vst [vmem:[%s248 + $0x24] sm:%s240] %v267
                  %v269 = vld [vmem:[%s247 + $0x78] sm:%s240]
                  %270 = vst [vmem:[%s248 + $0x28] sm:%s240] %v269
                  %v271 = vld [vmem:[%s247 + $0x84] sm:%s240]
                  %272 = vst [vmem:[%s248 + $0x2c] sm:%s240] %v271
                  %v273 = vld [vmem:[%s247 + $0x90] sm:%s240]
                  %274 = vst [vmem:[%s248 + $0x30] sm:%s240] %v273
                  %v275 = vld [vmem:[%s247 + $0x9c] sm:%s240]
                  %276 = vst [vmem:[%s248 + $0x34] sm:%s240] %v275
                  %v277 = vld [vmem:[%s247 + $0xa8] sm:%s240]
                  %278 = vst [vmem:[%s248 + $0x38] sm:%s240] %v277
                  %v279 = vld [vmem:[%s247 + $0xb4] sm:%s240]
                  %280 = vst [vmem:[%s248 + $0x3c] sm:%s240] %v279
                $region59: #{transformer_decoder.18} parent=46 // loop_footer
                  %s246 = sadd.s32 1, %s242
                $region60: #{transformer_decoder.18} parent=46 // loop_footer_branch
                  %241 = sbr.rel target = $region56
                $region61: #{transformer_decoder.18} parent=46 // loop_exit
                  _
              $region47: #{transformer_decoder.18} parent=31 // pred_fallthru
                _
            $region32: #{transformer_decoder.18} parent=27 // pred_fallthru
              _
            // Predicated region
            $region33: #{transformer_decoder.18} parent=27 // pred_check
              _
            $region34: #{transformer_decoder.18} parent=27 // pred_check_branch
              %186 = sbr.rel (0) target = $region36
            $region35: #{transformer_decoder.18} parent=27 // pred_region
              %s188 = ssub.s32 16, 1
              loop: start=0, step=1, limit=1
              $region37: #{transformer_decoder.18} parent=35 // loop_pre_header
                _
              $region38: #{transformer_decoder.18} parent=35 // loop_header
                %s190 = sphi 0, %s194
                %p191 = scmp.ge.s32.totalorder %s190, 1
                %s195 = sphi %s180, %s180
                %s196 = sphi %s175, %s175
              $region39: #{transformer_decoder.18} parent=35 // loop_header_branch
                %193 = sbr.rel (%p191) target = $region43
              $region40: #{transformer_decoder.18} parent=35 // loop_body
                %v197 = vld [vmem:[%s195] sm:%s188]
                %198 = vst [vmem:[%s196] sm:%s188] %v197
                %v199 = vld [vmem:[%s195 + $0xc] sm:%s188]
                %200 = vst [vmem:[%s196 + $0x4] sm:%s188] %v199
                %v201 = vld [vmem:[%s195 + $0x18] sm:%s188]
                %202 = vst [vmem:[%s196 + $0x8] sm:%s188] %v201
                %v203 = vld [vmem:[%s195 + $0x24] sm:%s188]
                %204 = vst [vmem:[%s196 + $0xc] sm:%s188] %v203
                %v205 = vld [vmem:[%s195 + $0x30] sm:%s188]
                %206 = vst [vmem:[%s196 + $0x10] sm:%s188] %v205
                %v207 = vld [vmem:[%s195 + $0x3c] sm:%s188]
                %208 = vst [vmem:[%s196 + $0x14] sm:%s188] %v207
                %v209 = vld [vmem:[%s195 + $0x48] sm:%s188]
                %210 = vst [vmem:[%s196 + $0x18] sm:%s188] %v209
                %v211 = vld [vmem:[%s195 + $0x54] sm:%s188]
                %212 = vst [vmem:[%s196 + $0x1c] sm:%s188] %v211
                %v213 = vld [vmem:[%s195 + $0x60] sm:%s188]
                %214 = vst [vmem:[%s196 + $0x20] sm:%s188] %v213
                %v215 = vld [vmem:[%s195 + $0x6c] sm:%s188]
                %216 = vst [vmem:[%s196 + $0x24] sm:%s188] %v215
                %v217 = vld [vmem:[%s195 + $0x78] sm:%s188]
                %218 = vst [vmem:[%s196 + $0x28] sm:%s188] %v217
                %v219 = vld [vmem:[%s195 + $0x84] sm:%s188]
                %220 = vst [vmem:[%s196 + $0x2c] sm:%s188] %v219
                %v221 = vld [vmem:[%s195 + $0x90] sm:%s188]
                %222 = vst [vmem:[%s196 + $0x30] sm:%s188] %v221
                %v223 = vld [vmem:[%s195 + $0x9c] sm:%s188]
                %224 = vst [vmem:[%s196 + $0x34] sm:%s188] %v223
                %v225 = vld [vmem:[%s195 + $0xa8] sm:%s188]
                %226 = vst [vmem:[%s196 + $0x38] sm:%s188] %v225
                %v227 = vld [vmem:[%s195 + $0xb4] sm:%s188]
                %228 = vst [vmem:[%s196 + $0x3c] sm:%s188] %v227
              $region41: #{transformer_decoder.18} parent=35 // loop_footer
                %s194 = sadd.s32 1, %s190
              $region42: #{transformer_decoder.18} parent=35 // loop_footer_branch
                %189 = sbr.rel target = $region38
              $region43: #{transformer_decoder.18} parent=35 // loop_exit
                _
            $region36: #{transformer_decoder.18} parent=27 // pred_fallthru
              _
          $region28: #{transformer_decoder.18} parent=23 // pred_fallthru
            _
          %281 = vnop
        $region24: #{transformer_decoder.18} parent=19 // pred_fallthru
          _
        // Predicated region
        $region62: #{transformer_decoder.18} parent=19 // pred_check
          %p282 = pneg %p104
        $region63: #{transformer_decoder.18} parent=19 // pred_check_branch
          %284 = sbr.rel (%p282) target = $region65
        $region64: #{transformer_decoder.18} parent=19 // pred_region
          %p285 = scmp.lt.s32.totalorder %s17, 2
          %s286 = scalar_select %p285, %s17, 2
          %s287 = scalar_lea.vmem %s2, %s286
        $region65: #{transformer_decoder.18} parent=19 // pred_fallthru
          _
      $region20: #{transformer_decoder.18} parent=5 // pred_fallthru
        _
      %p288 = scmp.le.s32.totalorder 1, %s9
      %p289 = scmp.lt.s32.totalorder %s9, 4
      %p290 = pnand %p288, %p289
      %p291 = pneg %p290
      // Predicated region
      $region66: #{transformer_decoder.18} parent=5 // pred_check
        _
      $region67: #{transformer_decoder.18} parent=5 // pred_check_branch
        %293 = sbr.rel (%p290) target = $region69
      $region68: #{transformer_decoder.18} parent=5 // pred_region
        %s294 = ssub.s32 %s9, 1
        %s295 = sand.u32 %s71, 1
        %s296 = sand.u32 %s71, 1
        %s297 = smul.addr %s296, 64
        %s298 = scalar_lea.vmem [#allocation3], %s297
        // Predicated region
        $region70: #{transformer_decoder.18} parent=68 // pred_check
          %p299 = pneg %p84
        $region71: #{transformer_decoder.18} parent=68 // pred_check_branch
          %301 = sbr.rel (%p299) target = $region73
        $region72: #{transformer_decoder.18} parent=68 // pred_region
          _
        $region73: #{transformer_decoder.18} parent=68 // pred_fallthru
          _
        %s302 = smul.u32 2, %s19
        %p303 = scmp.lt.s32.totalorder %s302, 1
        %s304 = scalar_select %p303, %s302, 1
        %p305 = scmp.lt.s32.totalorder %s21, 0
        %s306 = scalar_select %p305, %s21, 0
        %s307 = sadd.s32 %s306, %s304
        %s308 = smul.addr %s307, 4
        %s309 = scalar_lea.vmem %s0, %s308
        %p310 = pneg %p56
        %p311 = pneg %p53
        %s312 = sand.u32 %s71, 1
        %s313 = sand.u32 %s71, 1
        %s314 = smul.addr %s313, 64
        %s315 = scalar_lea.vmem [#allocation3], %s314
        %p316 = pneg %p84
        %p317 = pneg %p81
        %p318 = scmp.lt.s32.totalorder %s20, 2
        %s319 = scalar_select %p318, %s20, 2
        %s320 = scalar_lea.vmem %s2, %s319
        %p321 = pneg %p110
        %p322 = pneg %p107
        %p323 = pneg %p138
        %p324 = pneg %p135
        %s325 = sand.u32 %s125, 1
        %s326 = sand.u32 %s125, 1
        %s327 = smul.addr %s326, 8
        %s328 = scalar_lea.vmem [#allocation4], %s327
        %s329 = smul.u32 2, %s19
        %p330 = scmp.lt.s32.totalorder %s329, 1
        %s331 = scalar_select %p330, %s329, 1
        %p332 = scmp.lt.s32.totalorder %s21, 0
        %s333 = scalar_select %p332, %s21, 0
        %s334 = sadd.s32 %s333, %s331
        %s335 = smul.addr %s334, 4
        %s336 = scalar_lea.vmem %s0, %s335
        %s337 = smul.u32 2, %s19
        %s338 = smul.u32 16, %s21
        %p339 = scmp.lt.s32.totalorder %s20, 2
        %s340 = scalar_select %p339, %s20, 2
        %s341 = scalar_lea.vmem %s2, %s340
        %s342 = smul.u32 2, %s19
        %p344 = scmp.eq.s32.totalorder %s21, 0
        // Predicated region
        $region74: #{transformer_decoder.18} parent=68 // pred_check
          %p345 = pneg %p344
        $region75: #{transformer_decoder.18} parent=68 // pred_check_branch
          %347 = sbr.rel (%p345) target = $region77
        $region76: #{transformer_decoder.18} parent=68 // pred_region
          %348 = vst [vmem:[#allocation2] sm:$0xff] 0.0
          %349 = vst [vmem:[#allocation2 + $0x8] sm:$0xff] 0.0
        $region77: #{transformer_decoder.18} parent=68 // pred_fallthru
          _
        %v350 = vld [vmem:[#allocation2] sm:$0xff]
        %v351 = vld [vmem:[#allocation2 + $0x8] sm:$0xff]
        %v352 = vld [vmem:[%s336] sm:$0xf]
        %v353 = vld [vmem:[%s336 + $0x4] sm:$0xf]
        %v354 = vld [vmem:[%s298] sm:$0xf]
        %v355 = vld [vmem:[%s298 + $0x4] sm:$0xf]
        %v356 = vld [vmem:[%s298 + $0x8] sm:$0xf]
        %v357 = vld [vmem:[%s298 + $0xc] sm:$0xf]
        %v358 = vld [vmem:[%s298 + $0x10] sm:$0xf]
        %v359 = vld [vmem:[%s298 + $0x14] sm:$0xf]
        %v360 = vld [vmem:[%s298 + $0x18] sm:$0xf]
        %v361 = vld [vmem:[%s298 + $0x1c] sm:$0xf]
        %v362 = vld [vmem:[%s298 + $0x20] sm:$0xf]
        %v363 = vld [vmem:[%s298 + $0x24] sm:$0xf]
        %v364 = vld [vmem:[%s298 + $0x28] sm:$0xf]
        %v365 = vld [vmem:[%s298 + $0x2c] sm:$0xf]
        %v366 = vld [vmem:[%s298 + $0x30] sm:$0xf]
        %v367 = vld [vmem:[%s298 + $0x34] sm:$0xf]
        %v368 = vld [vmem:[%s298 + $0x38] sm:$0xf]
        %v369 = vld [vmem:[%s298 + $0x3c] sm:$0xf]
        %v372 = vunpack.c.l.b16 %v352
        %v373 = vunpack.c.l.b16 %v353
        %v374 = vpack.c.b16 %v373, %v372
        %v392 = vunpack.c.l.b16 %v354
        %v393 = vunpack.c.l.b16 %v355
        %v394 = vunpack.c.l.b16 %v356
        %v395 = vunpack.c.l.b16 %v357
        %v396 = vunpack.c.l.b16 %v358
        %v397 = vunpack.c.l.b16 %v359
        %v398 = vunpack.c.l.b16 %v360
        %v399 = vunpack.c.l.b16 %v361
        %v400 = vunpack.c.l.b16 %v362
        %v401 = vunpack.c.l.b16 %v363
        %v402 = vunpack.c.l.b16 %v364
        %v403 = vunpack.c.l.b16 %v365
        %v404 = vunpack.c.l.b16 %v366
        %v405 = vunpack.c.l.b16 %v367
        %v406 = vunpack.c.l.b16 %v368
        %v407 = vunpack.c.l.b16 %v369
        %v408 = vpack.c.b16 %v393, %v392
        %v409 = vpack.c.b16 %v395, %v394
        %v410 = vpack.c.b16 %v397, %v396
        %v411 = vpack.c.b16 %v399, %v398
        %v412 = vpack.c.b16 %v401, %v400
        %v413 = vpack.c.b16 %v403, %v402
        %v414 = vpack.c.b16 %v405, %v404
        %v415 = vpack.c.b16 %v407, %v406
        %424 = vmatprep.subr.bf16.mxu0 0
        %425 = vmatpush1.bf16.msra.mxu0 %v415
        %426 = vmatprep.subr.bf16.mxu0 0
        %427 = vmatpush1.bf16.msra.mxu0 %v414
        %428 = vmatprep.subr.bf16.mxu0 0
        %429 = vmatpush1.bf16.msra.mxu0 %v413
        %430 = vmatprep.subr.bf16.mxu0 0
        %431 = vmatpush1.bf16.msra.mxu0 %v412
        %432 = vmatprep.subr.bf16.mxu0 0
        %433 = vmatpush1.bf16.msra.mxu0 %v411
        %434 = vmatprep.subr.bf16.mxu0 0
        %435 = vmatpush1.bf16.msra.mxu0 %v410
        %436 = vmatprep.subr.bf16.mxu0 0
        %437 = vmatpush1.bf16.msra.mxu0 %v409
        %438 = vmatprep.subr.bf16.mxu0 0
        %439 = vmatpush1.bf16.msra.mxu0 %v408
        %440 = vmatprep.subr.bf16.mxu0 0
        %441 = vmatpush2.bf16.msra.mxu0 0
        %442 = vmatprep.subr.bf16.mxu0 0
        %443 = vmatpush2.bf16.msra.mxu0 0
        %444 = vmatprep.subr.bf16.mxu0 0
        %445 = vmatpush2.bf16.msra.mxu0 0
        %446 = vmatprep.subr.bf16.mxu0 0
        %447 = vmatpush2.bf16.msra.mxu0 0
        %448 = vmatprep.subr.bf16.mxu0 0
        %449 = vmatpush2.bf16.msra.mxu0 0
        %450 = vmatprep.subr.bf16.mxu0 0
        %451 = vmatpush2.bf16.msra.mxu0 0
        %452 = vmatprep.subr.bf16.mxu0 0
        %453 = vmatpush2.bf16.msra.mxu0 0
        %454 = vmatprep.subr.bf16.mxu0 0
        %455 = vmatpush2.bf16.msra.mxu0 0
        %456 = vmatprep.mubr.bf16.mxu0 0
        %457 = vmatmul.mubr.bf16.gmra.mxu0 %v374
        %v458 = vpop.f32.mrf.mxu0
        %v459 = vadd.f32 0.0, %v458
        %v460 = vpop.f32.mrf.mxu0
        %v461 = vpop.f32.mrf.mxu0
        %v462 = vadd.f32 0.0, %v461
        %v463 = vpop.f32.mrf.mxu0
        %464 = vdwg.mxu0
        %v465 = vadd.f32 %v350, %v459
        %v466 = vadd.f32 %v351, %v462
        %467 = vst [vmem:[#allocation2] sm:$0xff] %v465
        %468 = vst [vmem:[#allocation2 + $0x8] sm:$0xff] %v466
        // Predicated region
        $region78: #{transformer_decoder.18} parent=68 // pred_check
          %p469 = pneg %p344
        $region79: #{transformer_decoder.18} parent=68 // pred_check_branch
          %471 = sbr.rel (%p469) target = $region81
        $region80: #{transformer_decoder.18} parent=68 // pred_region
          %v472 = vld [vmem:[#allocation2] sm:$0xff]
          %v473 = vld [vmem:[#allocation2 + $0x8] sm:$0xff]
          %v474 = vld [vmem:[%s341] sm:$0x1]
          %v476 = vlaneseq
          %v477 = vshrl.u32 %v476, 7
          %v478 = vsub.s32 0, %v477
          %v479 = vrot.slane %v474, %v478
          %v481 = vadd.f32 %v472, %v479
          %v482 = vadd.f32 %v473, %v479
          %v483 = vpack.c.bf16 %v482, %v481
          %v485 = vunpack.c.l.b16 %v483
          %v486 = vunpack.c.h.b16 %v483
          %v487 = vpack.c.b16 %v485, %v485
          %v488 = vpack.c.b16 %v486, %v486
          %491 = vst [vmem:[%s328] sm:$0xf] %v487
          %492 = vst [vmem:[%s328 + $0x4] sm:$0xf] %v488
        $region81: #{transformer_decoder.18} parent=68 // pred_fallthru
          _
        %s493 = sand.u32 %s125, 1
        %s494 = sand.u32 %s125, 1
        %s495 = smul.addr %s494, 8
        %s496 = scalar_lea.vmem [#allocation4], %s495
        // Predicated region
        $region82: #{transformer_decoder.18} parent=68 // pred_check
          %p497 = pneg %p135
        $region83: #{transformer_decoder.18} parent=68 // pred_check_branch
          %499 = sbr.rel (%p497) target = $region85
        $region84: #{transformer_decoder.18} parent=68 // pred_region
          %s500 = smul.u32 2, %s19
          %s501 = smul.addr %s500, 3
          %s502 = sadd.s32 %s20, %s501
          %s503 = smul.addr %s502, 4
          %s504 = scalar_lea.vmem %s3, %s503
          // Predicated region
          $region86: #{transformer_decoder.18} parent=84 // pred_check
            _
          $region87: #{transformer_decoder.18} parent=84 // pred_check_branch
            %506 = sbr.rel (0) target = $region89
          $region88: #{transformer_decoder.18} parent=84 // pred_region
            // Predicated region
            $region90: #{transformer_decoder.18} parent=88 // pred_check
              _
            $region91: #{transformer_decoder.18} parent=88 // pred_check_branch
              %508 = sbr.rel target = $region93
            $region92: #{transformer_decoder.18} parent=88 // pred_region
              // Predicated region
              $region105: #{transformer_decoder.18} parent=92 // pred_check
                _
              $region106: #{transformer_decoder.18} parent=92 // pred_check_branch
                %526 = sbr.rel (0) target = $region108
              $region107: #{transformer_decoder.18} parent=92 // pred_region
                loop: start=0, step=1, limit=1
                $region109: #{transformer_decoder.18} parent=107 // loop_pre_header
                  _
                $region110: #{transformer_decoder.18} parent=107 // loop_header
                  %s528 = sphi 0, %s532
                  %p529 = scmp.ge.s32.totalorder %s528, 1
                  %s533 = sphi %s496, %s496
                  %s534 = sphi %s504, %s504
                $region111: #{transformer_decoder.18} parent=107 // loop_header_branch
                  %531 = sbr.rel (%p529) target = $region115
                $region112: #{transformer_decoder.18} parent=107 // loop_body
                  _
                $region113: #{transformer_decoder.18} parent=107 // loop_footer
                  %s532 = sadd.s32 1, %s528
                $region114: #{transformer_decoder.18} parent=107 // loop_footer_branch
                  %527 = sbr.rel target = $region110
                $region115: #{transformer_decoder.18} parent=107 // loop_exit
                  _
                %s536 = ssub.s32 16, 1
                loop: start=0, step=1, limit=1
                $region116: #{transformer_decoder.18} parent=107 // loop_pre_header
                  _
                $region117: #{transformer_decoder.18} parent=107 // loop_header
                  %s538 = sphi 0, %s542
                  %p539 = scmp.ge.s32.totalorder %s538, 1
                  %s543 = sphi %s496, %s496
                  %s544 = sphi %s504, %s504
                $region118: #{transformer_decoder.18} parent=107 // loop_header_branch
                  %541 = sbr.rel (%p539) target = $region122
                $region119: #{transformer_decoder.18} parent=107 // loop_body
                  %v545 = vld [vmem:[%s543] sm:%s536]
                  %546 = vst [vmem:[%s544] sm:%s536] %v545
                  %v547 = vld [vmem:[%s543 + $0x4] sm:%s536]
                  %548 = vst [vmem:[%s544 + $0xc] sm:%s536] %v547
                $region120: #{transformer_decoder.18} parent=107 // loop_footer
                  %s542 = sadd.s32 1, %s538
                $region121: #{transformer_decoder.18} parent=107 // loop_footer_branch
                  %537 = sbr.rel target = $region117
                $region122: #{transformer_decoder.18} parent=107 // loop_exit
                  _
              $region108: #{transformer_decoder.18} parent=92 // pred_fallthru
                _
            $region93: #{transformer_decoder.18} parent=88 // pred_fallthru
              _
            // Predicated region
            $region94: #{transformer_decoder.18} parent=88 // pred_check
              _
            $region95: #{transformer_decoder.18} parent=88 // pred_check_branch
              %510 = sbr.rel (0) target = $region97
            $region96: #{transformer_decoder.18} parent=88 // pred_region
              %s512 = ssub.s32 16, 1
              loop: start=0, step=1, limit=1
              $region98: #{transformer_decoder.18} parent=96 // loop_pre_header
                _
              $region99: #{transformer_decoder.18} parent=96 // loop_header
                %s514 = sphi 0, %s518
                %p515 = scmp.ge.s32.totalorder %s514, 1
                %s519 = sphi %s496, %s496
                %s520 = sphi %s504, %s504
              $region100: #{transformer_decoder.18} parent=96 // loop_header_branch
                %517 = sbr.rel (%p515) target = $region104
              $region101: #{transformer_decoder.18} parent=96 // loop_body
                %v521 = vld [vmem:[%s519] sm:%s512]
                %522 = vst [vmem:[%s520] sm:%s512] %v521
                %v523 = vld [vmem:[%s519 + $0x4] sm:%s512]
                %524 = vst [vmem:[%s520 + $0xc] sm:%s512] %v523
              $region102: #{transformer_decoder.18} parent=96 // loop_footer
                %s518 = sadd.s32 1, %s514
              $region103: #{transformer_decoder.18} parent=96 // loop_footer_branch
                %513 = sbr.rel target = $region99
              $region104: #{transformer_decoder.18} parent=96 // loop_exit
                _
            $region97: #{transformer_decoder.18} parent=88 // pred_fallthru
              _
          $region89: #{transformer_decoder.18} parent=84 // pred_fallthru
            _
          %549 = vnop
        $region85: #{transformer_decoder.18} parent=68 // pred_fallthru
          _
      $region69: #{transformer_decoder.18} parent=5 // pred_fallthru
        _
      %p550 = scmp.le.s32.totalorder 2, %s9
      // Predicated region
      $region123: #{transformer_decoder.18} parent=5 // pred_check
        %p551 = pneg %p550
      $region124: #{transformer_decoder.18} parent=5 // pred_check_branch
        %553 = sbr.rel (%p551) target = $region126
      $region125: #{transformer_decoder.18} parent=5 // pred_region
        %s554 = ssub.s32 %s9, 2
        // Predicated region
        $region127: #{transformer_decoder.18} parent=125 // pred_check
          %p555 = pneg %p141
        $region128: #{transformer_decoder.18} parent=125 // pred_check_branch
          %557 = sbr.rel (%p555) target = $region130
        $region129: #{transformer_decoder.18} parent=125 // pred_region
          %s558 = sand.u32 %s126, 1
          %s559 = sand.u32 %s126, 1
          %s560 = smul.addr %s559, 8
          %s561 = scalar_lea.vmem [#allocation4], %s560
        $region130: #{transformer_decoder.18} parent=125 // pred_fallthru
          _
      $region126: #{transformer_decoder.18} parent=5 // pred_fallthru
        _
    $region6: #{transformer_decoder.18} parent=1 // loop_footer
      %s13 = sadd.s32 1, %s9
    $region7: #{transformer_decoder.18} parent=1 // loop_footer_branch
      %8 = sbr.rel target = $region3
    $region8: #{transformer_decoder.18} parent=1 // loop_exit
      _

// kernel: transformer_decoder.19
$region0: #{transformer_decoder.19}
  #allocation0 [shape = 'u32[]', space=smem, size = 0x4, offset = 0x4, fixed_abs, tag = 'smem constant byte address 0x4 - core index']
  #allocation1 [shape = 'u32[144,128]{1,0:T(1,128)}', space=vmem, size = 0x12000, scoped, tag = 'internal scratch']
  %s0 = inlined_call_operand.vmem [shape: bf16[2,8,384], index: 0, kind: input, shape index: {}, may-alias: {0,1,2}]
  %s1 = inlined_call_operand.vmem [shape: bf16[2,8,384], index: 1, kind: input, shape index: {}, may-alias: {0,1,2}]
  %s2 = inlined_call_operand.vmem [shape: bf16[2,8,384], index: 2, kind: input, shape index: {}, may-alias: {0,1,2}]
  %s3 = inlined_call_operand.vmem [shape: bf16[2,8,128], index: 3, kind: output, shape index: {}]
  %s4 = sld [smem:[#allocation0]]
  $region45: #{transformer_decoder.19} parent=0
    _
  %s6 = ssub.s32 1, %s4
  %s7 = scalar_select 0, %s6, %s4
  loop: start=0, step=1, limit=4
  $region2: #{transformer_decoder.19} parent=0 // loop_pre_header
    _
  $region3: #{transformer_decoder.19} parent=0 // loop_header
    %s9 = sphi 0, %s13
    %p10 = scmp.ge.s32.totalorder %s9, 4
    %s16 = sphi 0, %s28
    %s17 = sphi 0, %s24
    %s18 = sphi 0, %s16
    %s19 = sphi 0, %s17
    %s20 = sphi 0, %s18
    %s21 = sphi 0, %s19
    %s33 = sphi 0, %s35
    %s36 = sphi 0, %s33
    %s37 = sphi 0, %s36
    %s53 = sphi 0, %s37
    %s59 = sphi 0, %s61
    %s62 = sphi 0, %s59
    %s63 = sphi 0, %s62
    %s79 = sphi 0, %s63
    %s85 = sphi 0, %s87
    %s88 = sphi 0, %s85
    %s89 = sphi 0, %s88
    %s105 = sphi 0, %s89
    %s113 = sphi 0, %s115
    %s116 = sphi 0, %s113
    %s117 = sphi 0, %s116
    %s133 = sphi 0, %s117
  $region4: #{transformer_decoder.19} parent=0 // loop_header_branch
    %12 = sbr.rel (%p10) target = $region8
  $region5: #{transformer_decoder.19} parent=0 // loop_body
    %s14 = ssub.s32 %s9, 1
    %s15 = ssub.s32 %s9, 2
    %s22 = sadd.s32 1, %s17
    %p23 = scmp.ge.s32.totalorder %s22, 1
    %s24 = scalar_select %p23, 0, %s22
    %s25 = sadd.s32 1, %s16
    %s26 = scalar_select %p23, %s25, %s16
    %p27 = scmp.ge.s32.totalorder %s26, 2
    %s28 = scalar_select %p27, 0, %s26
    %s29 = ssub.s32 %s16, %s28
    %s30 = ssub.s32 %s17, %s24
    %s31 = sor.u32 %s29, %s30
    %p32 = scmp.eq.s32.totalorder %s31, 0
    %s34 = sadd.s32 %s33, 1
    %s35 = scalar_select %p32, %s33, %s34
    %p38 = pneg %p32
    %p39 = scmp.eq.s32.totalorder %s9, 1
    %p40 = por %p38, %p39
    %p41 = scmp.ne.s32.totalorder %s33, %s36
    %p42 = scmp.eq.s32.totalorder %s9, 0
    %p43 = por %p41, %p42
    %p44 = scmp.ne.s32.totalorder %s33, %s36
    %p45 = scmp.eq.s32.totalorder %s14, 1
    %p46 = por %p44, %p45
    %p47 = scmp.ne.s32.totalorder %s36, %s37
    %p48 = scmp.eq.s32.totalorder %s14, 0
    %p49 = por %p47, %p48
    %p50 = scmp.ne.s32.totalorder %s36, %s37
    %p51 = scmp.eq.s32.totalorder %s15, 1
    %p52 = por %p50, %p51
    %p54 = scmp.ne.s32.totalorder %s37, %s53
    %p55 = scmp.eq.s32.totalorder %s15, 0
    %p56 = por %p54, %p55
    %s57 = ssub.s32 %s16, %s28
    %p58 = scmp.eq.s32.totalorder %s57, 0
    %s60 = sadd.s32 %s59, 1
    %s61 = scalar_select %p58, %s59, %s60
    %p64 = pneg %p58
    %p65 = scmp.eq.s32.totalorder %s9, 1
    %p66 = por %p64, %p65
    %p67 = scmp.ne.s32.totalorder %s59, %s62
    %p68 = scmp.eq.s32.totalorder %s9, 0
    %p69 = por %p67, %p68
    %p70 = scmp.ne.s32.totalorder %s59, %s62
    %p71 = scmp.eq.s32.totalorder %s14, 1
    %p72 = por %p70, %p71
    %p73 = scmp.ne.s32.totalorder %s62, %s63
    %p74 = scmp.eq.s32.totalorder %s14, 0
    %p75 = por %p73, %p74
    %p76 = scmp.ne.s32.totalorder %s62, %s63
    %p77 = scmp.eq.s32.totalorder %s15, 1
    %p78 = por %p76, %p77
    %p80 = scmp.ne.s32.totalorder %s63, %s79
    %p81 = scmp.eq.s32.totalorder %s15, 0
    %p82 = por %p80, %p81
    %s83 = ssub.s32 %s16, %s28
    %p84 = scmp.eq.s32.totalorder %s83, 0
    %s86 = sadd.s32 %s85, 1
    %s87 = scalar_select %p84, %s85, %s86
    %p90 = pneg %p84
    %p91 = scmp.eq.s32.totalorder %s9, 1
    %p92 = por %p90, %p91
    %p93 = scmp.ne.s32.totalorder %s85, %s88
    %p94 = scmp.eq.s32.totalorder %s9, 0
    %p95 = por %p93, %p94
    %p96 = scmp.ne.s32.totalorder %s85, %s88
    %p97 = scmp.eq.s32.totalorder %s14, 1
    %p98 = por %p96, %p97
    %p99 = scmp.ne.s32.totalorder %s88, %s89
    %p100 = scmp.eq.s32.totalorder %s14, 0
    %p101 = por %p99, %p100
    %p102 = scmp.ne.s32.totalorder %s88, %s89
    %p103 = scmp.eq.s32.totalorder %s15, 1
    %p104 = por %p102, %p103
    %p106 = scmp.ne.s32.totalorder %s89, %s105
    %p107 = scmp.eq.s32.totalorder %s15, 0
    %p108 = por %p106, %p107
    %s109 = ssub.s32 %s16, %s28
    %s110 = ssub.s32 %s17, %s24
    %s111 = sor.u32 %s109, %s110
    %p112 = scmp.eq.s32.totalorder %s111, 0
    %s114 = sadd.s32 %s113, 1
    %s115 = scalar_select %p112, %s113, %s114
    %p118 = pneg %p112
    %p119 = scmp.eq.s32.totalorder %s9, 1
    %p120 = por %p118, %p119
    %p121 = scmp.ne.s32.totalorder %s113, %s116
    %p122 = scmp.eq.s32.totalorder %s9, 0
    %p123 = por %p121, %p122
    %p124 = scmp.ne.s32.totalorder %s113, %s116
    %p125 = scmp.eq.s32.totalorder %s14, 1
    %p126 = por %p124, %p125
    %p127 = scmp.ne.s32.totalorder %s116, %s117
    %p128 = scmp.eq.s32.totalorder %s14, 0
    %p129 = por %p127, %p128
    %p130 = scmp.ne.s32.totalorder %s116, %s117
    %p131 = scmp.eq.s32.totalorder %s15, 1
    %p132 = por %p130, %p131
    %p134 = scmp.ne.s32.totalorder %s117, %s133
    %p135 = scmp.eq.s32.totalorder %s15, 0
    %p136 = por %p134, %p135
    %p137 = scmp.le.s32.totalorder 1, %s9
    %p138 = scmp.lt.s32.totalorder %s9, 3
    %p139 = pnand %p137, %p138
    %p140 = pneg %p139
    // Predicated region
    $region9: #{transformer_decoder.19} parent=5 // pred_check
      _
    $region10: #{transformer_decoder.19} parent=5 // pred_check_branch
      %142 = sbr.rel (%p139) target = $region12
    $region11: #{transformer_decoder.19} parent=5 // pred_region
      %s143 = ssub.s32 %s9, 1
    $region12: #{transformer_decoder.19} parent=5 // pred_fallthru
      _
    %p144 = scmp.lt.s32.totalorder %s9, 2
    // Predicated region
    $region13: #{transformer_decoder.19} parent=5 // pred_check
      %p145 = pneg %p144
    $region14: #{transformer_decoder.19} parent=5 // pred_check_branch
      %147 = sbr.rel (%p145) target = $region16
    $region15: #{transformer_decoder.19} parent=5 // pred_region
      // Predicated region
      $region17: #{transformer_decoder.19} parent=15 // pred_check
        %p148 = pneg %p43
      $region18: #{transformer_decoder.19} parent=15 // pred_check_branch
        %150 = sbr.rel (%p148) target = $region20
      $region19: #{transformer_decoder.19} parent=15 // pred_region
        %p151 = scmp.lt.s32.totalorder %s16, 1
        %s152 = scalar_select %p151, %s16, 1
        %p153 = scmp.lt.s32.totalorder %s17, 0
        %s154 = scalar_select %p153, %s17, 0
        %s155 = smul.addr %s154, 3
        %s156 = smul.addr %s152, 3
        %s157 = sadd.s32 %s155, %s156
        %s158 = smul.addr %s157, 4
        %s159 = scalar_lea.vmem %s0, %s158
      $region20: #{transformer_decoder.19} parent=15 // pred_fallthru
        _
      // Predicated region
      $region21: #{transformer_decoder.19} parent=15 // pred_check
        %p160 = pneg %p69
      $region22: #{transformer_decoder.19} parent=15 // pred_check_branch
        %162 = sbr.rel (%p160) target = $region24
      $region23: #{transformer_decoder.19} parent=15 // pred_region
        %p163 = scmp.lt.s32.totalorder %s16, 1
        %s164 = scalar_select %p163, %s16, 1
        %s165 = smul.addr %s164, 3
        %s166 = sadd.s32 1, %s165
        %s167 = smul.addr %s166, 4
        %s168 = scalar_lea.vmem %s1, %s167
      $region24: #{transformer_decoder.19} parent=15 // pred_fallthru
        _
      // Predicated region
      $region25: #{transformer_decoder.19} parent=15 // pred_check
        %p169 = pneg %p95
      $region26: #{transformer_decoder.19} parent=15 // pred_check_branch
        %171 = sbr.rel (%p169) target = $region28
      $region27: #{transformer_decoder.19} parent=15 // pred_region
        %p172 = scmp.lt.s32.totalorder %s16, 1
        %s173 = scalar_select %p172, %s16, 1
        %s174 = smul.addr %s173, 3
        %s175 = sadd.s32 2, %s174
        %s176 = smul.addr %s175, 4
        %s177 = scalar_lea.vmem %s2, %s176
      $region28: #{transformer_decoder.19} parent=15 // pred_fallthru
        _
    $region16: #{transformer_decoder.19} parent=5 // pred_fallthru
      _
    %p178 = scmp.le.s32.totalorder 1, %s9
    %p179 = scmp.lt.s32.totalorder %s9, 3
    %p180 = pnand %p178, %p179
    %p181 = pneg %p180
    // Predicated region
    $region29: #{transformer_decoder.19} parent=5 // pred_check
      _
    $region30: #{transformer_decoder.19} parent=5 // pred_check_branch
      %183 = sbr.rel (%p180) target = $region32
    $region31: #{transformer_decoder.19} parent=5 // pred_region
      %s184 = ssub.s32 %s9, 1
      %p185 = scmp.lt.s32.totalorder %s18, 1
      %s186 = scalar_select %p185, %s18, 1
      %p187 = scmp.lt.s32.totalorder %s19, 0
      %s188 = scalar_select %p187, %s19, 0
      %s189 = smul.addr %s188, 3
      %s190 = smul.addr %s186, 3
      %s191 = sadd.s32 %s189, %s190
      %s192 = smul.addr %s191, 4
      %s193 = scalar_lea.vmem %s0, %s192
      %p194 = pneg %p49
      %p195 = pneg %p46
      %p196 = scmp.lt.s32.totalorder %s18, 1
      %s197 = scalar_select %p196, %s18, 1
      %s198 = smul.addr %s197, 3
      %s199 = sadd.s32 1, %s198
      %s200 = smul.addr %s199, 4
      %s201 = scalar_lea.vmem %s1, %s200
      %p202 = pneg %p75
      %p203 = pneg %p72
      %p204 = scmp.lt.s32.totalorder %s18, 1
      %s205 = scalar_select %p204, %s18, 1
      %s206 = smul.addr %s205, 3
      %s207 = sadd.s32 2, %s206
      %s208 = smul.addr %s207, 4
      %s209 = scalar_lea.vmem %s2, %s208
      %p210 = pneg %p101
      %p211 = pneg %p98
      %p212 = pneg %p129
      %p213 = pneg %p126
      %p214 = scmp.lt.s32.totalorder %s18, 1
      %s215 = scalar_select %p214, %s18, 1
      %p216 = scmp.lt.s32.totalorder %s19, 0
      %s217 = scalar_select %p216, %s19, 0
      %s218 = sadd.s32 %s217, %s215
      %s219 = smul.addr %s218, 4
      %s220 = scalar_lea.vmem %s3, %s219
      %p221 = scmp.lt.s32.totalorder %s18, 1
      %s222 = scalar_select %p221, %s18, 1
      %p223 = scmp.lt.s32.totalorder %s19, 0
      %s224 = scalar_select %p223, %s19, 0
      %s225 = smul.addr %s224, 3
      %s226 = smul.addr %s222, 3
      %s227 = sadd.s32 %s225, %s226
      %s228 = smul.addr %s227, 4
      %s229 = scalar_lea.vmem %s0, %s228
      %p230 = scmp.lt.s32.totalorder %s18, 1
      %s231 = scalar_select %p230, %s18, 1
      %s232 = smul.addr %s231, 3
      %s233 = sadd.s32 1, %s232
      %s234 = smul.addr %s233, 4
      %s235 = scalar_lea.vmem %s1, %s234
      %p236 = scmp.lt.s32.totalorder %s18, 1
      %s237 = scalar_select %p236, %s18, 1
      %s238 = smul.addr %s237, 3
      %s239 = sadd.s32 2, %s238
      %s240 = smul.addr %s239, 4
      %s241 = scalar_lea.vmem %s2, %s240
      %p242 = scmp.lt.s32.totalorder %s18, 1
      %s243 = scalar_select %p242, %s18, 1
      %p244 = scmp.lt.s32.totalorder %s19, 0
      %s245 = scalar_select %p244, %s19, 0
      %s246 = sadd.s32 %s245, %s243
      %s247 = smul.addr %s246, 4
      %s248 = scalar_lea.vmem %s3, %s247
      %v250 = vld [vmem:[%s229] sm:$0xf]
      %v251 = vld [vmem:[%s235] sm:$0xf]
      %v252 = vld [vmem:[%s241] sm:$0xf]
      %v253 = vunpack.c.l.bf16 %v250
      %v254 = vmul.f32 %v253, 0.17677669
      %v255 = vpack.c.bf16 %v254, %v254
      %s256 = smul.u32 %s19, 8
      %v257 = vlaneseq
      %v258 = vshrl.u32 %v257, 7
      %v259 = vstv %s256
      %v260 = vadd.s32 %v258, %v259
      %v261 = vlaneseq
      %v262 = vand.u32 %v261, 127
      %vm263 = vcmp.le.s32.totalorder %v262, %v260
      %vm264 = vcmask 261120
      %v266 = vsel %vm264, %v255, 0
      %v269 = vsel %vm264, %v251, 0
      %271 = vmatprep.subr.bf16.mxu0 0
      %272 = vmatpush1.bf16.xpose.msra.mxu0 0
      %273 = vmatprep.subr.bf16.mxu0 0
      %274 = vmatpush1.bf16.xpose.msra.mxu0 0
      %275 = vmatprep.subr.bf16.mxu0 0
      %276 = vmatpush1.bf16.xpose.msra.mxu0 0
      %277 = vmatprep.subr.bf16.mxu0 0
      %278 = vmatpush1.bf16.xpose.msra.mxu0 0
      %279 = vmatprep.subr.bf16.mxu0 0
      %280 = vmatpush1.bf16.xpose.msra.mxu0 0
      %281 = vmatprep.subr.bf16.mxu0 0
      %282 = vmatpush1.bf16.xpose.msra.mxu0 0
      %283 = vmatprep.subr.bf16.mxu0 0
      %284 = vmatpush1.bf16.xpose.msra.mxu0 0
      %285 = vmatprep.subr.bf16.mxu0 0
      %286 = vmatpush1.bf16.xpose.msra.mxu0 %v269
      %287 = vmatprep.subr.bf16.mxu0 0
      %288 = vmatpush2.bf16.xpose.msra.mxu0 0
      %289 = vmatprep.subr.bf16.mxu0 0
      %290 = vmatpush2.bf16.xpose.msra.mxu0 0
      %291 = vmatprep.subr.bf16.mxu0 0
      %292 = vmatpush2.bf16.xpose.msra.mxu0 0
      %293 = vmatprep.subr.bf16.mxu0 0
      %294 = vmatpush2.bf16.xpose.msra.mxu0 0
      %295 = vmatprep.subr.bf16.mxu0 0
      %296 = vmatpush2.bf16.xpose.msra.mxu0 0
      %297 = vmatprep.subr.bf16.mxu0 0
      %298 = vmatpush2.bf16.xpose.msra.mxu0 0
      %299 = vmatprep.subr.bf16.mxu0 0
      %300 = vmatpush2.bf16.xpose.msra.mxu0 0
      %301 = vmatprep.subr.bf16.mxu0 0
      %302 = vmatpush2.bf16.xpose.msra.mxu0 0
      %303 = vmatprep.mubr.bf16.mxu0 0
      %304 = vmatmul.mubr.bf16.gmra.mxu0 %v266
      %v305 = vpop.f32.mrf.mxu0
      %v306 = vadd.f32 0.0, %v305
      %v307 = vpop.f32.mrf.mxu0
      %v308 = vpop.f32.mrf.mxu0
      %v309 = vpop.f32.mrf.mxu0
      %310 = vdwg.mxu0
      %v311 = vsel %vm263, %v306, -1e+30
      %vm312 = vcmask 64512
      %v313 = vsel %vm312, %v311, -inf
      %314 = vmax.xlane.f32.xlu0 %v313
      %v315 = vpop.xlane.xlu0 %314
      %v316 = vsub.f32 %v311, %v315
      %v317 = vmul.f32 %v316, 1.442695
      %v318 = vpow.pop %v317
      %v319 = vsel %vm312, %v318, 0.0
      %320 = vadd.xlane.f32.xlu0 %v319
      %v321 = vpop.xlane.xlu0 %320
      %v322 = vpack.c.bf16 %v318, %v318
      %v324 = vsel %vm312, %v322, 0
      %vm326 = vcmask 1043456
      %v328 = vsel %vm326, %v252, 0
      %330 = vmatprep.subr.bf16.mxu0 0
      %331 = vmatpush1.bf16.msra.mxu0 0
      %332 = vmatprep.subr.bf16.mxu0 0
      %333 = vmatpush1.bf16.msra.mxu0 0
      %334 = vmatprep.subr.bf16.mxu0 0
      %335 = vmatpush1.bf16.msra.mxu0 0
      %336 = vmatprep.subr.bf16.mxu0 0
      %337 = vmatpush1.bf16.msra.mxu0 0
      %338 = vmatprep.subr.bf16.mxu0 0
      %339 = vmatpush1.bf16.msra.mxu0 0
      %340 = vmatprep.subr.bf16.mxu0 0
      %341 = vmatpush1.bf16.msra.mxu0 0
      %342 = vmatprep.subr.bf16.mxu0 0
      %343 = vmatpush1.bf16.msra.mxu0 0
      %344 = vmatprep.subr.bf16.mxu0 0
      %345 = vmatpush1.bf16.msra.mxu0 %v328
      %346 = vmatprep.subr.bf16.mxu0 0
      %347 = vmatpush2.bf16.msra.mxu0 0
      %348 = vmatprep.subr.bf16.mxu0 0
      %349 = vmatpush2.bf16.msra.mxu0 0
      %350 = vmatprep.subr.bf16.mxu0 0
      %351 = vmatpush2.bf16.msra.mxu0 0
      %352 = vmatprep.subr.bf16.mxu0 0
      %353 = vmatpush2.bf16.msra.mxu0 0
      %354 = vmatprep.subr.bf16.mxu0 0
      %355 = vmatpush2.bf16.msra.mxu0 0
      %356 = vmatprep.subr.bf16.mxu0 0
      %357 = vmatpush2.bf16.msra.mxu0 0
      %358 = vmatprep.subr.bf16.mxu0 0
      %359 = vmatpush2.bf16.msra.mxu0 0
      %360 = vmatprep.subr.bf16.mxu0 0
      %361 = vmatpush2.bf16.msra.mxu0 0
      %362 = vmatprep.mubr.bf16.mxu0 0
      %363 = vmatmul.mubr.bf16.gmra.mxu0 %v324
      %v364 = vpop.f32.mrf.mxu0
      %v365 = vadd.f32 0.0, %v364
      %v366 = vpop.f32.mrf.mxu0
      %v367 = vpop.f32.mrf.mxu0
      %v368 = vpop.f32.mrf.mxu0
      %369 = vdwg.mxu0
      %v370 = vrcp.pop %v321
      %v371 = vmul.f32 %v365, %v370
      %v372 = vpack.c.bf16 %v371, %v371
      %vm373 = vcmask 257024
      %374 = vst.msk [vmem:[%s248] sm:$0xf] %vm373, %v372
      %376 = vrot.lane.b32.xlu0 %v255, 96
      %v377 = vpop.permute.xlu0 %376
      %v379 = vunpack.c.l.b16 %v251
      %v380 = vpack.c.b16 %v379, %v379
      %381 = vrot.lane.b32.xlu0 %v380, 96
      %v382 = vpop.permute.xlu0 %381
      %v384 = vsel %vm264, %v377, 0
      %v387 = vsel %vm264, %v382, 0
      %389 = vmatprep.subr.bf16.mxu0 0
      %390 = vmatpush1.bf16.xpose.msra.mxu0 0
      %391 = vmatprep.subr.bf16.mxu0 0
      %392 = vmatpush1.bf16.xpose.msra.mxu0 0
      %393 = vmatprep.subr.bf16.mxu0 0
      %394 = vmatpush1.bf16.xpose.msra.mxu0 0
      %395 = vmatprep.subr.bf16.mxu0 0
      %396 = vmatpush1.bf16.xpose.msra.mxu0 0
      %397 = vmatprep.subr.bf16.mxu0 0
      %398 = vmatpush1.bf16.xpose.msra.mxu0 0
      %399 = vmatprep.subr.bf16.mxu0 0
      %400 = vmatpush1.bf16.xpose.msra.mxu0 0
      %401 = vmatprep.subr.bf16.mxu0 0
      %402 = vmatpush1.bf16.xpose.msra.mxu0 0
      %403 = vmatprep.subr.bf16.mxu0 0
      %404 = vmatpush1.bf16.xpose.msra.mxu0 %v387
      %405 = vmatprep.subr.bf16.mxu0 0
      %406 = vmatpush2.bf16.xpose.msra.mxu0 0
      %407 = vmatprep.subr.bf16.mxu0 0
      %408 = vmatpush2.bf16.xpose.msra.mxu0 0
      %409 = vmatprep.subr.bf16.mxu0 0
      %410 = vmatpush2.bf16.xpose.msra.mxu0 0
      %411 = vmatprep.subr.bf16.mxu0 0
      %412 = vmatpush2.bf16.xpose.msra.mxu0 0
      %413 = vmatprep.subr.bf16.mxu0 0
      %414 = vmatpush2.bf16.xpose.msra.mxu0 0
      %415 = vmatprep.subr.bf16.mxu0 0
      %416 = vmatpush2.bf16.xpose.msra.mxu0 0
      %417 = vmatprep.subr.bf16.mxu0 0
      %418 = vmatpush2.bf16.xpose.msra.mxu0 0
      %419 = vmatprep.subr.bf16.mxu0 0
      %420 = vmatpush2.bf16.xpose.msra.mxu0 0
      %421 = vmatprep.mubr.bf16.mxu0 0
      %422 = vmatmul.mubr.bf16.gmra.mxu0 %v384
      %v423 = vpop.f32.mrf.mxu0
      %v424 = vadd.f32 0.0, %v423
      %v425 = vpop.f32.mrf.mxu0
      %v426 = vpop.f32.mrf.mxu0
      %v427 = vpop.f32.mrf.mxu0
      %428 = vdwg.mxu0
      %v429 = vsel %vm263, %v424, -1e+30
      %v430 = vsel %vm312, %v429, -inf
      %431 = vmax.xlane.f32.xlu0 %v430
      %v432 = vpop.xlane.xlu0 %431
      %v433 = vsub.f32 %v429, %v432
      %v434 = vmul.f32 %v433, 1.442695
      %v435 = vpow.pop %v434
      %v436 = vsel %vm312, %v435, 0.0
      %437 = vadd.xlane.f32.xlu0 %v436
      %v438 = vpop.xlane.xlu0 %437
      %v439 = vpack.c.bf16 %v435, %v435
      %v441 = vunpack.c.l.b16 %v252
      %v442 = vpack.c.b16 %v441, %v441
      %443 = vrot.lane.b32.xlu0 %v442, 96
      %v444 = vpop.permute.xlu0 %443
      %v446 = vsel %vm312, %v439, 0
      %v449 = vsel %vm326, %v444, 0
      %451 = vmatprep.subr.bf16.mxu0 0
      %452 = vmatpush1.bf16.msra.mxu0 0
      %453 = vmatprep.subr.bf16.mxu0 0
      %454 = vmatpush1.bf16.msra.mxu0 0
      %455 = vmatprep.subr.bf16.mxu0 0
      %456 = vmatpush1.bf16.msra.mxu0 0
      %457 = vmatprep.subr.bf16.mxu0 0
      %458 = vmatpush1.bf16.msra.mxu0 0
      %459 = vmatprep.subr.bf16.mxu0 0
      %460 = vmatpush1.bf16.msra.mxu0 0
      %461 = vmatprep.subr.bf16.mxu0 0
      %462 = vmatpush1.bf16.msra.mxu0 0
      %463 = vmatprep.subr.bf16.mxu0 0
      %464 = vmatpush1.bf16.msra.mxu0 0
      %465 = vmatprep.subr.bf16.mxu0 0
      %466 = vmatpush1.bf16.msra.mxu0 %v449
      %467 = vmatprep.subr.bf16.mxu0 0
      %468 = vmatpush2.bf16.msra.mxu0 0
      %469 = vmatprep.subr.bf16.mxu0 0
      %470 = vmatpush2.bf16.msra.mxu0 0
      %471 = vmatprep.subr.bf16.mxu0 0
      %472 = vmatpush2.bf16.msra.mxu0 0
      %473 = vmatprep.subr.bf16.mxu0 0
      %474 = vmatpush2.bf16.msra.mxu0 0
      %475 = vmatprep.subr.bf16.mxu0 0
      %476 = vmatpush2.bf16.msra.mxu0 0
      %477 = vmatprep.subr.bf16.mxu0 0
      %478 = vmatpush2.bf16.msra.mxu0 0
      %479 = vmatprep.subr.bf16.mxu0 0
      %480 = vmatpush2.bf16.msra.mxu0 0
      %481 = vmatprep.subr.bf16.mxu0 0
      %482 = vmatpush2.bf16.msra.mxu0 0
      %483 = vmatprep.mubr.bf16.mxu0 0
      %484 = vmatmul.mubr.bf16.gmra.mxu0 %v446
      %v485 = vpop.f32.mrf.mxu0
      %v486 = vadd.f32 0.0, %v485
      %v487 = vpop.f32.mrf.mxu0
      %v488 = vpop.f32.mrf.mxu0
      %v489 = vpop.f32.mrf.mxu0
      %490 = vdwg.mxu0
      %v491 = vrcp.pop %v438
      %v492 = vmul.f32 %v486, %v491
      %v493 = vpack.c.bf16 %v492, %v492
      %v495 = vunpack.c.l.b16 %v493
      %v496 = vpack.c.b16 %v495, %v495
      %497 = vrot.lane.b32.xlu0 %v496, 32
      %v498 = vpop.permute.xlu0 %497
      %vm500 = vcmask 519424
      %501 = vst.msk [vmem:[%s248] sm:$0xf] %vm500, %v498
      %502 = vrot.lane.b32.xlu0 %v255, 64
      %v503 = vpop.permute.xlu0 %502
      %504 = vrot.lane.b32.xlu0 %v380, 64
      %v505 = vpop.permute.xlu0 %504
      %v507 = vsel %vm264, %v503, 0
      %v510 = vsel %vm264, %v505, 0
      %512 = vmatprep.subr.bf16.mxu0 0
      %513 = vmatpush1.bf16.xpose.msra.mxu0 0
      %514 = vmatprep.subr.bf16.mxu0 0
      %515 = vmatpush1.bf16.xpose.msra.mxu0 0
      %516 = vmatprep.subr.bf16.mxu0 0
      %517 = vmatpush1.bf16.xpose.msra.mxu0 0
      %518 = vmatprep.subr.bf16.mxu0 0
      %519 = vmatpush1.bf16.xpose.msra.mxu0 0
      %520 = vmatprep.subr.bf16.mxu0 0
      %521 = vmatpush1.bf16.xpose.msra.mxu0 0
      %522 = vmatprep.subr.bf16.mxu0 0
      %523 = vmatpush1.bf16.xpose.msra.mxu0 0
      %524 = vmatprep.subr.bf16.mxu0 0
      %525 = vmatpush1.bf16.xpose.msra.mxu0 0
      %526 = vmatprep.subr.bf16.mxu0 0
      %527 = vmatpush1.bf16.xpose.msra.mxu0 %v510
      %528 = vmatprep.subr.bf16.mxu0 0
      %529 = vmatpush2.bf16.xpose.msra.mxu0 0
      %530 = vmatprep.subr.bf16.mxu0 0
      %531 = vmatpush2.bf16.xpose.msra.mxu0 0
      %532 = vmatprep.subr.bf16.mxu0 0
      %533 = vmatpush2.bf16.xpose.msra.mxu0 0
      %534 = vmatprep.subr.bf16.mxu0 0
      %535 = vmatpush2.bf16.xpose.msra.mxu0 0
      %536 = vmatprep.subr.bf16.mxu0 0
      %537 = vmatpush2.bf16.xpose.msra.mxu0 0
      %538 = vmatprep.subr.bf16.mxu0 0
      %539 = vmatpush2.bf16.xpose.msra.mxu0 0
      %540 = vmatprep.subr.bf16.mxu0 0
      %541 = vmatpush2.bf16.xpose.msra.mxu0 0
      %542 = vmatprep.subr.bf16.mxu0 0
      %543 = vmatpush2.bf16.xpose.msra.mxu0 0
      %544 = vmatprep.mubr.bf16.mxu0 0
      %545 = vmatmul.mubr.bf16.gmra.mxu0 %v507
      %v546 = vpop.f32.mrf.mxu0
      %v547 = vadd.f32 0.0, %v546
      %v548 = vpop.f32.mrf.mxu0
      %v549 = vpop.f32.mrf.mxu0
      %v550 = vpop.f32.mrf.mxu0
      %551 = vdwg.mxu0
      %v552 = vsel %vm263, %v547, -1e+30
      %v553 = vsel %vm312, %v552, -inf
      %554 = vmax.xlane.f32.xlu0 %v553
      %v555 = vpop.xlane.xlu0 %554
      %v556 = vsub.f32 %v552, %v555
      %v557 = vmul.f32 %v556, 1.442695
      %v558 = vpow.pop %v557
      %v559 = vsel %vm312, %v558, 0.0
      %560 = vadd.xlane.f32.xlu0 %v559
      %v561 = vpop.xlane.xlu0 %560
      %v562 = vpack.c.bf16 %v558, %v558
      %563 = vrot.lane.b32.xlu0 %v442, 64
      %v564 = vpop.permute.xlu0 %563
      %v566 = vsel %vm312, %v562, 0
      %v569 = vsel %vm326, %v564, 0
      %571 = vmatprep.subr.bf16.mxu0 0
      %572 = vmatpush1.bf16.msra.mxu0 0
      %573 = vmatprep.subr.bf16.mxu0 0
      %574 = vmatpush1.bf16.msra.mxu0 0
      %575 = vmatprep.subr.bf16.mxu0 0
      %576 = vmatpush1.bf16.msra.mxu0 0
      %577 = vmatprep.subr.bf16.mxu0 0
      %578 = vmatpush1.bf16.msra.mxu0 0
      %579 = vmatprep.subr.bf16.mxu0 0
      %580 = vmatpush1.bf16.msra.mxu0 0
      %581 = vmatprep.subr.bf16.mxu0 0
      %582 = vmatpush1.bf16.msra.mxu0 0
      %583 = vmatprep.subr.bf16.mxu0 0
      %584 = vmatpush1.bf16.msra.mxu0 0
      %585 = vmatprep.subr.bf16.mxu0 0
      %586 = vmatpush1.bf16.msra.mxu0 %v569
      %587 = vmatprep.subr.bf16.mxu0 0
      %588 = vmatpush2.bf16.msra.mxu0 0
      %589 = vmatprep.subr.bf16.mxu0 0
      %590 = vmatpush2.bf16.msra.mxu0 0
      %591 = vmatprep.subr.bf16.mxu0 0
      %592 = vmatpush2.bf16.msra.mxu0 0
      %593 = vmatprep.subr.bf16.mxu0 0
      %594 = vmatpush2.bf16.msra.mxu0 0
      %595 = vmatprep.subr.bf16.mxu0 0
      %596 = vmatpush2.bf16.msra.mxu0 0
      %597 = vmatprep.subr.bf16.mxu0 0
      %598 = vmatpush2.bf16.msra.mxu0 0
      %599 = vmatprep.subr.bf16.mxu0 0
      %600 = vmatpush2.bf16.msra.mxu0 0
      %601 = vmatprep.subr.bf16.mxu0 0
      %602 = vmatpush2.bf16.msra.mxu0 0
      %603 = vmatprep.mubr.bf16.mxu0 0
      %604 = vmatmul.mubr.bf16.gmra.mxu0 %v566
      %v605 = vpop.f32.mrf.mxu0
      %v606 = vadd.f32 0.0, %v605
      %v607 = vpop.f32.mrf.mxu0
      %v608 = vpop.f32.mrf.mxu0
      %v609 = vpop.f32.mrf.mxu0
      %610 = vdwg.mxu0
      %v611 = vrcp.pop %v561
      %v612 = vmul.f32 %v606, %v611
      %v613 = vpack.c.bf16 %v612, %v612
      %v615 = vunpack.c.l.b16 %v613
      %v616 = vpack.c.b16 %v615, %v615
      %617 = vrot.lane.b32.xlu0 %v616, 64
      %v618 = vpop.permute.xlu0 %617
      %vm620 = vcmask 781824
      %621 = vst.msk [vmem:[%s248] sm:$0xf] %vm620, %v618
      %622 = vrot.lane.b32.xlu0 %v255, 32
      %v623 = vpop.permute.xlu0 %622
      %624 = vrot.lane.b32.xlu0 %v380, 32
      %v625 = vpop.permute.xlu0 %624
      %v627 = vsel %vm264, %v623, 0
      %v630 = vsel %vm264, %v625, 0
      %632 = vmatprep.subr.bf16.mxu0 0
      %633 = vmatpush1.bf16.xpose.msra.mxu0 0
      %634 = vmatprep.subr.bf16.mxu0 0
      %635 = vmatpush1.bf16.xpose.msra.mxu0 0
      %636 = vmatprep.subr.bf16.mxu0 0
      %637 = vmatpush1.bf16.xpose.msra.mxu0 0
      %638 = vmatprep.subr.bf16.mxu0 0
      %639 = vmatpush1.bf16.xpose.msra.mxu0 0
      %640 = vmatprep.subr.bf16.mxu0 0
      %641 = vmatpush1.bf16.xpose.msra.mxu0 0
      %642 = vmatprep.subr.bf16.mxu0 0
      %643 = vmatpush1.bf16.xpose.msra.mxu0 0
      %644 = vmatprep.subr.bf16.mxu0 0
      %645 = vmatpush1.bf16.xpose.msra.mxu0 0
      %646 = vmatprep.subr.bf16.mxu0 0
      %647 = vmatpush1.bf16.xpose.msra.mxu0 %v630
      %648 = vmatprep.subr.bf16.mxu0 0
      %649 = vmatpush2.bf16.xpose.msra.mxu0 0
      %650 = vmatprep.subr.bf16.mxu0 0
      %651 = vmatpush2.bf16.xpose.msra.mxu0 0
      %652 = vmatprep.subr.bf16.mxu0 0
      %653 = vmatpush2.bf16.xpose.msra.mxu0 0
      %654 = vmatprep.subr.bf16.mxu0 0
      %655 = vmatpush2.bf16.xpose.msra.mxu0 0
      %656 = vmatprep.subr.bf16.mxu0 0
      %657 = vmatpush2.bf16.xpose.msra.mxu0 0
      %658 = vmatprep.subr.bf16.mxu0 0
      %659 = vmatpush2.bf16.xpose.msra.mxu0 0
      %660 = vmatprep.subr.bf16.mxu0 0
      %661 = vmatpush2.bf16.xpose.msra.mxu0 0
      %662 = vmatprep.subr.bf16.mxu0 0
      %663 = vmatpush2.bf16.xpose.msra.mxu0 0
      %664 = vmatprep.mubr.bf16.mxu0 0
      %665 = vmatmul.mubr.bf16.gmra.mxu0 %v627
      %v666 = vpop.f32.mrf.mxu0
      %v667 = vadd.f32 0.0, %v666
      %v668 = vpop.f32.mrf.mxu0
      %v669 = vpop.f32.mrf.mxu0
      %v670 = vpop.f32.mrf.mxu0
      %671 = vdwg.mxu0
      %v672 = vsel %vm263, %v667, -1e+30
      %v673 = vsel %vm312, %v672, -inf
      %674 = vmax.xlane.f32.xlu0 %v673
      %v675 = vpop.xlane.xlu0 %674
      %v676 = vsub.f32 %v672, %v675
      %v677 = vmul.f32 %v676, 1.442695
      %v678 = vpow.pop %v677
      %v679 = vsel %vm312, %v678, 0.0
      %680 = vadd.xlane.f32.xlu0 %v679
      %v681 = vpop.xlane.xlu0 %680
      %v682 = vpack.c.bf16 %v678, %v678
      %683 = vrot.lane.b32.xlu0 %v442, 32
      %v684 = vpop.permute.xlu0 %683
      %v686 = vsel %vm312, %v682, 0
      %v689 = vsel %vm326, %v684, 0
      %691 = vmatprep.subr.bf16.mxu0 0
      %692 = vmatpush1.bf16.msra.mxu0 0
      %693 = vmatprep.subr.bf16.mxu0 0
      %694 = vmatpush1.bf16.msra.mxu0 0
      %695 = vmatprep.subr.bf16.mxu0 0
      %696 = vmatpush1.bf16.msra.mxu0 0
      %697 = vmatprep.subr.bf16.mxu0 0
      %698 = vmatpush1.bf16.msra.mxu0 0
      %699 = vmatprep.subr.bf16.mxu0 0
      %700 = vmatpush1.bf16.msra.mxu0 0
      %701 = vmatprep.subr.bf16.mxu0 0
      %702 = vmatpush1.bf16.msra.mxu0 0
      %703 = vmatprep.subr.bf16.mxu0 0
      %704 = vmatpush1.bf16.msra.mxu0 0
      %705 = vmatprep.subr.bf16.mxu0 0
      %706 = vmatpush1.bf16.msra.mxu0 %v689
      %707 = vmatprep.subr.bf16.mxu0 0
      %708 = vmatpush2.bf16.msra.mxu0 0
      %709 = vmatprep.subr.bf16.mxu0 0
      %710 = vmatpush2.bf16.msra.mxu0 0
      %711 = vmatprep.subr.bf16.mxu0 0
      %712 = vmatpush2.bf16.msra.mxu0 0
      %713 = vmatprep.subr.bf16.mxu0 0
      %714 = vmatpush2.bf16.msra.mxu0 0
      %715 = vmatprep.subr.bf16.mxu0 0
      %716 = vmatpush2.bf16.msra.mxu0 0
      %717 = vmatprep.subr.bf16.mxu0 0
      %718 = vmatpush2.bf16.msra.mxu0 0
      %719 = vmatprep.subr.bf16.mxu0 0
      %720 = vmatpush2.bf16.msra.mxu0 0
      %721 = vmatprep.subr.bf16.mxu0 0
      %722 = vmatpush2.bf16.msra.mxu0 0
      %723 = vmatprep.mubr.bf16.mxu0 0
      %724 = vmatmul.mubr.bf16.gmra.mxu0 %v686
      %v725 = vpop.f32.mrf.mxu0
      %v726 = vadd.f32 0.0, %v725
      %v727 = vpop.f32.mrf.mxu0
      %v728 = vpop.f32.mrf.mxu0
      %v729 = vpop.f32.mrf.mxu0
      %730 = vdwg.mxu0
      %v731 = vrcp.pop %v681
      %v732 = vmul.f32 %v726, %v731
      %v733 = vpack.c.bf16 %v732, %v732
      %v735 = vunpack.c.l.b16 %v733
      %v736 = vpack.c.b16 %v735, %v735
      %737 = vrot.lane.b32.xlu0 %v736, 96
      %v738 = vpop.permute.xlu0 %737
      %vm740 = vcmask 1044224
      %741 = vst.msk [vmem:[%s248] sm:$0xf] %vm740, %v738
      %p742 = scmp.lt.s32.totalorder %s18, 1
      %s743 = scalar_select %p742, %s18, 1
      %p744 = scmp.lt.s32.totalorder %s19, 0
      %s745 = scalar_select %p744, %s19, 0
      %s746 = sadd.s32 %s745, %s743
      %s747 = smul.addr %s746, 4
      %s748 = scalar_lea.vmem %s3, %s747
      // Predicated region
      $region33: #{transformer_decoder.19} parent=31 // pred_check
        %p749 = pneg %p126
      $region34: #{transformer_decoder.19} parent=31 // pred_check_branch
        %751 = sbr.rel (%p749) target = $region36
      $region35: #{transformer_decoder.19} parent=31 // pred_region
        _
      $region36: #{transformer_decoder.19} parent=31 // pred_fallthru
        _
    $region32: #{transformer_decoder.19} parent=5 // pred_fallthru
      _
    %p752 = scmp.le.s32.totalorder 2, %s9
    // Predicated region
    $region37: #{transformer_decoder.19} parent=5 // pred_check
      %p753 = pneg %p752
    $region38: #{transformer_decoder.19} parent=5 // pred_check_branch
      %755 = sbr.rel (%p753) target = $region40
    $region39: #{transformer_decoder.19} parent=5 // pred_region
      %s756 = ssub.s32 %s9, 2
      // Predicated region
      $region41: #{transformer_decoder.19} parent=39 // pred_check
        %p757 = pneg %p132
      $region42: #{transformer_decoder.19} parent=39 // pred_check_branch
        %759 = sbr.rel (%p757) target = $region44
      $region43: #{transformer_decoder.19} parent=39 // pred_region
        %p760 = scmp.lt.s32.totalorder %s20, 1
        %s761 = scalar_select %p760, %s20, 1
        %p762 = scmp.lt.s32.totalorder %s21, 0
        %s763 = scalar_select %p762, %s21, 0
        %s764 = sadd.s32 %s763, %s761
        %s765 = smul.addr %s764, 4
        %s766 = scalar_lea.vmem %s3, %s765
      $region44: #{transformer_decoder.19} parent=39 // pred_fallthru
        _
    $region40: #{transformer_decoder.19} parent=5 // pred_fallthru
      _
  $region6: #{transformer_decoder.19} parent=0 // loop_footer
    %s13 = sadd.s32 1, %s9
  $region7: #{transformer_decoder.19} parent=0 // loop_footer_branch
    %8 = sbr.rel target = $region3
  $region8: #{transformer_decoder.19} parent=0 // loop_exit
    _

// kernel: transformer_decoder.22
$region0: #{transformer_decoder.22}
  #allocation0 [shape = 'u32[]', space=smem, size = 0x4, offset = 0x4, fixed_abs, tag = 'smem constant byte address 0x4 - core index']
  #allocation1 [shape = 'u32[144,128]{1,0:T(1,128)}', space=vmem, size = 0x12000, scoped, tag = 'internal scratch']
  #allocation2 [shape = 'f32[20,256]{1,0:T(8,128)}', space=vmem, size = 0x6000, scoped, tag = 'scratch operand']
  %s0 = inlined_call_operand.vmem [shape: bf16[20,128], index: 0, kind: input, shape index: {}]
  %s1 = inlined_call_operand.vmem [shape: bf16[128,256], index: 1, kind: input, shape index: {}]
  %s2 = inlined_call_operand.vmem [shape: f32[1,256], index: 2, kind: input, shape index: {}]
  %s3 = inlined_call_operand.vmem [shape: bf16[20,256], index: 3, kind: output, shape index: {}]
  %s4 = sld [smem:[#allocation0]]
  $region30: #{transformer_decoder.22} parent=0
    _
  %s6 = ssub.s32 1, %s4
  %s7 = scalar_select 0, %s6, %s4
  // Predicated region
  $region2: #{transformer_decoder.22} parent=0 // pred_check
    _
  $region3: #{transformer_decoder.22} parent=0 // pred_check_branch
    %9 = sbr.rel (0) target = $region5
  $region4: #{transformer_decoder.22} parent=0 // pred_region
    _
  $region5: #{transformer_decoder.22} parent=0 // pred_fallthru
    _
  // Predicated region
  $region6: #{transformer_decoder.22} parent=0 // pred_check
    _
  $region7: #{transformer_decoder.22} parent=0 // pred_check_branch
    %11 = sbr.rel (0) target = $region9
  $region8: #{transformer_decoder.22} parent=0 // pred_region
    _
  $region9: #{transformer_decoder.22} parent=0 // pred_fallthru
    _
  // Predicated region
  $region10: #{transformer_decoder.22} parent=0 // pred_check
    _
  $region11: #{transformer_decoder.22} parent=0 // pred_check_branch
    %13 = sbr.rel (0) target = $region13
  $region12: #{transformer_decoder.22} parent=0 // pred_region
    _
  $region13: #{transformer_decoder.22} parent=0 // pred_fallthru
    _
  %p15 = scmp.eq.s32.totalorder 0, 0
  // Predicated region
  $region14: #{transformer_decoder.22} parent=0 // pred_check
    %p16 = pneg %p15
  $region15: #{transformer_decoder.22} parent=0 // pred_check_branch
    %18 = sbr.rel (%p16) target = $region17
  $region16: #{transformer_decoder.22} parent=0 // pred_region
    %19 = vst [vmem:[#allocation2] sm:$0xff] 0.0
    %20 = vst [vmem:[#allocation2 + $0x8] sm:$0xff] 0.0
    %21 = vst [vmem:[#allocation2 + $0x10] sm:$0xff] 0.0
    %22 = vst [vmem:[#allocation2 + $0x18] sm:$0xff] 0.0
    %23 = vst [vmem:[#allocation2 + $0x20] sm:$0xf] 0.0
    %24 = vst [vmem:[#allocation2 + $0x28] sm:$0xf] 0.0
  $region17: #{transformer_decoder.22} parent=0 // pred_fallthru
    _
  %v25 = vld [vmem:[#allocation2] sm:$0xff]
  %v26 = vld [vmem:[#allocation2 + $0x8] sm:$0xff]
  %v27 = vld [vmem:[#allocation2 + $0x10] sm:$0xff]
  %v28 = vld [vmem:[#allocation2 + $0x18] sm:$0xff]
  %v29 = vld [vmem:[#allocation2 + $0x20] sm:$0xf]
  %v30 = vld [vmem:[#allocation2 + $0x28] sm:$0xf]
  %v31 = vld [vmem:[%s0] sm:$0xf]
  %v32 = vld [vmem:[%s0 + $0x4] sm:$0xf]
  %v33 = vld [vmem:[%s0 + $0x8] sm:$0x3]
  %v34 = vld [vmem:[%s1] sm:$0xff]
  %v35 = vld [vmem:[%s1 + $0x8] sm:$0xff]
  %v36 = vld [vmem:[%s1 + $0x10] sm:$0xff]
  %v37 = vld [vmem:[%s1 + $0x18] sm:$0xff]
  %v38 = vld [vmem:[%s1 + $0x20] sm:$0xff]
  %v39 = vld [vmem:[%s1 + $0x28] sm:$0xff]
  %v40 = vld [vmem:[%s1 + $0x30] sm:$0xff]
  %v41 = vld [vmem:[%s1 + $0x38] sm:$0xff]
  %v42 = vld [vmem:[%s1 + $0x40] sm:$0xff]
  %v43 = vld [vmem:[%s1 + $0x48] sm:$0xff]
  %v44 = vld [vmem:[%s1 + $0x50] sm:$0xff]
  %v45 = vld [vmem:[%s1 + $0x58] sm:$0xff]
  %v46 = vld [vmem:[%s1 + $0x60] sm:$0xff]
  %v47 = vld [vmem:[%s1 + $0x68] sm:$0xff]
  %v48 = vld [vmem:[%s1 + $0x70] sm:$0xff]
  %v49 = vld [vmem:[%s1 + $0x78] sm:$0xff]
  %v53 = vunpack.c.l.b16 %v31
  %v54 = vunpack.c.l.b16 %v32
  %v55 = vunpack.c.l.b16 %v33
  %v56 = vpack.c.b16 %v54, %v53
  %v57 = vpack.c.b16 %v55, %v55
  %v76 = vunpack.c.l.b16 %v34
  %v77 = vunpack.c.h.b16 %v34
  %v78 = vunpack.c.l.b16 %v35
  %v79 = vunpack.c.h.b16 %v35
  %v80 = vunpack.c.l.b16 %v36
  %v81 = vunpack.c.h.b16 %v36
  %v82 = vunpack.c.l.b16 %v37
  %v83 = vunpack.c.h.b16 %v37
  %v84 = vunpack.c.l.b16 %v38
  %v85 = vunpack.c.h.b16 %v38
  %v86 = vunpack.c.l.b16 %v39
  %v87 = vunpack.c.h.b16 %v39
  %v88 = vunpack.c.l.b16 %v40
  %v89 = vunpack.c.h.b16 %v40
  %v90 = vunpack.c.l.b16 %v41
  %v91 = vunpack.c.h.b16 %v41
  %v92 = vunpack.c.l.b16 %v42
  %v93 = vunpack.c.h.b16 %v42
  %v94 = vunpack.c.l.b16 %v43
  %v95 = vunpack.c.h.b16 %v43
  %v96 = vunpack.c.l.b16 %v44
  %v97 = vunpack.c.h.b16 %v44
  %v98 = vunpack.c.l.b16 %v45
  %v99 = vunpack.c.h.b16 %v45
  %v100 = vunpack.c.l.b16 %v46
  %v101 = vunpack.c.h.b16 %v46
  %v102 = vunpack.c.l.b16 %v47
  %v103 = vunpack.c.h.b16 %v47
  %v104 = vunpack.c.l.b16 %v48
  %v105 = vunpack.c.h.b16 %v48
  %v106 = vunpack.c.l.b16 %v49
  %v107 = vunpack.c.h.b16 %v49
  %v108 = vpack.c.b16 %v78, %v76
  %v109 = vpack.c.b16 %v79, %v77
  %v110 = vpack.c.b16 %v82, %v80
  %v111 = vpack.c.b16 %v83, %v81
  %v112 = vpack.c.b16 %v86, %v84
  %v113 = vpack.c.b16 %v87, %v85
  %v114 = vpack.c.b16 %v90, %v88
  %v115 = vpack.c.b16 %v91, %v89
  %v116 = vpack.c.b16 %v94, %v92
  %v117 = vpack.c.b16 %v95, %v93
  %v118 = vpack.c.b16 %v98, %v96
  %v119 = vpack.c.b16 %v99, %v97
  %v120 = vpack.c.b16 %v102, %v100
  %v121 = vpack.c.b16 %v103, %v101
  %v122 = vpack.c.b16 %v106, %v104
  %v123 = vpack.c.b16 %v107, %v105
  %140 = vmatprep.subr.bf16.mxu0 %v123
  %141 = vmatpush1.bf16.msra.mxu0 %v122
  %142 = vmatprep.subr.bf16.mxu0 %v121
  %143 = vmatpush1.bf16.msra.mxu0 %v120
  %144 = vmatprep.subr.bf16.mxu0 %v119
  %145 = vmatpush1.bf16.msra.mxu0 %v118
  %146 = vmatprep.subr.bf16.mxu0 %v117
  %147 = vmatpush1.bf16.msra.mxu0 %v116
  %148 = vmatprep.subr.bf16.mxu0 %v115
  %149 = vmatpush1.bf16.msra.mxu0 %v114
  %150 = vmatprep.subr.bf16.mxu0 %v113
  %151 = vmatpush1.bf16.msra.mxu0 %v112
  %152 = vmatprep.subr.bf16.mxu0 %v111
  %153 = vmatpush1.bf16.msra.mxu0 %v110
  %154 = vmatprep.subr.bf16.mxu0 %v109
  %155 = vmatpush1.bf16.msra.mxu0 %v108
  %156 = vmatprep.subr.bf16.mxu0 0
  %157 = vmatpush2.bf16.msra.mxu0 0
  %158 = vmatprep.subr.bf16.mxu0 0
  %159 = vmatpush2.bf16.msra.mxu0 0
  %160 = vmatprep.subr.bf16.mxu0 0
  %161 = vmatpush2.bf16.msra.mxu0 0
  %162 = vmatprep.subr.bf16.mxu0 0
  %163 = vmatpush2.bf16.msra.mxu0 0
  %164 = vmatprep.subr.bf16.mxu0 0
  %165 = vmatpush2.bf16.msra.mxu0 0
  %166 = vmatprep.subr.bf16.mxu0 0
  %167 = vmatpush2.bf16.msra.mxu0 0
  %168 = vmatprep.subr.bf16.mxu0 0
  %169 = vmatpush2.bf16.msra.mxu0 0
  %170 = vmatprep.subr.bf16.mxu0 0
  %171 = vmatpush2.bf16.msra.mxu0 0
  %172 = vmatprep.mubr.bf16.mxu0 0
  %173 = vmatmul.mubr.bf16.gmra.mxu0 %v56
  %v174 = vpop.f32.mrf.mxu0
  %v175 = vadd.f32 0.0, %v174
  %v176 = vpop.f32.mrf.mxu0
  %v177 = vadd.f32 0.0, %v176
  %v178 = vpop.f32.mrf.mxu0
  %v179 = vadd.f32 0.0, %v178
  %v180 = vpop.f32.mrf.mxu0
  %v181 = vadd.f32 0.0, %v180
  %182 = vmatprep.mubr.bf16.mxu0 0
  %183 = vmatmul.mubr.bf16.gmra.mxu0 %v57
  %v184 = vpop.f32.mrf.mxu0
  %v185 = vadd.f32 0.0, %v184
  %v186 = vpop.f32.mrf.mxu0
  %v187 = vadd.f32 0.0, %v186
  %v188 = vpop.f32.mrf.mxu0
  %v189 = vpop.f32.mrf.mxu0
  %190 = vdwg.mxu0
  %v191 = vadd.f32 %v25, %v175
  %v192 = vadd.f32 %v26, %v177
  %v193 = vadd.f32 %v27, %v179
  %v194 = vadd.f32 %v28, %v181
  %v195 = vadd.f32 %v29, %v185
  %v196 = vadd.f32 %v30, %v187
  %197 = vst [vmem:[#allocation2] sm:$0xff] %v191
  %198 = vst [vmem:[#allocation2 + $0x8] sm:$0xff] %v192
  %199 = vst [vmem:[#allocation2 + $0x10] sm:$0xff] %v193
  %200 = vst [vmem:[#allocation2 + $0x18] sm:$0xff] %v194
  %201 = vst [vmem:[#allocation2 + $0x20] sm:$0xf] %v195
  %202 = vst [vmem:[#allocation2 + $0x28] sm:$0xf] %v196
  // Predicated region
  $region18: #{transformer_decoder.22} parent=0 // pred_check
    %p203 = pneg %p15
  $region19: #{transformer_decoder.22} parent=0 // pred_check_branch
    %205 = sbr.rel (%p203) target = $region21
  $region20: #{transformer_decoder.22} parent=0 // pred_region
    %v206 = vld [vmem:[#allocation2] sm:$0xff]
    %v207 = vld [vmem:[#allocation2 + $0x8] sm:$0xff]
    %v208 = vld [vmem:[#allocation2 + $0x10] sm:$0xff]
    %v209 = vld [vmem:[#allocation2 + $0x18] sm:$0xff]
    %v210 = vld [vmem:[#allocation2 + $0x20] sm:$0xf]
    %v211 = vld [vmem:[#allocation2 + $0x28] sm:$0xf]
    %v212 = vld [vmem:[%s2] sm:$0x3]
    %v214 = vlaneseq
    %v215 = vshrl.u32 %v214, 7
    %v216 = vsub.s32 0, %v215
    %v217 = vrot.slane %v212, %v216
    %v218 = vlaneseq
    %v219 = vshrl.u32 %v218, 7
    %v220 = vsub.s32 1, %v219
    %v221 = vrot.slane %v212, %v220
    %v224 = vadd.f32 %v206, %v217
    %v225 = vadd.f32 %v207, %v221
    %v226 = vadd.f32 %v208, %v217
    %v227 = vadd.f32 %v209, %v221
    %v228 = vadd.f32 %v210, %v217
    %v229 = vadd.f32 %v211, %v221
    %v230 = vpack.c.bf16 %v226, %v224
    %v231 = vpack.c.bf16 %v227, %v225
    %v232 = vpack.c.bf16 %v228, %v228
    %v233 = vpack.c.bf16 %v229, %v229
    %v238 = vunpack.c.l.b16 %v230
    %v239 = vunpack.c.l.b16 %v231
    %v240 = vunpack.c.h.b16 %v230
    %v241 = vunpack.c.h.b16 %v231
    %v242 = vunpack.c.l.b16 %v232
    %v243 = vunpack.c.l.b16 %v233
    %v244 = vpack.c.b16 %v239, %v238
    %v245 = vpack.c.b16 %v241, %v240
    %v246 = vpack.c.b16 %v243, %v242
    %250 = vst [vmem:[%s3] sm:$0xff] %v244
    %251 = vst [vmem:[%s3 + $0x8] sm:$0xff] %v245
    %252 = vst [vmem:[%s3 + $0x10] sm:$0x33] %v246
  $region21: #{transformer_decoder.22} parent=0 // pred_fallthru
    _
  // Predicated region
  $region22: #{transformer_decoder.22} parent=0 // pred_check
    _
  $region23: #{transformer_decoder.22} parent=0 // pred_check_branch
    %254 = sbr.rel (0) target = $region25
  $region24: #{transformer_decoder.22} parent=0 // pred_region
    _
  $region25: #{transformer_decoder.22} parent=0 // pred_fallthru
    _
  // Predicated region
  $region26: #{transformer_decoder.22} parent=0 // pred_check
    _
  $region27: #{transformer_decoder.22} parent=0 // pred_check_branch
    %256 = sbr.rel (0) target = $region29
  $region28: #{transformer_decoder.22} parent=0 // pred_region
    _
  $region29: #{transformer_decoder.22} parent=0 // pred_fallthru
    _

// kernel: transformer_decoder.23
$region0: #{transformer_decoder.23}
  #allocation0 [shape = 'u32[]', space=smem, size = 0x4, offset = 0x4, fixed_abs, tag = 'smem constant byte address 0x4 - core index']
  #allocation1 [shape = 'u32[144,128]{1,0:T(1,128)}', space=vmem, size = 0x12000, scoped, tag = 'internal scratch']
  %s0 = inlined_call_operand.vmem [shape: bf16[2,8,128], index: 0, kind: input, shape index: {}]
  %s1 = inlined_call_operand.vmem [shape: bf16[2,10,256], index: 1, kind: input, shape index: {}, may-alias: {1,2}]
  %s2 = inlined_call_operand.vmem [shape: bf16[2,10,256], index: 2, kind: input, shape index: {}, may-alias: {1,2}]
  %s3 = inlined_call_operand.vmem [shape: bf16[2,8,128], index: 3, kind: output, shape index: {}]
  %s4 = sld [smem:[#allocation0]]
  $region127: #{transformer_decoder.23} parent=0
    _
  %s6 = ssub.s32 1, %s4
  %s7 = scalar_select 0, %s6, %s4
  $region1: #{transformer_decoder.23} parent=0
    #allocation2 [shape = 'u8[8192]{0}', space=vmem, size = 0x2000, scoped, tag = 'input window, operand 1']
    #allocation3 [shape = 'u8[8192]{0}', space=vmem, size = 0x2000, scoped, tag = 'input window, operand 2']
    loop: start=0, step=1, limit=4
    $region2: #{transformer_decoder.23} parent=1 // loop_pre_header
      _
    $region3: #{transformer_decoder.23} parent=1 // loop_header
      %s9 = sphi 0, %s13
      %p10 = scmp.ge.s32.totalorder %s9, 4
      %s16 = sphi 0, %s28
      %s17 = sphi 0, %s24
      %s18 = sphi 0, %s16
      %s19 = sphi 0, %s17
      %s20 = sphi 0, %s18
      %s21 = sphi 0, %s19
      %s33 = sphi 0, %s35
      %s36 = sphi 0, %s33
      %s37 = sphi 0, %s36
      %s53 = sphi 0, %s37
      %s59 = sphi 0, %s61
      %s62 = sphi 0, %s59
      %s63 = sphi 0, %s62
      %s79 = sphi 0, %s63
      %s85 = sphi 0, %s87
      %s88 = sphi 0, %s85
      %s89 = sphi 0, %s88
      %s105 = sphi 0, %s89
      %s113 = sphi 0, %s115
      %s116 = sphi 0, %s113
      %s117 = sphi 0, %s116
      %s133 = sphi 0, %s117
    $region4: #{transformer_decoder.23} parent=1 // loop_header_branch
      %12 = sbr.rel (%p10) target = $region8
    $region5: #{transformer_decoder.23} parent=1 // loop_body
      %s14 = ssub.s32 %s9, 1
      %s15 = ssub.s32 %s9, 2
      %s22 = sadd.s32 1, %s17
      %p23 = scmp.ge.s32.totalorder %s22, 1
      %s24 = scalar_select %p23, 0, %s22
      %s25 = sadd.s32 1, %s16
      %s26 = scalar_select %p23, %s25, %s16
      %p27 = scmp.ge.s32.totalorder %s26, 2
      %s28 = scalar_select %p27, 0, %s26
      %s29 = ssub.s32 %s16, %s28
      %s30 = ssub.s32 %s17, %s24
      %s31 = sor.u32 %s29, %s30
      %p32 = scmp.eq.s32.totalorder %s31, 0
      %s34 = sadd.s32 %s33, 1
      %s35 = scalar_select %p32, %s33, %s34
      %p38 = pneg %p32
      %p39 = scmp.eq.s32.totalorder %s9, 1
      %p40 = por %p38, %p39
      %p41 = scmp.ne.s32.totalorder %s33, %s36
      %p42 = scmp.eq.s32.totalorder %s9, 0
      %p43 = por %p41, %p42
      %p44 = scmp.ne.s32.totalorder %s33, %s36
      %p45 = scmp.eq.s32.totalorder %s14, 1
      %p46 = por %p44, %p45
      %p47 = scmp.ne.s32.totalorder %s36, %s37
      %p48 = scmp.eq.s32.totalorder %s14, 0
      %p49 = por %p47, %p48
      %p50 = scmp.ne.s32.totalorder %s36, %s37
      %p51 = scmp.eq.s32.totalorder %s15, 1
      %p52 = por %p50, %p51
      %p54 = scmp.ne.s32.totalorder %s37, %s53
      %p55 = scmp.eq.s32.totalorder %s15, 0
      %p56 = por %p54, %p55
      %s57 = ssub.s32 %s16, %s28
      %p58 = scmp.eq.s32.totalorder %s57, 0
      %s60 = sadd.s32 %s59, 1
      %s61 = scalar_select %p58, %s59, %s60
      %p64 = pneg %p58
      %p65 = scmp.eq.s32.totalorder %s9, 1
      %p66 = por %p64, %p65
      %p67 = scmp.ne.s32.totalorder %s59, %s62
      %p68 = scmp.eq.s32.totalorder %s9, 0
      %p69 = por %p67, %p68
      %p70 = scmp.ne.s32.totalorder %s59, %s62
      %p71 = scmp.eq.s32.totalorder %s14, 1
      %p72 = por %p70, %p71
      %p73 = scmp.ne.s32.totalorder %s62, %s63
      %p74 = scmp.eq.s32.totalorder %s14, 0
      %p75 = por %p73, %p74
      %p76 = scmp.ne.s32.totalorder %s62, %s63
      %p77 = scmp.eq.s32.totalorder %s15, 1
      %p78 = por %p76, %p77
      %p80 = scmp.ne.s32.totalorder %s63, %s79
      %p81 = scmp.eq.s32.totalorder %s15, 0
      %p82 = por %p80, %p81
      %s83 = ssub.s32 %s16, %s28
      %p84 = scmp.eq.s32.totalorder %s83, 0
      %s86 = sadd.s32 %s85, 1
      %s87 = scalar_select %p84, %s85, %s86
      %p90 = pneg %p84
      %p91 = scmp.eq.s32.totalorder %s9, 1
      %p92 = por %p90, %p91
      %p93 = scmp.ne.s32.totalorder %s85, %s88
      %p94 = scmp.eq.s32.totalorder %s9, 0
      %p95 = por %p93, %p94
      %p96 = scmp.ne.s32.totalorder %s85, %s88
      %p97 = scmp.eq.s32.totalorder %s14, 1
      %p98 = por %p96, %p97
      %p99 = scmp.ne.s32.totalorder %s88, %s89
      %p100 = scmp.eq.s32.totalorder %s14, 0
      %p101 = por %p99, %p100
      %p102 = scmp.ne.s32.totalorder %s88, %s89
      %p103 = scmp.eq.s32.totalorder %s15, 1
      %p104 = por %p102, %p103
      %p106 = scmp.ne.s32.totalorder %s89, %s105
      %p107 = scmp.eq.s32.totalorder %s15, 0
      %p108 = por %p106, %p107
      %s109 = ssub.s32 %s16, %s28
      %s110 = ssub.s32 %s17, %s24
      %s111 = sor.u32 %s109, %s110
      %p112 = scmp.eq.s32.totalorder %s111, 0
      %s114 = sadd.s32 %s113, 1
      %s115 = scalar_select %p112, %s113, %s114
      %p118 = pneg %p112
      %p119 = scmp.eq.s32.totalorder %s9, 1
      %p120 = por %p118, %p119
      %p121 = scmp.ne.s32.totalorder %s113, %s116
      %p122 = scmp.eq.s32.totalorder %s9, 0
      %p123 = por %p121, %p122
      %p124 = scmp.ne.s32.totalorder %s113, %s116
      %p125 = scmp.eq.s32.totalorder %s14, 1
      %p126 = por %p124, %p125
      %p127 = scmp.ne.s32.totalorder %s116, %s117
      %p128 = scmp.eq.s32.totalorder %s14, 0
      %p129 = por %p127, %p128
      %p130 = scmp.ne.s32.totalorder %s116, %s117
      %p131 = scmp.eq.s32.totalorder %s15, 1
      %p132 = por %p130, %p131
      %p134 = scmp.ne.s32.totalorder %s117, %s133
      %p135 = scmp.eq.s32.totalorder %s15, 0
      %p136 = por %p134, %p135
      %p137 = scmp.le.s32.totalorder 1, %s9
      %p138 = scmp.lt.s32.totalorder %s9, 3
      %p139 = pnand %p137, %p138
      %p140 = pneg %p139
      // Predicated region
      $region9: #{transformer_decoder.23} parent=5 // pred_check
        _
      $region10: #{transformer_decoder.23} parent=5 // pred_check_branch
        %142 = sbr.rel (%p139) target = $region12
      $region11: #{transformer_decoder.23} parent=5 // pred_region
        %s143 = ssub.s32 %s9, 1
      $region12: #{transformer_decoder.23} parent=5 // pred_fallthru
        _
      %p144 = scmp.lt.s32.totalorder %s9, 2
      // Predicated region
      $region13: #{transformer_decoder.23} parent=5 // pred_check
        %p145 = pneg %p144
      $region14: #{transformer_decoder.23} parent=5 // pred_check_branch
        %147 = sbr.rel (%p145) target = $region16
      $region15: #{transformer_decoder.23} parent=5 // pred_region
        // Predicated region
        $region17: #{transformer_decoder.23} parent=15 // pred_check
          %p148 = pneg %p43
        $region18: #{transformer_decoder.23} parent=15 // pred_check_branch
          %150 = sbr.rel (%p148) target = $region20
        $region19: #{transformer_decoder.23} parent=15 // pred_region
          %p151 = scmp.lt.s32.totalorder %s16, 1
          %s152 = scalar_select %p151, %s16, 1
          %p153 = scmp.lt.s32.totalorder %s17, 0
          %s154 = scalar_select %p153, %s17, 0
          %s155 = sadd.s32 %s154, %s152
          %s156 = smul.addr %s155, 4
          %s157 = scalar_lea.vmem %s0, %s156
        $region20: #{transformer_decoder.23} parent=15 // pred_fallthru
          _
        // Predicated region
        $region21: #{transformer_decoder.23} parent=15 // pred_check
          %p158 = pneg %p69
        $region22: #{transformer_decoder.23} parent=15 // pred_check_branch
          %160 = sbr.rel (%p158) target = $region24
        $region23: #{transformer_decoder.23} parent=15 // pred_region
          %s161 = sand.u32 %s59, 1
          %s162 = sand.u32 %s59, 1
          %s163 = smul.addr %s162, 8
          %s164 = scalar_lea.vmem [#allocation2], %s163
          %s165 = smul.addr %s16, 4
          %s166 = smul.addr %s165, 4
          %s167 = scalar_lea.vmem %s1, %s166
          // Predicated region
          $region25: #{transformer_decoder.23} parent=23 // pred_check
            _
          $region26: #{transformer_decoder.23} parent=23 // pred_check_branch
            %169 = sbr.rel (0) target = $region28
          $region27: #{transformer_decoder.23} parent=23 // pred_region
            // Predicated region
            $region29: #{transformer_decoder.23} parent=27 // pred_check
              _
            $region30: #{transformer_decoder.23} parent=27 // pred_check_branch
              %171 = sbr.rel target = $region32
            $region31: #{transformer_decoder.23} parent=27 // pred_region
              // Predicated region
              $region44: #{transformer_decoder.23} parent=31 // pred_check
                _
              $region45: #{transformer_decoder.23} parent=31 // pred_check_branch
                %189 = sbr.rel (0) target = $region47
              $region46: #{transformer_decoder.23} parent=31 // pred_region
                loop: start=0, step=1, limit=1
                $region48: #{transformer_decoder.23} parent=46 // loop_pre_header
                  _
                $region49: #{transformer_decoder.23} parent=46 // loop_header
                  %s191 = sphi 0, %s195
                  %p192 = scmp.ge.s32.totalorder %s191, 1
                  %s196 = sphi %s167, %s167
                  %s197 = sphi %s164, %s164
                $region50: #{transformer_decoder.23} parent=46 // loop_header_branch
                  %194 = sbr.rel (%p192) target = $region54
                $region51: #{transformer_decoder.23} parent=46 // loop_body
                  _
                $region52: #{transformer_decoder.23} parent=46 // loop_footer
                  %s195 = sadd.s32 1, %s191
                $region53: #{transformer_decoder.23} parent=46 // loop_footer_branch
                  %190 = sbr.rel target = $region49
                $region54: #{transformer_decoder.23} parent=46 // loop_exit
                  _
                %s199 = ssub.s32 16, 1
                loop: start=0, step=1, limit=1
                $region55: #{transformer_decoder.23} parent=46 // loop_pre_header
                  _
                $region56: #{transformer_decoder.23} parent=46 // loop_header
                  %s201 = sphi 0, %s205
                  %p202 = scmp.ge.s32.totalorder %s201, 1
                  %s206 = sphi %s167, %s167
                  %s207 = sphi %s164, %s164
                $region57: #{transformer_decoder.23} parent=46 // loop_header_branch
                  %204 = sbr.rel (%p202) target = $region61
                $region58: #{transformer_decoder.23} parent=46 // loop_body
                  %v208 = vld [vmem:[%s206] sm:%s199]
                  %209 = vst [vmem:[%s207] sm:%s199] %v208
                  %v210 = vld [vmem:[%s206 + $0x8] sm:%s199]
                  %211 = vst [vmem:[%s207 + $0x4] sm:%s199] %v210
                $region59: #{transformer_decoder.23} parent=46 // loop_footer
                  %s205 = sadd.s32 1, %s201
                $region60: #{transformer_decoder.23} parent=46 // loop_footer_branch
                  %200 = sbr.rel target = $region56
                $region61: #{transformer_decoder.23} parent=46 // loop_exit
                  _
              $region47: #{transformer_decoder.23} parent=31 // pred_fallthru
                _
            $region32: #{transformer_decoder.23} parent=27 // pred_fallthru
              _
            // Predicated region
            $region33: #{transformer_decoder.23} parent=27 // pred_check
              _
            $region34: #{transformer_decoder.23} parent=27 // pred_check_branch
              %173 = sbr.rel (0) target = $region36
            $region35: #{transformer_decoder.23} parent=27 // pred_region
              %s175 = ssub.s32 16, 1
              loop: start=0, step=1, limit=1
              $region37: #{transformer_decoder.23} parent=35 // loop_pre_header
                _
              $region38: #{transformer_decoder.23} parent=35 // loop_header
                %s177 = sphi 0, %s181
                %p178 = scmp.ge.s32.totalorder %s177, 1
                %s182 = sphi %s167, %s167
                %s183 = sphi %s164, %s164
              $region39: #{transformer_decoder.23} parent=35 // loop_header_branch
                %180 = sbr.rel (%p178) target = $region43
              $region40: #{transformer_decoder.23} parent=35 // loop_body
                %v184 = vld [vmem:[%s182] sm:%s175]
                %185 = vst [vmem:[%s183] sm:%s175] %v184
                %v186 = vld [vmem:[%s182 + $0x8] sm:%s175]
                %187 = vst [vmem:[%s183 + $0x4] sm:%s175] %v186
              $region41: #{transformer_decoder.23} parent=35 // loop_footer
                %s181 = sadd.s32 1, %s177
              $region42: #{transformer_decoder.23} parent=35 // loop_footer_branch
                %176 = sbr.rel target = $region38
              $region43: #{transformer_decoder.23} parent=35 // loop_exit
                _
            $region36: #{transformer_decoder.23} parent=27 // pred_fallthru
              _
          $region28: #{transformer_decoder.23} parent=23 // pred_fallthru
            _
          %212 = vnop
        $region24: #{transformer_decoder.23} parent=15 // pred_fallthru
          _
        // Predicated region
        $region62: #{transformer_decoder.23} parent=15 // pred_check
          %p213 = pneg %p95
        $region63: #{transformer_decoder.23} parent=15 // pred_check_branch
          %215 = sbr.rel (%p213) target = $region65
        $region64: #{transformer_decoder.23} parent=15 // pred_region
          %s216 = sand.u32 %s85, 1
          %s217 = sand.u32 %s85, 1
          %s218 = smul.addr %s217, 8
          %s219 = scalar_lea.vmem [#allocation3], %s218
          %s220 = smul.addr %s16, 4
          %s221 = sadd.s32 1, %s220
          %s222 = smul.addr %s221, 4
          %s223 = scalar_lea.vmem %s2, %s222
          // Predicated region
          $region66: #{transformer_decoder.23} parent=64 // pred_check
            _
          $region67: #{transformer_decoder.23} parent=64 // pred_check_branch
            %225 = sbr.rel (0) target = $region69
          $region68: #{transformer_decoder.23} parent=64 // pred_region
            // Predicated region
            $region70: #{transformer_decoder.23} parent=68 // pred_check
              _
            $region71: #{transformer_decoder.23} parent=68 // pred_check_branch
              %227 = sbr.rel target = $region73
            $region72: #{transformer_decoder.23} parent=68 // pred_region
              // Predicated region
              $region85: #{transformer_decoder.23} parent=72 // pred_check
                _
              $region86: #{transformer_decoder.23} parent=72 // pred_check_branch
                %245 = sbr.rel (0) target = $region88
              $region87: #{transformer_decoder.23} parent=72 // pred_region
                loop: start=0, step=1, limit=1
                $region89: #{transformer_decoder.23} parent=87 // loop_pre_header
                  _
                $region90: #{transformer_decoder.23} parent=87 // loop_header
                  %s247 = sphi 0, %s251
                  %p248 = scmp.ge.s32.totalorder %s247, 1
                  %s252 = sphi %s223, %s223
                  %s253 = sphi %s219, %s219
                $region91: #{transformer_decoder.23} parent=87 // loop_header_branch
                  %250 = sbr.rel (%p248) target = $region95
                $region92: #{transformer_decoder.23} parent=87 // loop_body
                  _
                $region93: #{transformer_decoder.23} parent=87 // loop_footer
                  %s251 = sadd.s32 1, %s247
                $region94: #{transformer_decoder.23} parent=87 // loop_footer_branch
                  %246 = sbr.rel target = $region90
                $region95: #{transformer_decoder.23} parent=87 // loop_exit
                  _
                %s255 = ssub.s32 16, 1
                loop: start=0, step=1, limit=1
                $region96: #{transformer_decoder.23} parent=87 // loop_pre_header
                  _
                $region97: #{transformer_decoder.23} parent=87 // loop_header
                  %s257 = sphi 0, %s261
                  %p258 = scmp.ge.s32.totalorder %s257, 1
                  %s262 = sphi %s223, %s223
                  %s263 = sphi %s219, %s219
                $region98: #{transformer_decoder.23} parent=87 // loop_header_branch
                  %260 = sbr.rel (%p258) target = $region102
                $region99: #{transformer_decoder.23} parent=87 // loop_body
                  %v264 = vld [vmem:[%s262] sm:%s255]
                  %265 = vst [vmem:[%s263] sm:%s255] %v264
                  %v266 = vld [vmem:[%s262 + $0x8] sm:%s255]
                  %267 = vst [vmem:[%s263 + $0x4] sm:%s255] %v266
                $region100: #{transformer_decoder.23} parent=87 // loop_footer
                  %s261 = sadd.s32 1, %s257
                $region101: #{transformer_decoder.23} parent=87 // loop_footer_branch
                  %256 = sbr.rel target = $region97
                $region102: #{transformer_decoder.23} parent=87 // loop_exit
                  _
              $region88: #{transformer_decoder.23} parent=72 // pred_fallthru
                _
            $region73: #{transformer_decoder.23} parent=68 // pred_fallthru
              _
            // Predicated region
            $region74: #{transformer_decoder.23} parent=68 // pred_check
              _
            $region75: #{transformer_decoder.23} parent=68 // pred_check_branch
              %229 = sbr.rel (0) target = $region77
            $region76: #{transformer_decoder.23} parent=68 // pred_region
              %s231 = ssub.s32 16, 1
              loop: start=0, step=1, limit=1
              $region78: #{transformer_decoder.23} parent=76 // loop_pre_header
                _
              $region79: #{transformer_decoder.23} parent=76 // loop_header
                %s233 = sphi 0, %s237
                %p234 = scmp.ge.s32.totalorder %s233, 1
                %s238 = sphi %s223, %s223
                %s239 = sphi %s219, %s219
              $region80: #{transformer_decoder.23} parent=76 // loop_header_branch
                %236 = sbr.rel (%p234) target = $region84
              $region81: #{transformer_decoder.23} parent=76 // loop_body
                %v240 = vld [vmem:[%s238] sm:%s231]
                %241 = vst [vmem:[%s239] sm:%s231] %v240
                %v242 = vld [vmem:[%s238 + $0x8] sm:%s231]
                %243 = vst [vmem:[%s239 + $0x4] sm:%s231] %v242
              $region82: #{transformer_decoder.23} parent=76 // loop_footer
                %s237 = sadd.s32 1, %s233
              $region83: #{transformer_decoder.23} parent=76 // loop_footer_branch
                %232 = sbr.rel target = $region79
              $region84: #{transformer_decoder.23} parent=76 // loop_exit
                _
            $region77: #{transformer_decoder.23} parent=68 // pred_fallthru
              _
          $region69: #{transformer_decoder.23} parent=64 // pred_fallthru
            _
          %268 = vnop
        $region65: #{transformer_decoder.23} parent=15 // pred_fallthru
          _
      $region16: #{transformer_decoder.23} parent=5 // pred_fallthru
        _
      %p269 = scmp.le.s32.totalorder 1, %s9
      %p270 = scmp.lt.s32.totalorder %s9, 3
      %p271 = pnand %p269, %p270
      %p272 = pneg %p271
      // Predicated region
      $region103: #{transformer_decoder.23} parent=5 // pred_check
        _
      $region104: #{transformer_decoder.23} parent=5 // pred_check_branch
        %274 = sbr.rel (%p271) target = $region106
      $region105: #{transformer_decoder.23} parent=5 // pred_region
        %s275 = ssub.s32 %s9, 1
        %s276 = sand.u32 %s62, 1
        %s277 = sand.u32 %s62, 1
        %s278 = smul.addr %s277, 8
        %s279 = scalar_lea.vmem [#allocation2], %s278
        // Predicated region
        $region107: #{transformer_decoder.23} parent=105 // pred_check
          %p280 = pneg %p75
        $region108: #{transformer_decoder.23} parent=105 // pred_check_branch
          %282 = sbr.rel (%p280) target = $region110
        $region109: #{transformer_decoder.23} parent=105 // pred_region
          _
        $region110: #{transformer_decoder.23} parent=105 // pred_fallthru
          _
        %s283 = sand.u32 %s88, 1
        %s284 = sand.u32 %s88, 1
        %s285 = smul.addr %s284, 8
        %s286 = scalar_lea.vmem [#allocation3], %s285
        // Predicated region
        $region111: #{transformer_decoder.23} parent=105 // pred_check
          %p287 = pneg %p101
        $region112: #{transformer_decoder.23} parent=105 // pred_check_branch
          %289 = sbr.rel (%p287) target = $region114
        $region113: #{transformer_decoder.23} parent=105 // pred_region
          _
        $region114: #{transformer_decoder.23} parent=105 // pred_fallthru
          _
        %p290 = scmp.lt.s32.totalorder %s18, 1
        %s291 = scalar_select %p290, %s18, 1
        %p292 = scmp.lt.s32.totalorder %s19, 0
        %s293 = scalar_select %p292, %s19, 0
        %s294 = sadd.s32 %s293, %s291
        %s295 = smul.addr %s294, 4
        %s296 = scalar_lea.vmem %s0, %s295
        %p297 = pneg %p49
        %p298 = pneg %p46
        %s299 = sand.u32 %s62, 1
        %s300 = sand.u32 %s62, 1
        %s301 = smul.addr %s300, 8
        %s302 = scalar_lea.vmem [#allocation2], %s301
        %p303 = pneg %p75
        %p304 = pneg %p72
        %s305 = sand.u32 %s88, 1
        %s306 = sand.u32 %s88, 1
        %s307 = smul.addr %s306, 8
        %s308 = scalar_lea.vmem [#allocation3], %s307
        %p309 = pneg %p101
        %p310 = pneg %p98
        %p311 = pneg %p129
        %p312 = pneg %p126
        %p313 = scmp.lt.s32.totalorder %s18, 1
        %s314 = scalar_select %p313, %s18, 1
        %p315 = scmp.lt.s32.totalorder %s19, 0
        %s316 = scalar_select %p315, %s19, 0
        %s317 = sadd.s32 %s316, %s314
        %s318 = smul.addr %s317, 4
        %s319 = scalar_lea.vmem %s3, %s318
        %p320 = scmp.lt.s32.totalorder %s18, 1
        %s321 = scalar_select %p320, %s18, 1
        %p322 = scmp.lt.s32.totalorder %s19, 0
        %s323 = scalar_select %p322, %s19, 0
        %s324 = sadd.s32 %s323, %s321
        %s325 = smul.addr %s324, 4
        %s326 = scalar_lea.vmem %s0, %s325
        %p327 = scmp.lt.s32.totalorder %s18, 1
        %s328 = scalar_select %p327, %s18, 1
        %p329 = scmp.lt.s32.totalorder %s19, 0
        %s330 = scalar_select %p329, %s19, 0
        %s331 = sadd.s32 %s330, %s328
        %s332 = smul.addr %s331, 4
        %s333 = scalar_lea.vmem %s3, %s332
        %v335 = vld [vmem:[%s326] sm:$0xf]
        %v336 = vld [vmem:[%s279] sm:$0xf]
        %v337 = vld [vmem:[%s279 + $0x4] sm:$0x1]
        %v338 = vld [vmem:[%s286] sm:$0xf]
        %v339 = vld [vmem:[%s286 + $0x4] sm:$0x1]
        %v340 = vunpack.c.l.bf16 %v335
        %v341 = vmul.f32 %v340, 0.17677669
        %v342 = vpack.c.bf16 %v341, %v341
        %v345 = vunpack.c.l.b16 %v336
        %v346 = vunpack.c.l.b16 %v337
        %v347 = vpack.c.b16 %v346, %v345
        %vm348 = vcmask 261120
        %v350 = vsel %vm348, %v342, 0
        %v353 = vsel %vm348, %v347, 0
        %355 = vmatprep.subr.bf16.mxu0 0
        %356 = vmatpush1.bf16.xpose.msra.mxu0 0
        %357 = vmatprep.subr.bf16.mxu0 0
        %358 = vmatpush1.bf16.xpose.msra.mxu0 0
        %359 = vmatprep.subr.bf16.mxu0 0
        %360 = vmatpush1.bf16.xpose.msra.mxu0 0
        %361 = vmatprep.subr.bf16.mxu0 0
        %362 = vmatpush1.bf16.xpose.msra.mxu0 0
        %363 = vmatprep.subr.bf16.mxu0 0
        %364 = vmatpush1.bf16.xpose.msra.mxu0 0
        %365 = vmatprep.subr.bf16.mxu0 0
        %366 = vmatpush1.bf16.xpose.msra.mxu0 0
        %367 = vmatprep.subr.bf16.mxu0 0
        %368 = vmatpush1.bf16.xpose.msra.mxu0 0
        %369 = vmatprep.subr.bf16.mxu0 0
        %370 = vmatpush1.bf16.xpose.msra.mxu0 %v353
        %371 = vmatprep.subr.bf16.mxu0 0
        %372 = vmatpush2.bf16.xpose.msra.mxu0 0
        %373 = vmatprep.subr.bf16.mxu0 0
        %374 = vmatpush2.bf16.xpose.msra.mxu0 0
        %375 = vmatprep.subr.bf16.mxu0 0
        %376 = vmatpush2.bf16.xpose.msra.mxu0 0
        %377 = vmatprep.subr.bf16.mxu0 0
        %378 = vmatpush2.bf16.xpose.msra.mxu0 0
        %379 = vmatprep.subr.bf16.mxu0 0
        %380 = vmatpush2.bf16.xpose.msra.mxu0 0
        %381 = vmatprep.subr.bf16.mxu0 0
        %382 = vmatpush2.bf16.xpose.msra.mxu0 0
        %383 = vmatprep.subr.bf16.mxu0 0
        %384 = vmatpush2.bf16.xpose.msra.mxu0 0
        %385 = vmatprep.subr.bf16.mxu0 0
        %386 = vmatpush2.bf16.xpose.msra.mxu0 0
        %387 = vmatprep.mubr.bf16.mxu0 0
        %388 = vmatmul.mubr.bf16.gmra.mxu0 %v350
        %v389 = vpop.f32.mrf.mxu0
        %v390 = vadd.f32 0.0, %v389
        %v391 = vpop.f32.mrf.mxu0
        %v392 = vpop.f32.mrf.mxu0
        %v393 = vpop.f32.mrf.mxu0
        %394 = vdwg.mxu0
        %vm395 = vcmask 80896
        %v396 = vsel %vm395, %v390, -inf
        %397 = vmax.xlane.f32.xlu0 %v396
        %v398 = vpop.xlane.xlu0 %397
        %v399 = vsub.f32 %v390, %v398
        %v400 = vmul.f32 %v399, 1.442695
        %v401 = vpow.pop %v400
        %v402 = vsel %vm395, %v401, 0.0
        %403 = vadd.xlane.f32.xlu0 %v402
        %v404 = vpop.xlane.xlu0 %403
        %v405 = vpack.c.bf16 %v401, %v401
        %v408 = vunpack.c.l.b16 %v338
        %v409 = vunpack.c.l.b16 %v339
        %v410 = vpack.c.b16 %v409, %v408
        %v412 = vsel %vm395, %v405, 0
        %vm414 = vcmask 1044480
        %v416 = vsel %vm414, %v410, 0
        %418 = vmatprep.subr.bf16.mxu0 0
        %419 = vmatpush1.bf16.msra.mxu0 0
        %420 = vmatprep.subr.bf16.mxu0 0
        %421 = vmatpush1.bf16.msra.mxu0 0
        %422 = vmatprep.subr.bf16.mxu0 0
        %423 = vmatpush1.bf16.msra.mxu0 0
        %424 = vmatprep.subr.bf16.mxu0 0
        %425 = vmatpush1.bf16.msra.mxu0 0
        %426 = vmatprep.subr.bf16.mxu0 0
        %427 = vmatpush1.bf16.msra.mxu0 0
        %428 = vmatprep.subr.bf16.mxu0 0
        %429 = vmatpush1.bf16.msra.mxu0 0
        %430 = vmatprep.subr.bf16.mxu0 0
        %431 = vmatpush1.bf16.msra.mxu0 0
        %432 = vmatprep.subr.bf16.mxu0 0
        %433 = vmatpush1.bf16.msra.mxu0 %v416
        %434 = vmatprep.subr.bf16.mxu0 0
        %435 = vmatpush2.bf16.msra.mxu0 0
        %436 = vmatprep.subr.bf16.mxu0 0
        %437 = vmatpush2.bf16.msra.mxu0 0
        %438 = vmatprep.subr.bf16.mxu0 0
        %439 = vmatpush2.bf16.msra.mxu0 0
        %440 = vmatprep.subr.bf16.mxu0 0
        %441 = vmatpush2.bf16.msra.mxu0 0
        %442 = vmatprep.subr.bf16.mxu0 0
        %443 = vmatpush2.bf16.msra.mxu0 0
        %444 = vmatprep.subr.bf16.mxu0 0
        %445 = vmatpush2.bf16.msra.mxu0 0
        %446 = vmatprep.subr.bf16.mxu0 0
        %447 = vmatpush2.bf16.msra.mxu0 0
        %448 = vmatprep.subr.bf16.mxu0 0
        %449 = vmatpush2.bf16.msra.mxu0 0
        %450 = vmatprep.mubr.bf16.mxu0 0
        %451 = vmatmul.mubr.bf16.gmra.mxu0 %v412
        %v452 = vpop.f32.mrf.mxu0
        %v453 = vadd.f32 0.0, %v452
        %v454 = vpop.f32.mrf.mxu0
        %v455 = vpop.f32.mrf.mxu0
        %v456 = vpop.f32.mrf.mxu0
        %457 = vdwg.mxu0
        %v458 = vrcp.pop %v404
        %v459 = vmul.f32 %v453, %v458
        %v460 = vpack.c.bf16 %v459, %v459
        %vm461 = vcmask 257024
        %462 = vst.msk [vmem:[%s333] sm:$0xf] %vm461, %v460
        %464 = vrot.lane.b32.xlu0 %v342, 96
        %v465 = vpop.permute.xlu0 %464
        %466 = vrot.lane.b32.xlu0 %v347, 96
        %v467 = vpop.permute.xlu0 %466
        %v469 = vsel %vm348, %v465, 0
        %v472 = vsel %vm348, %v467, 0
        %474 = vmatprep.subr.bf16.mxu0 0
        %475 = vmatpush1.bf16.xpose.msra.mxu0 0
        %476 = vmatprep.subr.bf16.mxu0 0
        %477 = vmatpush1.bf16.xpose.msra.mxu0 0
        %478 = vmatprep.subr.bf16.mxu0 0
        %479 = vmatpush1.bf16.xpose.msra.mxu0 0
        %480 = vmatprep.subr.bf16.mxu0 0
        %481 = vmatpush1.bf16.xpose.msra.mxu0 0
        %482 = vmatprep.subr.bf16.mxu0 0
        %483 = vmatpush1.bf16.xpose.msra.mxu0 0
        %484 = vmatprep.subr.bf16.mxu0 0
        %485 = vmatpush1.bf16.xpose.msra.mxu0 0
        %486 = vmatprep.subr.bf16.mxu0 0
        %487 = vmatpush1.bf16.xpose.msra.mxu0 0
        %488 = vmatprep.subr.bf16.mxu0 0
        %489 = vmatpush1.bf16.xpose.msra.mxu0 %v472
        %490 = vmatprep.subr.bf16.mxu0 0
        %491 = vmatpush2.bf16.xpose.msra.mxu0 0
        %492 = vmatprep.subr.bf16.mxu0 0
        %493 = vmatpush2.bf16.xpose.msra.mxu0 0
        %494 = vmatprep.subr.bf16.mxu0 0
        %495 = vmatpush2.bf16.xpose.msra.mxu0 0
        %496 = vmatprep.subr.bf16.mxu0 0
        %497 = vmatpush2.bf16.xpose.msra.mxu0 0
        %498 = vmatprep.subr.bf16.mxu0 0
        %499 = vmatpush2.bf16.xpose.msra.mxu0 0
        %500 = vmatprep.subr.bf16.mxu0 0
        %501 = vmatpush2.bf16.xpose.msra.mxu0 0
        %502 = vmatprep.subr.bf16.mxu0 0
        %503 = vmatpush2.bf16.xpose.msra.mxu0 0
        %504 = vmatprep.subr.bf16.mxu0 0
        %505 = vmatpush2.bf16.xpose.msra.mxu0 0
        %506 = vmatprep.mubr.bf16.mxu0 0
        %507 = vmatmul.mubr.bf16.gmra.mxu0 %v469
        %v508 = vpop.f32.mrf.mxu0
        %v509 = vadd.f32 0.0, %v508
        %v510 = vpop.f32.mrf.mxu0
        %v511 = vpop.f32.mrf.mxu0
        %v512 = vpop.f32.mrf.mxu0
        %513 = vdwg.mxu0
        %v514 = vsel %vm395, %v509, -inf
        %515 = vmax.xlane.f32.xlu0 %v514
        %v516 = vpop.xlane.xlu0 %515
        %v517 = vsub.f32 %v509, %v516
        %v518 = vmul.f32 %v517, 1.442695
        %v519 = vpow.pop %v518
        %v520 = vsel %vm395, %v519, 0.0
        %521 = vadd.xlane.f32.xlu0 %v520
        %v522 = vpop.xlane.xlu0 %521
        %v523 = vpack.c.bf16 %v519, %v519
        %524 = vrot.lane.b32.xlu0 %v410, 96
        %v525 = vpop.permute.xlu0 %524
        %v527 = vsel %vm395, %v523, 0
        %v530 = vsel %vm414, %v525, 0
        %532 = vmatprep.subr.bf16.mxu0 0
        %533 = vmatpush1.bf16.msra.mxu0 0
        %534 = vmatprep.subr.bf16.mxu0 0
        %535 = vmatpush1.bf16.msra.mxu0 0
        %536 = vmatprep.subr.bf16.mxu0 0
        %537 = vmatpush1.bf16.msra.mxu0 0
        %538 = vmatprep.subr.bf16.mxu0 0
        %539 = vmatpush1.bf16.msra.mxu0 0
        %540 = vmatprep.subr.bf16.mxu0 0
        %541 = vmatpush1.bf16.msra.mxu0 0
        %542 = vmatprep.subr.bf16.mxu0 0
        %543 = vmatpush1.bf16.msra.mxu0 0
        %544 = vmatprep.subr.bf16.mxu0 0
        %545 = vmatpush1.bf16.msra.mxu0 0
        %546 = vmatprep.subr.bf16.mxu0 0
        %547 = vmatpush1.bf16.msra.mxu0 %v530
        %548 = vmatprep.subr.bf16.mxu0 0
        %549 = vmatpush2.bf16.msra.mxu0 0
        %550 = vmatprep.subr.bf16.mxu0 0
        %551 = vmatpush2.bf16.msra.mxu0 0
        %552 = vmatprep.subr.bf16.mxu0 0
        %553 = vmatpush2.bf16.msra.mxu0 0
        %554 = vmatprep.subr.bf16.mxu0 0
        %555 = vmatpush2.bf16.msra.mxu0 0
        %556 = vmatprep.subr.bf16.mxu0 0
        %557 = vmatpush2.bf16.msra.mxu0 0
        %558 = vmatprep.subr.bf16.mxu0 0
        %559 = vmatpush2.bf16.msra.mxu0 0
        %560 = vmatprep.subr.bf16.mxu0 0
        %561 = vmatpush2.bf16.msra.mxu0 0
        %562 = vmatprep.subr.bf16.mxu0 0
        %563 = vmatpush2.bf16.msra.mxu0 0
        %564 = vmatprep.mubr.bf16.mxu0 0
        %565 = vmatmul.mubr.bf16.gmra.mxu0 %v527
        %v566 = vpop.f32.mrf.mxu0
        %v567 = vadd.f32 0.0, %v566
        %v568 = vpop.f32.mrf.mxu0
        %v569 = vpop.f32.mrf.mxu0
        %v570 = vpop.f32.mrf.mxu0
        %571 = vdwg.mxu0
        %v572 = vrcp.pop %v522
        %v573 = vmul.f32 %v567, %v572
        %v574 = vpack.c.bf16 %v573, %v573
        %v576 = vunpack.c.l.b16 %v574
        %v577 = vpack.c.b16 %v576, %v576
        %578 = vrot.lane.b32.xlu0 %v577, 32
        %v579 = vpop.permute.xlu0 %578
        %vm581 = vcmask 519424
        %582 = vst.msk [vmem:[%s333] sm:$0xf] %vm581, %v579
        %583 = vrot.lane.b32.xlu0 %v342, 64
        %v584 = vpop.permute.xlu0 %583
        %585 = vrot.lane.b32.xlu0 %v347, 64
        %v586 = vpop.permute.xlu0 %585
        %v588 = vsel %vm348, %v584, 0
        %v591 = vsel %vm348, %v586, 0
        %593 = vmatprep.subr.bf16.mxu0 0
        %594 = vmatpush1.bf16.xpose.msra.mxu0 0
        %595 = vmatprep.subr.bf16.mxu0 0
        %596 = vmatpush1.bf16.xpose.msra.mxu0 0
        %597 = vmatprep.subr.bf16.mxu0 0
        %598 = vmatpush1.bf16.xpose.msra.mxu0 0
        %599 = vmatprep.subr.bf16.mxu0 0
        %600 = vmatpush1.bf16.xpose.msra.mxu0 0
        %601 = vmatprep.subr.bf16.mxu0 0
        %602 = vmatpush1.bf16.xpose.msra.mxu0 0
        %603 = vmatprep.subr.bf16.mxu0 0
        %604 = vmatpush1.bf16.xpose.msra.mxu0 0
        %605 = vmatprep.subr.bf16.mxu0 0
        %606 = vmatpush1.bf16.xpose.msra.mxu0 0
        %607 = vmatprep.subr.bf16.mxu0 0
        %608 = vmatpush1.bf16.xpose.msra.mxu0 %v591
        %609 = vmatprep.subr.bf16.mxu0 0
        %610 = vmatpush2.bf16.xpose.msra.mxu0 0
        %611 = vmatprep.subr.bf16.mxu0 0
        %612 = vmatpush2.bf16.xpose.msra.mxu0 0
        %613 = vmatprep.subr.bf16.mxu0 0
        %614 = vmatpush2.bf16.xpose.msra.mxu0 0
        %615 = vmatprep.subr.bf16.mxu0 0
        %616 = vmatpush2.bf16.xpose.msra.mxu0 0
        %617 = vmatprep.subr.bf16.mxu0 0
        %618 = vmatpush2.bf16.xpose.msra.mxu0 0
        %619 = vmatprep.subr.bf16.mxu0 0
        %620 = vmatpush2.bf16.xpose.msra.mxu0 0
        %621 = vmatprep.subr.bf16.mxu0 0
        %622 = vmatpush2.bf16.xpose.msra.mxu0 0
        %623 = vmatprep.subr.bf16.mxu0 0
        %624 = vmatpush2.bf16.xpose.msra.mxu0 0
        %625 = vmatprep.mubr.bf16.mxu0 0
        %626 = vmatmul.mubr.bf16.gmra.mxu0 %v588
        %v627 = vpop.f32.mrf.mxu0
        %v628 = vadd.f32 0.0, %v627
        %v629 = vpop.f32.mrf.mxu0
        %v630 = vpop.f32.mrf.mxu0
        %v631 = vpop.f32.mrf.mxu0
        %632 = vdwg.mxu0
        %v633 = vsel %vm395, %v628, -inf
        %634 = vmax.xlane.f32.xlu0 %v633
        %v635 = vpop.xlane.xlu0 %634
        %v636 = vsub.f32 %v628, %v635
        %v637 = vmul.f32 %v636, 1.442695
        %v638 = vpow.pop %v637
        %v639 = vsel %vm395, %v638, 0.0
        %640 = vadd.xlane.f32.xlu0 %v639
        %v641 = vpop.xlane.xlu0 %640
        %v642 = vpack.c.bf16 %v638, %v638
        %643 = vrot.lane.b32.xlu0 %v410, 64
        %v644 = vpop.permute.xlu0 %643
        %v646 = vsel %vm395, %v642, 0
        %v649 = vsel %vm414, %v644, 0
        %651 = vmatprep.subr.bf16.mxu0 0
        %652 = vmatpush1.bf16.msra.mxu0 0
        %653 = vmatprep.subr.bf16.mxu0 0
        %654 = vmatpush1.bf16.msra.mxu0 0
        %655 = vmatprep.subr.bf16.mxu0 0
        %656 = vmatpush1.bf16.msra.mxu0 0
        %657 = vmatprep.subr.bf16.mxu0 0
        %658 = vmatpush1.bf16.msra.mxu0 0
        %659 = vmatprep.subr.bf16.mxu0 0
        %660 = vmatpush1.bf16.msra.mxu0 0
        %661 = vmatprep.subr.bf16.mxu0 0
        %662 = vmatpush1.bf16.msra.mxu0 0
        %663 = vmatprep.subr.bf16.mxu0 0
        %664 = vmatpush1.bf16.msra.mxu0 0
        %665 = vmatprep.subr.bf16.mxu0 0
        %666 = vmatpush1.bf16.msra.mxu0 %v649
        %667 = vmatprep.subr.bf16.mxu0 0
        %668 = vmatpush2.bf16.msra.mxu0 0
        %669 = vmatprep.subr.bf16.mxu0 0
        %670 = vmatpush2.bf16.msra.mxu0 0
        %671 = vmatprep.subr.bf16.mxu0 0
        %672 = vmatpush2.bf16.msra.mxu0 0
        %673 = vmatprep.subr.bf16.mxu0 0
        %674 = vmatpush2.bf16.msra.mxu0 0
        %675 = vmatprep.subr.bf16.mxu0 0
        %676 = vmatpush2.bf16.msra.mxu0 0
        %677 = vmatprep.subr.bf16.mxu0 0
        %678 = vmatpush2.bf16.msra.mxu0 0
        %679 = vmatprep.subr.bf16.mxu0 0
        %680 = vmatpush2.bf16.msra.mxu0 0
        %681 = vmatprep.subr.bf16.mxu0 0
        %682 = vmatpush2.bf16.msra.mxu0 0
        %683 = vmatprep.mubr.bf16.mxu0 0
        %684 = vmatmul.mubr.bf16.gmra.mxu0 %v646
        %v685 = vpop.f32.mrf.mxu0
        %v686 = vadd.f32 0.0, %v685
        %v687 = vpop.f32.mrf.mxu0
        %v688 = vpop.f32.mrf.mxu0
        %v689 = vpop.f32.mrf.mxu0
        %690 = vdwg.mxu0
        %v691 = vrcp.pop %v641
        %v692 = vmul.f32 %v686, %v691
        %v693 = vpack.c.bf16 %v692, %v692
        %v695 = vunpack.c.l.b16 %v693
        %v696 = vpack.c.b16 %v695, %v695
        %697 = vrot.lane.b32.xlu0 %v696, 64
        %v698 = vpop.permute.xlu0 %697
        %vm700 = vcmask 781824
        %701 = vst.msk [vmem:[%s333] sm:$0xf] %vm700, %v698
        %702 = vrot.lane.b32.xlu0 %v342, 32
        %v703 = vpop.permute.xlu0 %702
        %704 = vrot.lane.b32.xlu0 %v347, 32
        %v705 = vpop.permute.xlu0 %704
        %v707 = vsel %vm348, %v703, 0
        %v710 = vsel %vm348, %v705, 0
        %712 = vmatprep.subr.bf16.mxu0 0
        %713 = vmatpush1.bf16.xpose.msra.mxu0 0
        %714 = vmatprep.subr.bf16.mxu0 0
        %715 = vmatpush1.bf16.xpose.msra.mxu0 0
        %716 = vmatprep.subr.bf16.mxu0 0
        %717 = vmatpush1.bf16.xpose.msra.mxu0 0
        %718 = vmatprep.subr.bf16.mxu0 0
        %719 = vmatpush1.bf16.xpose.msra.mxu0 0
        %720 = vmatprep.subr.bf16.mxu0 0
        %721 = vmatpush1.bf16.xpose.msra.mxu0 0
        %722 = vmatprep.subr.bf16.mxu0 0
        %723 = vmatpush1.bf16.xpose.msra.mxu0 0
        %724 = vmatprep.subr.bf16.mxu0 0
        %725 = vmatpush1.bf16.xpose.msra.mxu0 0
        %726 = vmatprep.subr.bf16.mxu0 0
        %727 = vmatpush1.bf16.xpose.msra.mxu0 %v710
        %728 = vmatprep.subr.bf16.mxu0 0
        %729 = vmatpush2.bf16.xpose.msra.mxu0 0
        %730 = vmatprep.subr.bf16.mxu0 0
        %731 = vmatpush2.bf16.xpose.msra.mxu0 0
        %732 = vmatprep.subr.bf16.mxu0 0
        %733 = vmatpush2.bf16.xpose.msra.mxu0 0
        %734 = vmatprep.subr.bf16.mxu0 0
        %735 = vmatpush2.bf16.xpose.msra.mxu0 0
        %736 = vmatprep.subr.bf16.mxu0 0
        %737 = vmatpush2.bf16.xpose.msra.mxu0 0
        %738 = vmatprep.subr.bf16.mxu0 0
        %739 = vmatpush2.bf16.xpose.msra.mxu0 0
        %740 = vmatprep.subr.bf16.mxu0 0
        %741 = vmatpush2.bf16.xpose.msra.mxu0 0
        %742 = vmatprep.subr.bf16.mxu0 0
        %743 = vmatpush2.bf16.xpose.msra.mxu0 0
        %744 = vmatprep.mubr.bf16.mxu0 0
        %745 = vmatmul.mubr.bf16.gmra.mxu0 %v707
        %v746 = vpop.f32.mrf.mxu0
        %v747 = vadd.f32 0.0, %v746
        %v748 = vpop.f32.mrf.mxu0
        %v749 = vpop.f32.mrf.mxu0
        %v750 = vpop.f32.mrf.mxu0
        %751 = vdwg.mxu0
        %v752 = vsel %vm395, %v747, -inf
        %753 = vmax.xlane.f32.xlu0 %v752
        %v754 = vpop.xlane.xlu0 %753
        %v755 = vsub.f32 %v747, %v754
        %v756 = vmul.f32 %v755, 1.442695
        %v757 = vpow.pop %v756
        %v758 = vsel %vm395, %v757, 0.0
        %759 = vadd.xlane.f32.xlu0 %v758
        %v760 = vpop.xlane.xlu0 %759
        %v761 = vpack.c.bf16 %v757, %v757
        %762 = vrot.lane.b32.xlu0 %v410, 32
        %v763 = vpop.permute.xlu0 %762
        %v765 = vsel %vm395, %v761, 0
        %v768 = vsel %vm414, %v763, 0
        %770 = vmatprep.subr.bf16.mxu0 0
        %771 = vmatpush1.bf16.msra.mxu0 0
        %772 = vmatprep.subr.bf16.mxu0 0
        %773 = vmatpush1.bf16.msra.mxu0 0
        %774 = vmatprep.subr.bf16.mxu0 0
        %775 = vmatpush1.bf16.msra.mxu0 0
        %776 = vmatprep.subr.bf16.mxu0 0
        %777 = vmatpush1.bf16.msra.mxu0 0
        %778 = vmatprep.subr.bf16.mxu0 0
        %779 = vmatpush1.bf16.msra.mxu0 0
        %780 = vmatprep.subr.bf16.mxu0 0
        %781 = vmatpush1.bf16.msra.mxu0 0
        %782 = vmatprep.subr.bf16.mxu0 0
        %783 = vmatpush1.bf16.msra.mxu0 0
        %784 = vmatprep.subr.bf16.mxu0 0
        %785 = vmatpush1.bf16.msra.mxu0 %v768
        %786 = vmatprep.subr.bf16.mxu0 0
        %787 = vmatpush2.bf16.msra.mxu0 0
        %788 = vmatprep.subr.bf16.mxu0 0
        %789 = vmatpush2.bf16.msra.mxu0 0
        %790 = vmatprep.subr.bf16.mxu0 0
        %791 = vmatpush2.bf16.msra.mxu0 0
        %792 = vmatprep.subr.bf16.mxu0 0
        %793 = vmatpush2.bf16.msra.mxu0 0
        %794 = vmatprep.subr.bf16.mxu0 0
        %795 = vmatpush2.bf16.msra.mxu0 0
        %796 = vmatprep.subr.bf16.mxu0 0
        %797 = vmatpush2.bf16.msra.mxu0 0
        %798 = vmatprep.subr.bf16.mxu0 0
        %799 = vmatpush2.bf16.msra.mxu0 0
        %800 = vmatprep.subr.bf16.mxu0 0
        %801 = vmatpush2.bf16.msra.mxu0 0
        %802 = vmatprep.mubr.bf16.mxu0 0
        %803 = vmatmul.mubr.bf16.gmra.mxu0 %v765
        %v804 = vpop.f32.mrf.mxu0
        %v805 = vadd.f32 0.0, %v804
        %v806 = vpop.f32.mrf.mxu0
        %v807 = vpop.f32.mrf.mxu0
        %v808 = vpop.f32.mrf.mxu0
        %809 = vdwg.mxu0
        %v810 = vrcp.pop %v760
        %v811 = vmul.f32 %v805, %v810
        %v812 = vpack.c.bf16 %v811, %v811
        %v814 = vunpack.c.l.b16 %v812
        %v815 = vpack.c.b16 %v814, %v814
        %816 = vrot.lane.b32.xlu0 %v815, 96
        %v817 = vpop.permute.xlu0 %816
        %vm819 = vcmask 1044224
        %820 = vst.msk [vmem:[%s333] sm:$0xf] %vm819, %v817
        %p821 = scmp.lt.s32.totalorder %s18, 1
        %s822 = scalar_select %p821, %s18, 1
        %p823 = scmp.lt.s32.totalorder %s19, 0
        %s824 = scalar_select %p823, %s19, 0
        %s825 = sadd.s32 %s824, %s822
        %s826 = smul.addr %s825, 4
        %s827 = scalar_lea.vmem %s3, %s826
        // Predicated region
        $region115: #{transformer_decoder.23} parent=105 // pred_check
          %p828 = pneg %p126
        $region116: #{transformer_decoder.23} parent=105 // pred_check_branch
          %830 = sbr.rel (%p828) target = $region118
        $region117: #{transformer_decoder.23} parent=105 // pred_region
          _
        $region118: #{transformer_decoder.23} parent=105 // pred_fallthru
          _
      $region106: #{transformer_decoder.23} parent=5 // pred_fallthru
        _
      %p831 = scmp.le.s32.totalorder 2, %s9
      // Predicated region
      $region119: #{transformer_decoder.23} parent=5 // pred_check
        %p832 = pneg %p831
      $region120: #{transformer_decoder.23} parent=5 // pred_check_branch
        %834 = sbr.rel (%p832) target = $region122
      $region121: #{transformer_decoder.23} parent=5 // pred_region
        %s835 = ssub.s32 %s9, 2
        // Predicated region
        $region123: #{transformer_decoder.23} parent=121 // pred_check
          %p836 = pneg %p132
        $region124: #{transformer_decoder.23} parent=121 // pred_check_branch
          %838 = sbr.rel (%p836) target = $region126
        $region125: #{transformer_decoder.23} parent=121 // pred_region
          %p839 = scmp.lt.s32.totalorder %s20, 1
          %s840 = scalar_select %p839, %s20, 1
          %p841 = scmp.lt.s32.totalorder %s21, 0
          %s842 = scalar_select %p841, %s21, 0
          %s843 = sadd.s32 %s842, %s840
          %s844 = smul.addr %s843, 4
          %s845 = scalar_lea.vmem %s3, %s844
        $region126: #{transformer_decoder.23} parent=121 // pred_fallthru
          _
      $region122: #{transformer_decoder.23} parent=5 // pred_fallthru
        _
    $region6: #{transformer_decoder.23} parent=1 // loop_footer
      %s13 = sadd.s32 1, %s9
    $region7: #{transformer_decoder.23} parent=1 // loop_footer_branch
      %8 = sbr.rel target = $region3
    $region8: #{transformer_decoder.23} parent=1 // loop_exit
      _

// kernel: transformer_decoder.26
$region0: #{transformer_decoder.26}
  #allocation0 [shape = 'u32[]', space=smem, size = 0x4, offset = 0x4, fixed_abs, tag = 'smem constant byte address 0x4 - core index']
  #allocation1 [shape = 'u32[144,128]{1,0:T(1,128)}', space=vmem, size = 0x12000, scoped, tag = 'internal scratch']
  #allocation2 [shape = 'f32[16,128]{1,0:T(8,128)}', space=vmem, size = 0x2000, scoped, tag = 'scratch operand']
  %s0 = inlined_call_operand.vmem [shape: bf16[16,256], index: 0, kind: input, shape index: {}]
  %s1 = inlined_call_operand.vmem [shape: bf16[256,128], index: 1, kind: input, shape index: {}]
  %s2 = inlined_call_operand.vmem [shape: f32[1,128], index: 2, kind: input, shape index: {}]
  %s3 = inlined_call_operand.vmem [shape: bf16[16,128], index: 3, kind: input, shape index: {}]
  %s4 = inlined_call_operand.vmem [shape: f32[1,128], index: 4, kind: input, shape index: {}]
  %s5 = inlined_call_operand.vmem [shape: f32[1,128], index: 5, kind: input, shape index: {}]
  %s6 = inlined_call_operand.vmem [shape: bf16[16,128], index: 6, kind: output, shape index: {}]
  %s7 = sld [smem:[#allocation0]]
  $region42: #{transformer_decoder.26} parent=0
    _
  %s9 = ssub.s32 1, %s7
  %s10 = scalar_select 0, %s9, %s7
  // Predicated region
  $region2: #{transformer_decoder.26} parent=0 // pred_check
    _
  $region3: #{transformer_decoder.26} parent=0 // pred_check_branch
    %12 = sbr.rel (0) target = $region5
  $region4: #{transformer_decoder.26} parent=0 // pred_region
    _
  $region5: #{transformer_decoder.26} parent=0 // pred_fallthru
    _
  // Predicated region
  $region6: #{transformer_decoder.26} parent=0 // pred_check
    _
  $region7: #{transformer_decoder.26} parent=0 // pred_check_branch
    %14 = sbr.rel (0) target = $region9
  $region8: #{transformer_decoder.26} parent=0 // pred_region
    _
  $region9: #{transformer_decoder.26} parent=0 // pred_fallthru
    _
  // Predicated region
  $region10: #{transformer_decoder.26} parent=0 // pred_check
    _
  $region11: #{transformer_decoder.26} parent=0 // pred_check_branch
    %16 = sbr.rel (0) target = $region13
  $region12: #{transformer_decoder.26} parent=0 // pred_region
    _
  $region13: #{transformer_decoder.26} parent=0 // pred_fallthru
    _
  // Predicated region
  $region14: #{transformer_decoder.26} parent=0 // pred_check
    _
  $region15: #{transformer_decoder.26} parent=0 // pred_check_branch
    %18 = sbr.rel (0) target = $region17
  $region16: #{transformer_decoder.26} parent=0 // pred_region
    _
  $region17: #{transformer_decoder.26} parent=0 // pred_fallthru
    _
  // Predicated region
  $region18: #{transformer_decoder.26} parent=0 // pred_check
    _
  $region19: #{transformer_decoder.26} parent=0 // pred_check_branch
    %20 = sbr.rel (0) target = $region21
  $region20: #{transformer_decoder.26} parent=0 // pred_region
    _
  $region21: #{transformer_decoder.26} parent=0 // pred_fallthru
    _
  // Predicated region
  $region22: #{transformer_decoder.26} parent=0 // pred_check
    _
  $region23: #{transformer_decoder.26} parent=0 // pred_check_branch
    %22 = sbr.rel (0) target = $region25
  $region24: #{transformer_decoder.26} parent=0 // pred_region
    _
  $region25: #{transformer_decoder.26} parent=0 // pred_fallthru
    _
  %p24 = scmp.eq.s32.totalorder 0, 0
  // Predicated region
  $region26: #{transformer_decoder.26} parent=0 // pred_check
    %p25 = pneg %p24
  $region27: #{transformer_decoder.26} parent=0 // pred_check_branch
    %27 = sbr.rel (%p25) target = $region29
  $region28: #{transformer_decoder.26} parent=0 // pred_region
    %28 = vst [vmem:[#allocation2] sm:$0xff] 0.0
    %29 = vst [vmem:[#allocation2 + $0x8] sm:$0xff] 0.0
  $region29: #{transformer_decoder.26} parent=0 // pred_fallthru
    _
  %v30 = vld [vmem:[#allocation2] sm:$0xff]
  %v31 = vld [vmem:[#allocation2 + $0x8] sm:$0xff]
  %v32 = vld [vmem:[%s0] sm:$0xff]
  %v33 = vld [vmem:[%s0 + $0x8] sm:$0xff]
  %v34 = vld [vmem:[%s1] sm:$0xf]
  %v35 = vld [vmem:[%s1 + $0x4] sm:$0xf]
  %v36 = vld [vmem:[%s1 + $0x8] sm:$0xf]
  %v37 = vld [vmem:[%s1 + $0xc] sm:$0xf]
  %v38 = vld [vmem:[%s1 + $0x10] sm:$0xf]
  %v39 = vld [vmem:[%s1 + $0x14] sm:$0xf]
  %v40 = vld [vmem:[%s1 + $0x18] sm:$0xf]
  %v41 = vld [vmem:[%s1 + $0x1c] sm:$0xf]
  %v42 = vld [vmem:[%s1 + $0x20] sm:$0xf]
  %v43 = vld [vmem:[%s1 + $0x24] sm:$0xf]
  %v44 = vld [vmem:[%s1 + $0x28] sm:$0xf]
  %v45 = vld [vmem:[%s1 + $0x2c] sm:$0xf]
  %v46 = vld [vmem:[%s1 + $0x30] sm:$0xf]
  %v47 = vld [vmem:[%s1 + $0x34] sm:$0xf]
  %v48 = vld [vmem:[%s1 + $0x38] sm:$0xf]
  %v49 = vld [vmem:[%s1 + $0x3c] sm:$0xf]
  %v50 = vld [vmem:[%s1 + $0x40] sm:$0xf]
  %v51 = vld [vmem:[%s1 + $0x44] sm:$0xf]
  %v52 = vld [vmem:[%s1 + $0x48] sm:$0xf]
  %v53 = vld [vmem:[%s1 + $0x4c] sm:$0xf]
  %v54 = vld [vmem:[%s1 + $0x50] sm:$0xf]
  %v55 = vld [vmem:[%s1 + $0x54] sm:$0xf]
  %v56 = vld [vmem:[%s1 + $0x58] sm:$0xf]
  %v57 = vld [vmem:[%s1 + $0x5c] sm:$0xf]
  %v58 = vld [vmem:[%s1 + $0x60] sm:$0xf]
  %v59 = vld [vmem:[%s1 + $0x64] sm:$0xf]
  %v60 = vld [vmem:[%s1 + $0x68] sm:$0xf]
  %v61 = vld [vmem:[%s1 + $0x6c] sm:$0xf]
  %v62 = vld [vmem:[%s1 + $0x70] sm:$0xf]
  %v63 = vld [vmem:[%s1 + $0x74] sm:$0xf]
  %v64 = vld [vmem:[%s1 + $0x78] sm:$0xf]
  %v65 = vld [vmem:[%s1 + $0x7c] sm:$0xf]
  %v68 = vunpack.c.l.b16 %v32
  %v69 = vunpack.c.h.b16 %v32
  %v70 = vunpack.c.l.b16 %v33
  %v71 = vunpack.c.h.b16 %v33
  %v72 = vpack.c.b16 %v70, %v68
  %v73 = vpack.c.b16 %v71, %v69
  %v108 = vunpack.c.l.b16 %v34
  %v109 = vunpack.c.l.b16 %v35
  %v110 = vunpack.c.l.b16 %v36
  %v111 = vunpack.c.l.b16 %v37
  %v112 = vunpack.c.l.b16 %v38
  %v113 = vunpack.c.l.b16 %v39
  %v114 = vunpack.c.l.b16 %v40
  %v115 = vunpack.c.l.b16 %v41
  %v116 = vunpack.c.l.b16 %v42
  %v117 = vunpack.c.l.b16 %v43
  %v118 = vunpack.c.l.b16 %v44
  %v119 = vunpack.c.l.b16 %v45
  %v120 = vunpack.c.l.b16 %v46
  %v121 = vunpack.c.l.b16 %v47
  %v122 = vunpack.c.l.b16 %v48
  %v123 = vunpack.c.l.b16 %v49
  %v124 = vunpack.c.l.b16 %v50
  %v125 = vunpack.c.l.b16 %v51
  %v126 = vunpack.c.l.b16 %v52
  %v127 = vunpack.c.l.b16 %v53
  %v128 = vunpack.c.l.b16 %v54
  %v129 = vunpack.c.l.b16 %v55
  %v130 = vunpack.c.l.b16 %v56
  %v131 = vunpack.c.l.b16 %v57
  %v132 = vunpack.c.l.b16 %v58
  %v133 = vunpack.c.l.b16 %v59
  %v134 = vunpack.c.l.b16 %v60
  %v135 = vunpack.c.l.b16 %v61
  %v136 = vunpack.c.l.b16 %v62
  %v137 = vunpack.c.l.b16 %v63
  %v138 = vunpack.c.l.b16 %v64
  %v139 = vunpack.c.l.b16 %v65
  %v140 = vpack.c.b16 %v109, %v108
  %v141 = vpack.c.b16 %v111, %v110
  %v142 = vpack.c.b16 %v113, %v112
  %v143 = vpack.c.b16 %v115, %v114
  %v144 = vpack.c.b16 %v117, %v116
  %v145 = vpack.c.b16 %v119, %v118
  %v146 = vpack.c.b16 %v121, %v120
  %v147 = vpack.c.b16 %v123, %v122
  %v148 = vpack.c.b16 %v125, %v124
  %v149 = vpack.c.b16 %v127, %v126
  %v150 = vpack.c.b16 %v129, %v128
  %v151 = vpack.c.b16 %v131, %v130
  %v152 = vpack.c.b16 %v133, %v132
  %v153 = vpack.c.b16 %v135, %v134
  %v154 = vpack.c.b16 %v137, %v136
  %v155 = vpack.c.b16 %v139, %v138
  %172 = vmatprep.subr.bf16.mxu0 0
  %173 = vmatpush1.bf16.msra.mxu0 %v147
  %174 = vmatprep.subr.bf16.mxu0 0
  %175 = vmatpush1.bf16.msra.mxu0 %v146
  %176 = vmatprep.subr.bf16.mxu0 0
  %177 = vmatpush1.bf16.msra.mxu0 %v145
  %178 = vmatprep.subr.bf16.mxu0 0
  %179 = vmatpush1.bf16.msra.mxu0 %v144
  %180 = vmatprep.subr.bf16.mxu0 0
  %181 = vmatpush1.bf16.msra.mxu0 %v143
  %182 = vmatprep.subr.bf16.mxu0 0
  %183 = vmatpush1.bf16.msra.mxu0 %v142
  %184 = vmatprep.subr.bf16.mxu0 0
  %185 = vmatpush1.bf16.msra.mxu0 %v141
  %186 = vmatprep.subr.bf16.mxu0 0
  %187 = vmatpush1.bf16.msra.mxu0 %v140
  %188 = vmatprep.subr.bf16.mxu0 0
  %189 = vmatpush2.bf16.msra.mxu0 %v155
  %190 = vmatprep.subr.bf16.mxu0 0
  %191 = vmatpush2.bf16.msra.mxu0 %v154
  %192 = vmatprep.subr.bf16.mxu0 0
  %193 = vmatpush2.bf16.msra.mxu0 %v153
  %194 = vmatprep.subr.bf16.mxu0 0
  %195 = vmatpush2.bf16.msra.mxu0 %v152
  %196 = vmatprep.subr.bf16.mxu0 0
  %197 = vmatpush2.bf16.msra.mxu0 %v151
  %198 = vmatprep.subr.bf16.mxu0 0
  %199 = vmatpush2.bf16.msra.mxu0 %v150
  %200 = vmatprep.subr.bf16.mxu0 0
  %201 = vmatpush2.bf16.msra.mxu0 %v149
  %202 = vmatprep.subr.bf16.mxu0 0
  %203 = vmatpush2.bf16.msra.mxu0 %v148
  %204 = vmatprep.mubr.bf16.mxu0 %v73
  %205 = vmatmul.mubr.bf16.gmra.mxu0 %v72
  %v206 = vpop.f32.mrf.mxu0
  %v207 = vadd.f32 0.0, %v206
  %v208 = vpop.f32.mrf.mxu0
  %v209 = vpop.f32.mrf.mxu0
  %v210 = vadd.f32 0.0, %v209
  %v211 = vpop.f32.mrf.mxu0
  %212 = vdwg.mxu0
  %v213 = vadd.f32 %v30, %v207
  %v214 = vadd.f32 %v31, %v210
  %215 = vst [vmem:[#allocation2] sm:$0xff] %v213
  %216 = vst [vmem:[#allocation2 + $0x8] sm:$0xff] %v214
  // Predicated region
  $region30: #{transformer_decoder.26} parent=0 // pred_check
    %p217 = pneg %p24
  $region31: #{transformer_decoder.26} parent=0 // pred_check_branch
    %219 = sbr.rel (%p217) target = $region33
  $region32: #{transformer_decoder.26} parent=0 // pred_region
    %v220 = vld [vmem:[#allocation2] sm:$0xff]
    %v221 = vld [vmem:[#allocation2 + $0x8] sm:$0xff]
    %v222 = vld [vmem:[%s2] sm:$0x1]
    %v224 = vlaneseq
    %v225 = vshrl.u32 %v224, 7
    %v226 = vsub.s32 0, %v225
    %v227 = vrot.slane %v222, %v226
    %v229 = vadd.f32 %v220, %v227
    %v230 = vadd.f32 %v221, %v227
    %v231 = vld [vmem:[%s3] sm:$0xf]
    %v232 = vld [vmem:[%s3 + $0x4] sm:$0xf]
    %v233 = vunpack.c.l.bf16 %v231
    %v234 = vunpack.c.l.bf16 %v232
    %v235 = vadd.f32 %v229, %v233
    %v236 = vadd.f32 %v230, %v234
    %237 = vadd.xlane.f32.xlu0 %v235
    %v238 = vpop.xlane.xlu0 %237
    %239 = vadd.xlane.f32.xlu0 %v236
    %v240 = vpop.xlane.xlu0 %239
    %v241 = vrcp.pop 128.0
    %v242 = vmul.f32 %v238, %v241
    %v243 = vmul.f32 %v240, %v241
    %v244 = vsub.f32 %v235, %v242
    %v245 = vsub.f32 %v236, %v243
    %v246 = vmul.f32 %v244, %v244
    %v247 = vmul.f32 %v245, %v245
    %248 = vadd.xlane.f32.xlu0 %v246
    %v249 = vpop.xlane.xlu0 %248
    %250 = vadd.xlane.f32.xlu0 %v247
    %v251 = vpop.xlane.xlu0 %250
    %v252 = vmul.f32 %v249, %v241
    %v253 = vmul.f32 %v251, %v241
    %v254 = vadd.f32 %v252, 1e-05
    %v255 = vadd.f32 %v253, 1e-05
    %v256 = vrsqrt.pop %v254
    %v257 = vrsqrt.pop %v255
    %v258 = vmul.f32 %v244, %v256
    %v259 = vmul.f32 %v245, %v257
    %v260 = vld [vmem:[%s4] sm:$0x1]
    %v262 = vlaneseq
    %v263 = vshrl.u32 %v262, 7
    %v264 = vsub.s32 0, %v263
    %v265 = vrot.slane %v260, %v264
    %v267 = vmul.f32 %v258, %v265
    %v268 = vmul.f32 %v259, %v265
    %v269 = vld [vmem:[%s5] sm:$0x1]
    %v271 = vlaneseq
    %v272 = vshrl.u32 %v271, 7
    %v273 = vsub.s32 0, %v272
    %v274 = vrot.slane %v269, %v273
    %v276 = vadd.f32 %v267, %v274
    %v277 = vadd.f32 %v268, %v274
    %v278 = vpack.c.bf16 %v277, %v276
    %v280 = vunpack.c.l.b16 %v278
    %v281 = vunpack.c.h.b16 %v278
    %v282 = vpack.c.b16 %v280, %v280
    %v283 = vpack.c.b16 %v281, %v281
    %286 = vst [vmem:[%s6] sm:$0xf] %v282
    %287 = vst [vmem:[%s6 + $0x4] sm:$0xf] %v283
  $region33: #{transformer_decoder.26} parent=0 // pred_fallthru
    _
  // Predicated region
  $region34: #{transformer_decoder.26} parent=0 // pred_check
    _
  $region35: #{transformer_decoder.26} parent=0 // pred_check_branch
    %289 = sbr.rel (0) target = $region37
  $region36: #{transformer_decoder.26} parent=0 // pred_region
    _
  $region37: #{transformer_decoder.26} parent=0 // pred_fallthru
    _
  // Predicated region
  $region38: #{transformer_decoder.26} parent=0 // pred_check
    _
  $region39: #{transformer_decoder.26} parent=0 // pred_check_branch
    %291 = sbr.rel (0) target = $region41
  $region40: #{transformer_decoder.26} parent=0 // pred_region
    _
  $region41: #{transformer_decoder.26} parent=0 // pred_fallthru
    _

// kernel: transformer_decoder.25
$region0: #{transformer_decoder.25}
  #allocation0 [shape = 'u32[]', space=smem, size = 0x4, offset = 0x4, fixed_abs, tag = 'smem constant byte address 0x4 - core index']
  #allocation1 [shape = 'u32[144,128]{1,0:T(1,128)}', space=vmem, size = 0x12000, scoped, tag = 'internal scratch']
  #allocation2 [shape = 'f32[16,256]{1,0:T(8,128)}', space=vmem, size = 0x4000, scoped, tag = 'scratch operand']
  %s0 = inlined_call_operand.vmem [shape: bf16[16,128], index: 0, kind: input, shape index: {}]
  %s1 = inlined_call_operand.vmem [shape: bf16[128,256], index: 1, kind: input, shape index: {}]
  %s2 = inlined_call_operand.vmem [shape: f32[1,256], index: 2, kind: input, shape index: {}]
  %s3 = inlined_call_operand.vmem [shape: bf16[16,256], index: 3, kind: output, shape index: {}]
  %s4 = sld [smem:[#allocation0]]
  $region30: #{transformer_decoder.25} parent=0
    _
  %s6 = ssub.s32 1, %s4
  %s7 = scalar_select 0, %s6, %s4
  // Predicated region
  $region2: #{transformer_decoder.25} parent=0 // pred_check
    _
  $region3: #{transformer_decoder.25} parent=0 // pred_check_branch
    %9 = sbr.rel (0) target = $region5
  $region4: #{transformer_decoder.25} parent=0 // pred_region
    _
  $region5: #{transformer_decoder.25} parent=0 // pred_fallthru
    _
  // Predicated region
  $region6: #{transformer_decoder.25} parent=0 // pred_check
    _
  $region7: #{transformer_decoder.25} parent=0 // pred_check_branch
    %11 = sbr.rel (0) target = $region9
  $region8: #{transformer_decoder.25} parent=0 // pred_region
    _
  $region9: #{transformer_decoder.25} parent=0 // pred_fallthru
    _
  // Predicated region
  $region10: #{transformer_decoder.25} parent=0 // pred_check
    _
  $region11: #{transformer_decoder.25} parent=0 // pred_check_branch
    %13 = sbr.rel (0) target = $region13
  $region12: #{transformer_decoder.25} parent=0 // pred_region
    _
  $region13: #{transformer_decoder.25} parent=0 // pred_fallthru
    _
  %p15 = scmp.eq.s32.totalorder 0, 0
  // Predicated region
  $region14: #{transformer_decoder.25} parent=0 // pred_check
    %p16 = pneg %p15
  $region15: #{transformer_decoder.25} parent=0 // pred_check_branch
    %18 = sbr.rel (%p16) target = $region17
  $region16: #{transformer_decoder.25} parent=0 // pred_region
    %19 = vst [vmem:[#allocation2] sm:$0xff] 0.0
    %20 = vst [vmem:[#allocation2 + $0x8] sm:$0xff] 0.0
    %21 = vst [vmem:[#allocation2 + $0x10] sm:$0xff] 0.0
    %22 = vst [vmem:[#allocation2 + $0x18] sm:$0xff] 0.0
  $region17: #{transformer_decoder.25} parent=0 // pred_fallthru
    _
  %v23 = vld [vmem:[#allocation2] sm:$0xff]
  %v24 = vld [vmem:[#allocation2 + $0x8] sm:$0xff]
  %v25 = vld [vmem:[#allocation2 + $0x10] sm:$0xff]
  %v26 = vld [vmem:[#allocation2 + $0x18] sm:$0xff]
  %v27 = vld [vmem:[%s0] sm:$0xf]
  %v28 = vld [vmem:[%s0 + $0x4] sm:$0xf]
  %v29 = vld [vmem:[%s1] sm:$0xff]
  %v30 = vld [vmem:[%s1 + $0x8] sm:$0xff]
  %v31 = vld [vmem:[%s1 + $0x10] sm:$0xff]
  %v32 = vld [vmem:[%s1 + $0x18] sm:$0xff]
  %v33 = vld [vmem:[%s1 + $0x20] sm:$0xff]
  %v34 = vld [vmem:[%s1 + $0x28] sm:$0xff]
  %v35 = vld [vmem:[%s1 + $0x30] sm:$0xff]
  %v36 = vld [vmem:[%s1 + $0x38] sm:$0xff]
  %v37 = vld [vmem:[%s1 + $0x40] sm:$0xff]
  %v38 = vld [vmem:[%s1 + $0x48] sm:$0xff]
  %v39 = vld [vmem:[%s1 + $0x50] sm:$0xff]
  %v40 = vld [vmem:[%s1 + $0x58] sm:$0xff]
  %v41 = vld [vmem:[%s1 + $0x60] sm:$0xff]
  %v42 = vld [vmem:[%s1 + $0x68] sm:$0xff]
  %v43 = vld [vmem:[%s1 + $0x70] sm:$0xff]
  %v44 = vld [vmem:[%s1 + $0x78] sm:$0xff]
  %v47 = vunpack.c.l.b16 %v27
  %v48 = vunpack.c.l.b16 %v28
  %v49 = vpack.c.b16 %v48, %v47
  %v67 = vunpack.c.l.b16 %v29
  %v68 = vunpack.c.h.b16 %v29
  %v69 = vunpack.c.l.b16 %v30
  %v70 = vunpack.c.h.b16 %v30
  %v71 = vunpack.c.l.b16 %v31
  %v72 = vunpack.c.h.b16 %v31
  %v73 = vunpack.c.l.b16 %v32
  %v74 = vunpack.c.h.b16 %v32
  %v75 = vunpack.c.l.b16 %v33
  %v76 = vunpack.c.h.b16 %v33
  %v77 = vunpack.c.l.b16 %v34
  %v78 = vunpack.c.h.b16 %v34
  %v79 = vunpack.c.l.b16 %v35
  %v80 = vunpack.c.h.b16 %v35
  %v81 = vunpack.c.l.b16 %v36
  %v82 = vunpack.c.h.b16 %v36
  %v83 = vunpack.c.l.b16 %v37
  %v84 = vunpack.c.h.b16 %v37
  %v85 = vunpack.c.l.b16 %v38
  %v86 = vunpack.c.h.b16 %v38
  %v87 = vunpack.c.l.b16 %v39
  %v88 = vunpack.c.h.b16 %v39
  %v89 = vunpack.c.l.b16 %v40
  %v90 = vunpack.c.h.b16 %v40
  %v91 = vunpack.c.l.b16 %v41
  %v92 = vunpack.c.h.b16 %v41
  %v93 = vunpack.c.l.b16 %v42
  %v94 = vunpack.c.h.b16 %v42
  %v95 = vunpack.c.l.b16 %v43
  %v96 = vunpack.c.h.b16 %v43
  %v97 = vunpack.c.l.b16 %v44
  %v98 = vunpack.c.h.b16 %v44
  %v99 = vpack.c.b16 %v69, %v67
  %v100 = vpack.c.b16 %v70, %v68
  %v101 = vpack.c.b16 %v73, %v71
  %v102 = vpack.c.b16 %v74, %v72
  %v103 = vpack.c.b16 %v77, %v75
  %v104 = vpack.c.b16 %v78, %v76
  %v105 = vpack.c.b16 %v81, %v79
  %v106 = vpack.c.b16 %v82, %v80
  %v107 = vpack.c.b16 %v85, %v83
  %v108 = vpack.c.b16 %v86, %v84
  %v109 = vpack.c.b16 %v89, %v87
  %v110 = vpack.c.b16 %v90, %v88
  %v111 = vpack.c.b16 %v93, %v91
  %v112 = vpack.c.b16 %v94, %v92
  %v113 = vpack.c.b16 %v97, %v95
  %v114 = vpack.c.b16 %v98, %v96
  %131 = vmatprep.subr.bf16.mxu0 %v114
  %132 = vmatpush1.bf16.msra.mxu0 %v113
  %133 = vmatprep.subr.bf16.mxu0 %v112
  %134 = vmatpush1.bf16.msra.mxu0 %v111
  %135 = vmatprep.subr.bf16.mxu0 %v110
  %136 = vmatpush1.bf16.msra.mxu0 %v109
  %137 = vmatprep.subr.bf16.mxu0 %v108
  %138 = vmatpush1.bf16.msra.mxu0 %v107
  %139 = vmatprep.subr.bf16.mxu0 %v106
  %140 = vmatpush1.bf16.msra.mxu0 %v105
  %141 = vmatprep.subr.bf16.mxu0 %v104
  %142 = vmatpush1.bf16.msra.mxu0 %v103
  %143 = vmatprep.subr.bf16.mxu0 %v102
  %144 = vmatpush1.bf16.msra.mxu0 %v101
  %145 = vmatprep.subr.bf16.mxu0 %v100
  %146 = vmatpush1.bf16.msra.mxu0 %v99
  %147 = vmatprep.subr.bf16.mxu0 0
  %148 = vmatpush2.bf16.msra.mxu0 0
  %149 = vmatprep.subr.bf16.mxu0 0
  %150 = vmatpush2.bf16.msra.mxu0 0
  %151 = vmatprep.subr.bf16.mxu0 0
  %152 = vmatpush2.bf16.msra.mxu0 0
  %153 = vmatprep.subr.bf16.mxu0 0
  %154 = vmatpush2.bf16.msra.mxu0 0
  %155 = vmatprep.subr.bf16.mxu0 0
  %156 = vmatpush2.bf16.msra.mxu0 0
  %157 = vmatprep.subr.bf16.mxu0 0
  %158 = vmatpush2.bf16.msra.mxu0 0
  %159 = vmatprep.subr.bf16.mxu0 0
  %160 = vmatpush2.bf16.msra.mxu0 0
  %161 = vmatprep.subr.bf16.mxu0 0
  %162 = vmatpush2.bf16.msra.mxu0 0
  %163 = vmatprep.mubr.bf16.mxu0 0
  %164 = vmatmul.mubr.bf16.gmra.mxu0 %v49
  %v165 = vpop.f32.mrf.mxu0
  %v166 = vadd.f32 0.0, %v165
  %v167 = vpop.f32.mrf.mxu0
  %v168 = vadd.f32 0.0, %v167
  %v169 = vpop.f32.mrf.mxu0
  %v170 = vadd.f32 0.0, %v169
  %v171 = vpop.f32.mrf.mxu0
  %v172 = vadd.f32 0.0, %v171
  %173 = vdwg.mxu0
  %v174 = vadd.f32 %v23, %v166
  %v175 = vadd.f32 %v24, %v168
  %v176 = vadd.f32 %v25, %v170
  %v177 = vadd.f32 %v26, %v172
  %178 = vst [vmem:[#allocation2] sm:$0xff] %v174
  %179 = vst [vmem:[#allocation2 + $0x8] sm:$0xff] %v175
  %180 = vst [vmem:[#allocation2 + $0x10] sm:$0xff] %v176
  %181 = vst [vmem:[#allocation2 + $0x18] sm:$0xff] %v177
  // Predicated region
  $region18: #{transformer_decoder.25} parent=0 // pred_check
    %p182 = pneg %p15
  $region19: #{transformer_decoder.25} parent=0 // pred_check_branch
    %184 = sbr.rel (%p182) target = $region21
  $region20: #{transformer_decoder.25} parent=0 // pred_region
    %v185 = vld [vmem:[#allocation2] sm:$0xff]
    %v186 = vld [vmem:[#allocation2 + $0x8] sm:$0xff]
    %v187 = vld [vmem:[#allocation2 + $0x10] sm:$0xff]
    %v188 = vld [vmem:[#allocation2 + $0x18] sm:$0xff]
    %v189 = vld [vmem:[%s2] sm:$0x3]
    %v191 = vlaneseq
    %v192 = vshrl.u32 %v191, 7
    %v193 = vsub.s32 0, %v192
    %v194 = vrot.slane %v189, %v193
    %v195 = vlaneseq
    %v196 = vshrl.u32 %v195, 7
    %v197 = vsub.s32 1, %v196
    %v198 = vrot.slane %v189, %v197
    %v201 = vadd.f32 %v185, %v194
    %v202 = vadd.f32 %v186, %v198
    %v203 = vadd.f32 %v187, %v194
    %v204 = vadd.f32 %v188, %v198
    %v205 = vmax.f32 %v201, 0.0
    %v206 = vmax.f32 %v202, 0.0
    %v207 = vmax.f32 %v203, 0.0
    %v208 = vmax.f32 %v204, 0.0
    %v209 = vpack.c.bf16 %v207, %v205
    %v210 = vpack.c.bf16 %v208, %v206
    %v213 = vunpack.c.l.b16 %v209
    %v214 = vunpack.c.l.b16 %v210
    %v215 = vunpack.c.h.b16 %v209
    %v216 = vunpack.c.h.b16 %v210
    %v217 = vpack.c.b16 %v214, %v213
    %v218 = vpack.c.b16 %v216, %v215
    %221 = vst [vmem:[%s3] sm:$0xff] %v217
    %222 = vst [vmem:[%s3 + $0x8] sm:$0xff] %v218
  $region21: #{transformer_decoder.25} parent=0 // pred_fallthru
    _
  // Predicated region
  $region22: #{transformer_decoder.25} parent=0 // pred_check
    _
  $region23: #{transformer_decoder.25} parent=0 // pred_check_branch
    %224 = sbr.rel (0) target = $region25
  $region24: #{transformer_decoder.25} parent=0 // pred_region
    _
  $region25: #{transformer_decoder.25} parent=0 // pred_fallthru
    _
  // Predicated region
  $region26: #{transformer_decoder.25} parent=0 // pred_check
    _
  $region27: #{transformer_decoder.25} parent=0 // pred_check_branch
    %226 = sbr.rel (0) target = $region29
  $region28: #{transformer_decoder.25} parent=0 // pred_region
    _
  $region29: #{transformer_decoder.25} parent=0 // pred_fallthru
    _

</llo_original>
